<compile_context>
chip_gen: v5e
topology: v5e:2x2
jax: 0.10.0
libtpu: 0.0.40
codegen_flags: <defaults>
</compile_context>

<pallas_src>
import jax
import jax.numpy as jnp
from jax.experimental import pallas as pl
from jax.experimental.pallas import tpu as pltpu

# Hidden layer widths of BCNetLarge.
HIDDEN = (512, 1024, 512, 256, 128, 64)
MAX_BATCH_TILE = 512     # large-batch tile (multiple of 128/256 MXU rows)
MIN_SPLIT_BATCH = 256    # above this, force >= 2 grid steps (v7x dual-TC)
LANE = 128
SUBLANE = 16             # bf16 sublane packing


def _round_up(n, m):
    return ((n + m - 1) // m) * m


def _bcnet_kernel(x_ref,
                  w1, b1, w2, b2, w3, b3, w4, b4, w5, b5, w6, b6, w7, b7,
                  o_ref):
    """Full MLP forward for one batch tile. All operands are VMEM-resident."""

    def linear(h, w_ref, b_ref):
        # bf16 x bf16 matmul with f32 accumulation on the MXU, f32 bias add.
        y = jnp.dot(h, w_ref[...], preferred_element_type=jnp.float32)
        return y + b_ref[...]                      # b is (1, out), broadcasts

    h = x_ref[...]                                 # bf16 (cast in the wrapper)
    for w_ref, b_ref in ((w1, b1), (w2, b2), (w3, b3),
                         (w4, b4), (w5, b5), (w6, b6)):
        # Cast before the ReLU: same result (bf16 rounding is monotonic and
        # preserves 0), and the max runs on packed bf16 values (VPU-friendly
        # on v6e/v7x). 0.0 is weakly typed so the result stays bf16.
        h = jnp.maximum(linear(h, w_ref, b_ref).astype(jnp.bfloat16), 0.0)

    # Final layer: no ReLU. Output lanes are padded to 128 (sliced outside).
    o_ref[...] = linear(h, w7, b7).astype(o_ref.dtype)


def init_params(key, input_dim, output_dim=3, dtype=jnp.float32):
    """Deterministic synthetic parameters, PyTorch Linear shapes (out, in)."""
    dims = (input_dim,) + HIDDEN + (output_dim,)
    params = []
    for i in range(len(dims) - 1):
        fan_in, fan_out = dims[i], dims[i + 1]
        key, kw, kb = jax.random.split(key, 3)
        bound = 1.0 / (fan_in ** 0.5)              # PyTorch default init range
        w = jax.random.uniform(kw, (fan_out, fan_in), dtype, -bound, bound)
        b = jax.random.uniform(kb, (fan_out,), dtype, -bound, bound)
        params.append((w, b))
    return params


@jax.jit
def bcnet_forward(x, params):
    """x: (batch, input_dim) float32.  Returns (batch, output_dim) float32."""
    batch, input_dim = x.shape
    output_dim = params[-1][0].shape[0]

    # Lane-dense padded layer widths: 32-wide input and 64-wide hidden layer
    # are padded to 128 with zeros (padded activations are ReLU(0)=0 and the
    # corresponding next-layer weight rows are zero, so results are unchanged).
    pad_dims = tuple(_round_up(d, LANE)
                     for d in (input_dim,) + HIDDEN + (output_dim,))
    in_pad, out_pad = pad_dims[0], pad_dims[-1]

    # Batch tiling:
    #   batch <  256 : one grid step (block == full padded array).
    #   batch >= 256 : at least 2 grid steps so ("parallel",) can shard the
    #                  batch axis across v7x's 2 TensorCores; tile capped at
    #                  512 rows to amortize the ~0.35us per-step overhead.
    if batch >= MIN_SPLIT_BATCH:
        tile = min(MAX_BATCH_TILE, _round_up((batch + 1) // 2, SUBLANE))
    else:
        tile = _round_up(batch, SUBLANE)
    padded_b = _round_up(batch, tile)

    if padded_b != batch or in_pad != input_dim:
        x = jnp.pad(x, ((0, padded_b - batch), (0, in_pad - input_dim)))
    x = x.astype(jnp.bfloat16)

    # Pre-transpose weights to (in, out) bf16, zero-padded to the lane-dense
    # layer widths; biases to (1, out_padded) f32.
    flat_args = []
    for li, (w, b) in enumerate(params):
        fin, fout = pad_dims[li], pad_dims[li + 1]
        wt = jnp.transpose(w).astype(jnp.bfloat16)            # (in, out)
        wt = jnp.pad(wt, ((0, fin - wt.shape[0]), (0, fout - wt.shape[1])))
        bb = b.reshape(1, -1).astype(jnp.float32)              # (1, out)
        bb = jnp.pad(bb, ((0, 0), (0, fout - bb.shape[1])))
        flat_args.append(wt)
        flat_args.append(bb)

    grid = (padded_b // tile,)

    # x / out tile over batch; each weight/bias is one full VMEM-resident block
    # with a constant index_map (fetched once) and a single buffer (no point
    # double-buffering a block that never changes).
    resident = pl.Buffered(1)
    in_specs = [pl.BlockSpec((tile, in_pad), lambda i: (i, 0))]
    for a in flat_args:
        in_specs.append(
            pl.BlockSpec(a.shape, lambda i: (0, 0), pipeline_mode=resident))
    out_spec = pl.BlockSpec((tile, out_pad), lambda i: (i, 0))

    flops = 2 * padded_b * sum(pad_dims[i] * pad_dims[i + 1]
                               for i in range(len(pad_dims) - 1))
    bytes_accessed = (x.size * x.dtype.itemsize
                      + sum(a.size * a.dtype.itemsize for a in flat_args)
                      + padded_b * out_pad * 4)

    out = pl.pallas_call(
        _bcnet_kernel,
        out_shape=jax.ShapeDtypeStruct((padded_b, out_pad), jnp.float32),
        grid_spec=pltpu.PrefetchScalarGridSpec(
            num_scalar_prefetch=0,
            grid=grid,
            in_specs=in_specs,
            out_specs=out_spec,
        ),
        compiler_params=pltpu.CompilerParams(
            dimension_semantics=("parallel",),
            vmem_limit_bytes=16 * 1024 * 1024,   # actual use < ~10 MiB
        ),
        cost_estimate=pl.CostEstimate(
            flops=flops, transcendentals=0, bytes_accessed=bytes_accessed),
    )(x, *flat_args)

    return out[:batch, :output_dim]


def reference_forward_f32(x, params):
    """Pure-JAX f32 reference identical to the PyTorch forward."""
    h = x
    n = len(params)
    for i, (w, b) in enumerate(params):
        h = h @ w.T + b
        if i < n - 1:
            h = jnp.maximum(h, 0.0)
    return h


def reference_forward_bf16(x, params):
    """Reference matching the kernel's quantization (bf16 inputs, f32 accum)."""
    h = x.astype(jnp.bfloat16)
    n = len(params)
    for i, (w, b) in enumerate(params):
        y = jnp.dot(h, jnp.transpose(w).astype(jnp.bfloat16),
                    preferred_element_type=jnp.float32) + b
        if i < n - 1:
            h = jnp.maximum(y, 0.0).astype(jnp.bfloat16)
        else:
            h = y
    return h


def _check(batch, input_dim, output_dim, k_x, params):
    x = jax.random.normal(k_x, (batch, input_dim), dtype=jnp.float32)
    y = jax.block_until_ready(bcnet_forward(x, params))
    assert y.shape == (batch, output_dim), y.shape

    # Exact-quantization reference (bf16 matmul inputs, f32 accumulation).
    y_bf16 = reference_forward_bf16(x, params)
    assert jnp.allclose(y, y_bf16, atol=1e-3, rtol=1e-3), (
        float(jnp.max(jnp.abs(y - y_bf16))))

    # Sanity check against the pure-f32 PyTorch-equivalent forward.
    y_f32 = reference_forward_f32(x, params)
    assert jnp.allclose(y, y_f32, atol=5e-2, rtol=5e-2), (
        float(jnp.max(jnp.abs(y - y_f32))))


if __name__ == "__main__":
    key = jax.random.PRNGKey(0)
    k_x1, k_x2, k_p = jax.random.split(key, 3)

    input_dim, output_dim = 32, 3
    params = init_params(k_p, input_dim, output_dim)

    # Small batch (single grid step).
    _check(8, input_dim, output_dim, k_x1, params)
    # Mid-size batch (multi-step grid path: batch split + row/lane padding).
    _check(300, input_dim, output_dim, k_x2, params)

    print("KERNEL_OK")
</pallas_src>

<mosaic_0001>
module attributes {stable_mosaic.version = 11 : i64} {
  func.func @_bcnet_kernel(%arg0: i32, %arg1: memref<16x128xbf16, #tpu.memory_space<vmem>>, %arg2: memref<128x512xbf16, #tpu.memory_space<vmem>>, %arg3: memref<1x512xf32, #tpu.memory_space<vmem>>, %arg4: memref<512x1024xbf16, #tpu.memory_space<vmem>>, %arg5: memref<1x1024xf32, #tpu.memory_space<vmem>>, %arg6: memref<1024x512xbf16, #tpu.memory_space<vmem>>, %arg7: memref<1x512xf32, #tpu.memory_space<vmem>>, %arg8: memref<512x256xbf16, #tpu.memory_space<vmem>>, %arg9: memref<1x256xf32, #tpu.memory_space<vmem>>, %arg10: memref<256x128xbf16, #tpu.memory_space<vmem>>, %arg11: memref<1x128xf32, #tpu.memory_space<vmem>>, %arg12: memref<128x128xbf16, #tpu.memory_space<vmem>>, %arg13: memref<1x128xf32, #tpu.memory_space<vmem>>, %arg14: memref<128x128xbf16, #tpu.memory_space<vmem>>, %arg15: memref<1x128xf32, #tpu.memory_space<vmem>>, %arg16: memref<16x128xf32, #tpu.memory_space<vmem>>) attributes {dimension_semantics = [#tpu.dimension_semantics<parallel>], iteration_bounds = array<i64: 1>, scalar_prefetch = 0 : i64, scratch_operands = 0 : i64, tpu.core_type = #tpu.core_type<tc>, window_params = [{transform_indices = @transform_0, window_bounds = array<i64: 16, 128>}, {pipeline_mode = #tpu.pipeline_mode<synchronous>, transform_indices = @transform_1, window_bounds = array<i64: 128, 512>}, {pipeline_mode = #tpu.pipeline_mode<synchronous>, transform_indices = @transform_2, window_bounds = array<i64: 1, 512>}, {pipeline_mode = #tpu.pipeline_mode<synchronous>, transform_indices = @transform_3, window_bounds = array<i64: 512, 1024>}, {pipeline_mode = #tpu.pipeline_mode<synchronous>, transform_indices = @transform_4, window_bounds = array<i64: 1, 1024>}, {pipeline_mode = #tpu.pipeline_mode<synchronous>, transform_indices = @transform_5, window_bounds = array<i64: 1024, 512>}, {pipeline_mode = #tpu.pipeline_mode<synchronous>, transform_indices = @transform_6, window_bounds = array<i64: 1, 512>}, {pipeline_mode = #tpu.pipeline_mode<synchronous>, transform_indices = @transform_7, window_bounds = array<i64: 512, 256>}, {pipeline_mode = #tpu.pipeline_mode<synchronous>, transform_indices = @transform_8, window_bounds = array<i64: 1, 256>}, {pipeline_mode = #tpu.pipeline_mode<synchronous>, transform_indices = @transform_9, window_bounds = array<i64: 256, 128>}, {pipeline_mode = #tpu.pipeline_mode<synchronous>, transform_indices = @transform_10, window_bounds = array<i64: 1, 128>}, {pipeline_mode = #tpu.pipeline_mode<synchronous>, transform_indices = @transform_11, window_bounds = array<i64: 128, 128>}, {pipeline_mode = #tpu.pipeline_mode<synchronous>, transform_indices = @transform_12, window_bounds = array<i64: 1, 128>}, {pipeline_mode = #tpu.pipeline_mode<synchronous>, transform_indices = @transform_13, window_bounds = array<i64: 128, 128>}, {pipeline_mode = #tpu.pipeline_mode<synchronous>, transform_indices = @transform_14, window_bounds = array<i64: 1, 128>}, {transform_indices = @transform_15, window_bounds = array<i64: 16, 128>}]} {
    %c0 = arith.constant 0 : index
    %c0_0 = arith.constant 0 : index
    %0 = vector.load %arg1[%c0, %c0_0] : memref<16x128xbf16, #tpu.memory_space<vmem>>, vector<16x128xbf16>
    %c0_1 = arith.constant 0 : index
    %c0_2 = arith.constant 0 : index
    %1 = vector.load %arg2[%c0_1, %c0_2] : memref<128x512xbf16, #tpu.memory_space<vmem>>, vector<128x512xbf16>
    %cst = arith.constant dense<0.000000e+00> : vector<16x512xf32>
    %2 = tpu.matmul %0, %1, %cst {dimension_numbers = #tpu.dot_dimension_numbers<[1], [0], [0], [1], [0, 0, 1, 1], [], []>} : vector<16x128xbf16>, vector<128x512xbf16>, vector<16x512xf32> -> vector<16x512xf32>
    %c0_3 = arith.constant 0 : index
    %c0_4 = arith.constant 0 : index
    %3 = vector.load %arg3[%c0_3, %c0_4] : memref<1x512xf32, #tpu.memory_space<vmem>>, vector<1x512xf32>
    %4 = vector.broadcast %3 : vector<1x512xf32> to vector<16x512xf32>
    %5 = arith.addf %2, %4 : vector<16x512xf32>
    %6 = arith.truncf %5 : vector<16x512xf32> to vector<16x512xbf16>
    %cst_5 = arith.constant 0.000000e+00 : bf16
    %7 = vector.broadcast %cst_5 : bf16 to vector<16x512xbf16>
    %8 = arith.maximumf %6, %7 : vector<16x512xbf16>
    %c0_6 = arith.constant 0 : index
    %c0_7 = arith.constant 0 : index
    %9 = vector.load %arg4[%c0_6, %c0_7] : memref<512x1024xbf16, #tpu.memory_space<vmem>>, vector<512x1024xbf16>
    %cst_8 = arith.constant dense<0.000000e+00> : vector<16x1024xf32>
    %10 = tpu.matmul %8, %9, %cst_8 {dimension_numbers = #tpu.dot_dimension_numbers<[1], [0], [0], [1], [0, 0, 1, 1], [], []>} : vector<16x512xbf16>, vector<512x1024xbf16>, vector<16x1024xf32> -> vector<16x1024xf32>
    %c0_9 = arith.constant 0 : index
    %c0_10 = arith.constant 0 : index
    %11 = vector.load %arg5[%c0_9, %c0_10] : memref<1x1024xf32, #tpu.memory_space<vmem>>, vector<1x1024xf32>
    %12 = vector.broadcast %11 : vector<1x1024xf32> to vector<16x1024xf32>
    %13 = arith.addf %10, %12 : vector<16x1024xf32>
    %14 = arith.truncf %13 : vector<16x1024xf32> to vector<16x1024xbf16>
    %cst_11 = arith.constant 0.000000e+00 : bf16
    %15 = vector.broadcast %cst_11 : bf16 to vector<16x1024xbf16>
    %16 = arith.maximumf %14, %15 : vector<16x1024xbf16>
    %c0_12 = arith.constant 0 : index
    %c0_13 = arith.constant 0 : index
    %17 = vector.load %arg6[%c0_12, %c0_13] : memref<1024x512xbf16, #tpu.memory_space<vmem>>, vector<1024x512xbf16>
    %cst_14 = arith.constant dense<0.000000e+00> : vector<16x512xf32>
    %18 = tpu.matmul %16, %17, %cst_14 {dimension_numbers = #tpu.dot_dimension_numbers<[1], [0], [0], [1], [0, 0, 1, 1], [], []>} : vector<16x1024xbf16>, vector<1024x512xbf16>, vector<16x512xf32> -> vector<16x512xf32>
    %c0_15 = arith.constant 0 : index
    %c0_16 = arith.constant 0 : index
    %19 = vector.load %arg7[%c0_15, %c0_16] : memref<1x512xf32, #tpu.memory_space<vmem>>, vector<1x512xf32>
    %20 = vector.broadcast %19 : vector<1x512xf32> to vector<16x512xf32>
    %21 = arith.addf %18, %20 : vector<16x512xf32>
    %22 = arith.truncf %21 : vector<16x512xf32> to vector<16x512xbf16>
    %cst_17 = arith.constant 0.000000e+00 : bf16
    %23 = vector.broadcast %cst_17 : bf16 to vector<16x512xbf16>
    %24 = arith.maximumf %22, %23 : vector<16x512xbf16>
    %c0_18 = arith.constant 0 : index
    %c0_19 = arith.constant 0 : index
    %25 = vector.load %arg8[%c0_18, %c0_19] : memref<512x256xbf16, #tpu.memory_space<vmem>>, vector<512x256xbf16>
    %cst_20 = arith.constant dense<0.000000e+00> : vector<16x256xf32>
    %26 = tpu.matmul %24, %25, %cst_20 {dimension_numbers = #tpu.dot_dimension_numbers<[1], [0], [0], [1], [0, 0, 1, 1], [], []>} : vector<16x512xbf16>, vector<512x256xbf16>, vector<16x256xf32> -> vector<16x256xf32>
    %c0_21 = arith.constant 0 : index
    %c0_22 = arith.constant 0 : index
    %27 = vector.load %arg9[%c0_21, %c0_22] : memref<1x256xf32, #tpu.memory_space<vmem>>, vector<1x256xf32>
    %28 = vector.broadcast %27 : vector<1x256xf32> to vector<16x256xf32>
    %29 = arith.addf %26, %28 : vector<16x256xf32>
    %30 = arith.truncf %29 : vector<16x256xf32> to vector<16x256xbf16>
    %cst_23 = arith.constant 0.000000e+00 : bf16
    %31 = vector.broadcast %cst_23 : bf16 to vector<16x256xbf16>
    %32 = arith.maximumf %30, %31 : vector<16x256xbf16>
    %c0_24 = arith.constant 0 : index
    %c0_25 = arith.constant 0 : index
    %33 = vector.load %arg10[%c0_24, %c0_25] : memref<256x128xbf16, #tpu.memory_space<vmem>>, vector<256x128xbf16>
    %cst_26 = arith.constant dense<0.000000e+00> : vector<16x128xf32>
    %34 = tpu.matmul %32, %33, %cst_26 {dimension_numbers = #tpu.dot_dimension_numbers<[1], [0], [0], [1], [0, 0, 1, 1], [], []>} : vector<16x256xbf16>, vector<256x128xbf16>, vector<16x128xf32> -> vector<16x128xf32>
    %c0_27 = arith.constant 0 : index
    %c0_28 = arith.constant 0 : index
    %35 = vector.load %arg11[%c0_27, %c0_28] : memref<1x128xf32, #tpu.memory_space<vmem>>, vector<1x128xf32>
    %36 = vector.broadcast %35 : vector<1x128xf32> to vector<16x128xf32>
    %37 = arith.addf %34, %36 : vector<16x128xf32>
    %38 = arith.truncf %37 : vector<16x128xf32> to vector<16x128xbf16>
    %cst_29 = arith.constant 0.000000e+00 : bf16
    %39 = vector.broadcast %cst_29 : bf16 to vector<16x128xbf16>
    %40 = arith.maximumf %38, %39 : vector<16x128xbf16>
    %c0_30 = arith.constant 0 : index
    %c0_31 = arith.constant 0 : index
    %41 = vector.load %arg12[%c0_30, %c0_31] : memref<128x128xbf16, #tpu.memory_space<vmem>>, vector<128x128xbf16>
    %cst_32 = arith.constant dense<0.000000e+00> : vector<16x128xf32>
    %42 = tpu.matmul %40, %41, %cst_32 {dimension_numbers = #tpu.dot_dimension_numbers<[1], [0], [0], [1], [0, 0, 1, 1], [], []>} : vector<16x128xbf16>, vector<128x128xbf16>, vector<16x128xf32> -> vector<16x128xf32>
    %c0_33 = arith.constant 0 : index
    %c0_34 = arith.constant 0 : index
    %43 = vector.load %arg13[%c0_33, %c0_34] : memref<1x128xf32, #tpu.memory_space<vmem>>, vector<1x128xf32>
    %44 = vector.broadcast %43 : vector<1x128xf32> to vector<16x128xf32>
    %45 = arith.addf %42, %44 : vector<16x128xf32>
    %46 = arith.truncf %45 : vector<16x128xf32> to vector<16x128xbf16>
    %cst_35 = arith.constant 0.000000e+00 : bf16
    %47 = vector.broadcast %cst_35 : bf16 to vector<16x128xbf16>
    %48 = arith.maximumf %46, %47 : vector<16x128xbf16>
    %c0_36 = arith.constant 0 : index
    %c0_37 = arith.constant 0 : index
    %49 = vector.load %arg14[%c0_36, %c0_37] : memref<128x128xbf16, #tpu.memory_space<vmem>>, vector<128x128xbf16>
    %cst_38 = arith.constant dense<0.000000e+00> : vector<16x128xf32>
    %50 = tpu.matmul %48, %49, %cst_38 {dimension_numbers = #tpu.dot_dimension_numbers<[1], [0], [0], [1], [0, 0, 1, 1], [], []>} : vector<16x128xbf16>, vector<128x128xbf16>, vector<16x128xf32> -> vector<16x128xf32>
    %c0_39 = arith.constant 0 : index
    %c0_40 = arith.constant 0 : index
    %51 = vector.load %arg15[%c0_39, %c0_40] : memref<1x128xf32, #tpu.memory_space<vmem>>, vector<1x128xf32>
    %52 = vector.broadcast %51 : vector<1x128xf32> to vector<16x128xf32>
    %53 = arith.addf %50, %52 : vector<16x128xf32>
    %c0_41 = arith.constant 0 : index
    %c0_42 = arith.constant 0 : index
    %54 = vector.load %arg16[%c0_41, %c0_42] : memref<16x128xf32, #tpu.memory_space<vmem>>, vector<16x128xf32>
    tpu.vector_store %arg16[%c0_41, %c0_42], %53 {strides = array<i32>} : memref<16x128xf32, #tpu.memory_space<vmem>>, vector<16x128xf32>,
    return
  }
  func.func @transform_0(%arg0: i32) -> (i32, i32) {
    %c0_i32 = arith.constant 0 : i32
    %c0_i32_0 = arith.constant 0 : i32
    return %arg0, %c0_i32 : i32, i32
  }
  func.func @transform_1(%arg0: i32) -> (i32, i32) {
    %c0_i32 = arith.constant 0 : i32
    %c0_i32_0 = arith.constant 0 : i32
    %c0_i32_1 = arith.constant 0 : i32
    return %c0_i32, %c0_i32_0 : i32, i32
  }
  func.func @transform_2(%arg0: i32) -> (i32, i32) {
    %c0_i32 = arith.constant 0 : i32
    %c0_i32_0 = arith.constant 0 : i32
    %c0_i32_1 = arith.constant 0 : i32
    return %c0_i32, %c0_i32_0 : i32, i32
  }
  func.func @transform_3(%arg0: i32) -> (i32, i32) {
    %c0_i32 = arith.constant 0 : i32
    %c0_i32_0 = arith.constant 0 : i32
    %c0_i32_1 = arith.constant 0 : i32
    return %c0_i32, %c0_i32_0 : i32, i32
  }
  func.func @transform_4(%arg0: i32) -> (i32, i32) {
    %c0_i32 = arith.constant 0 : i32
    %c0_i32_0 = arith.constant 0 : i32
    %c0_i32_1 = arith.constant 0 : i32
    return %c0_i32, %c0_i32_0 : i32, i32
  }
  func.func @transform_5(%arg0: i32) -> (i32, i32) {
    %c0_i32 = arith.constant 0 : i32
    %c0_i32_0 = arith.constant 0 : i32
    %c0_i32_1 = arith.constant 0 : i32
    return %c0_i32, %c0_i32_0 : i32, i32
  }
  func.func @transform_6(%arg0: i32) -> (i32, i32) {
    %c0_i32 = arith.constant 0 : i32
    %c0_i32_0 = arith.constant 0 : i32
    %c0_i32_1 = arith.constant 0 : i32
    return %c0_i32, %c0_i32_0 : i32, i32
  }
  func.func @transform_7(%arg0: i32) -> (i32, i32) {
    %c0_i32 = arith.constant 0 : i32
    %c0_i32_0 = arith.constant 0 : i32
    %c0_i32_1 = arith.constant 0 : i32
    return %c0_i32, %c0_i32_0 : i32, i32
  }
  func.func @transform_8(%arg0: i32) -> (i32, i32) {
    %c0_i32 = arith.constant 0 : i32
    %c0_i32_0 = arith.constant 0 : i32
    %c0_i32_1 = arith.constant 0 : i32
    return %c0_i32, %c0_i32_0 : i32, i32
  }
  func.func @transform_9(%arg0: i32) -> (i32, i32) {
    %c0_i32 = arith.constant 0 : i32
    %c0_i32_0 = arith.constant 0 : i32
    %c0_i32_1 = arith.constant 0 : i32
    return %c0_i32, %c0_i32_0 : i32, i32
  }
  func.func @transform_10(%arg0: i32) -> (i32, i32) {
    %c0_i32 = arith.constant 0 : i32
    %c0_i32_0 = arith.constant 0 : i32
    %c0_i32_1 = arith.constant 0 : i32
    return %c0_i32, %c0_i32_0 : i32, i32
  }
  func.func @transform_11(%arg0: i32) -> (i32, i32) {
    %c0_i32 = arith.constant 0 : i32
    %c0_i32_0 = arith.constant 0 : i32
    %c0_i32_1 = arith.constant 0 : i32
    return %c0_i32, %c0_i32_0 : i32, i32
  }
  func.func @transform_12(%arg0: i32) -> (i32, i32) {
    %c0_i32 = arith.constant 0 : i32
    %c0_i32_0 = arith.constant 0 : i32
    %c0_i32_1 = arith.constant 0 : i32
    return %c0_i32, %c0_i32_0 : i32, i32
  }
  func.func @transform_13(%arg0: i32) -> (i32, i32) {
    %c0_i32 = arith.constant 0 : i32
    %c0_i32_0 = arith.constant 0 : i32
    %c0_i32_1 = arith.constant 0 : i32
    return %c0_i32, %c0_i32_0 : i32, i32
  }
  func.func @transform_14(%arg0: i32) -> (i32, i32) {
    %c0_i32 = arith.constant 0 : i32
    %c0_i32_0 = arith.constant 0 : i32
    %c0_i32_1 = arith.constant 0 : i32
    return %c0_i32, %c0_i32_0 : i32, i32
  }
  func.func @transform_15(%arg0: i32) -> (i32, i32) {
    %c0_i32 = arith.constant 0 : i32
    %c0_i32_0 = arith.constant 0 : i32
    return %arg0, %c0_i32 : i32, i32
  }
}

</mosaic_0001>

<llo_original>
// kernel: bcnet_forward.1
$region0: #{bcnet_forward.1}
  #allocation0 [shape = 'u32[]', space=smem, size = 0x4, offset = 0x4, fixed_abs, tag = 'smem constant byte address 0x4 - core index']
  #allocation1 [shape = 'u32[72,128]{1,0:T(1,128)}', space=vmem, size = 0x9000, scoped, tag = 'internal scratch']
  %s0 = inlined_call_operand.vmem [shape: bf16[16,128], index: 0, kind: input, shape index: {}]
  %s1 = inlined_call_operand.vmem [shape: bf16[128,512], index: 1, kind: input, shape index: {}]
  %s2 = inlined_call_operand.vmem [shape: f32[1,512], index: 2, kind: input, shape index: {}]
  %s3 = inlined_call_operand.vmem [shape: bf16[512,1024], index: 3, kind: input, shape index: {}]
  %s4 = inlined_call_operand.vmem [shape: f32[1,1024], index: 4, kind: input, shape index: {}]
  %s5 = inlined_call_operand.vmem [shape: bf16[1024,512], index: 5, kind: input, shape index: {}]
  %s6 = inlined_call_operand.vmem [shape: f32[1,512], index: 6, kind: input, shape index: {}]
  %s7 = inlined_call_operand.vmem [shape: bf16[512,256], index: 7, kind: input, shape index: {}]
  %s8 = inlined_call_operand.vmem [shape: f32[1,256], index: 8, kind: input, shape index: {}]
  %s9 = inlined_call_operand.vmem [shape: bf16[256,128], index: 9, kind: input, shape index: {}]
  %s10 = inlined_call_operand.vmem [shape: f32[1,128], index: 10, kind: input, shape index: {}]
  %s11 = inlined_call_operand.vmem [shape: bf16[128,128], index: 11, kind: input, shape index: {}]
  %s12 = inlined_call_operand.vmem [shape: f32[1,128], index: 12, kind: input, shape index: {}]
  %s13 = inlined_call_operand.vmem [shape: bf16[128,128], index: 13, kind: input, shape index: {}]
  %s14 = inlined_call_operand.vmem [shape: f32[1,128], index: 14, kind: input, shape index: {}]
  %s15 = inlined_call_operand.vmem [shape: f32[16,128], index: 15, kind: output, shape index: {}]
  %s16 = sld [smem:[#allocation0]]
  $region70: #{bcnet_forward.1} parent=0
    _
  %s18 = ssub.s32 1, %s16
  %s19 = scalar_select 0, %s18, %s16
  // Predicated region
  $region2: #{bcnet_forward.1} parent=0 // pred_check
    _
  $region3: #{bcnet_forward.1} parent=0 // pred_check_branch
    %21 = sbr.rel (0) target = $region5
  $region4: #{bcnet_forward.1} parent=0 // pred_region
    _
  $region5: #{bcnet_forward.1} parent=0 // pred_fallthru
    _
  // Predicated region
  $region6: #{bcnet_forward.1} parent=0 // pred_check
    _
  $region7: #{bcnet_forward.1} parent=0 // pred_check_branch
    %23 = sbr.rel (0) target = $region9
  $region8: #{bcnet_forward.1} parent=0 // pred_region
    _
  $region9: #{bcnet_forward.1} parent=0 // pred_fallthru
    _
  // Predicated region
  $region10: #{bcnet_forward.1} parent=0 // pred_check
    _
  $region11: #{bcnet_forward.1} parent=0 // pred_check_branch
    %25 = sbr.rel (0) target = $region13
  $region12: #{bcnet_forward.1} parent=0 // pred_region
    _
  $region13: #{bcnet_forward.1} parent=0 // pred_fallthru
    _
  // Predicated region
  $region14: #{bcnet_forward.1} parent=0 // pred_check
    _
  $region15: #{bcnet_forward.1} parent=0 // pred_check_branch
    %27 = sbr.rel (0) target = $region17
  $region16: #{bcnet_forward.1} parent=0 // pred_region
    _
  $region17: #{bcnet_forward.1} parent=0 // pred_fallthru
    _
  // Predicated region
  $region18: #{bcnet_forward.1} parent=0 // pred_check
    _
  $region19: #{bcnet_forward.1} parent=0 // pred_check_branch
    %29 = sbr.rel (0) target = $region21
  $region20: #{bcnet_forward.1} parent=0 // pred_region
    _
  $region21: #{bcnet_forward.1} parent=0 // pred_fallthru
    _
  // Predicated region
  $region22: #{bcnet_forward.1} parent=0 // pred_check
    _
  $region23: #{bcnet_forward.1} parent=0 // pred_check_branch
    %31 = sbr.rel (0) target = $region25
  $region24: #{bcnet_forward.1} parent=0 // pred_region
    _
  $region25: #{bcnet_forward.1} parent=0 // pred_fallthru
    _
  // Predicated region
  $region26: #{bcnet_forward.1} parent=0 // pred_check
    _
  $region27: #{bcnet_forward.1} parent=0 // pred_check_branch
    %33 = sbr.rel (0) target = $region29
  $region28: #{bcnet_forward.1} parent=0 // pred_region
    _
  $region29: #{bcnet_forward.1} parent=0 // pred_fallthru
    _
  // Predicated region
  $region30: #{bcnet_forward.1} parent=0 // pred_check
    _
  $region31: #{bcnet_forward.1} parent=0 // pred_check_branch
    %35 = sbr.rel (0) target = $region33
  $region32: #{bcnet_forward.1} parent=0 // pred_region
    _
  $region33: #{bcnet_forward.1} parent=0 // pred_fallthru
    _
  // Predicated region
  $region34: #{bcnet_forward.1} parent=0 // pred_check
    _
  $region35: #{bcnet_forward.1} parent=0 // pred_check_branch
    %37 = sbr.rel (0) target = $region37
  $region36: #{bcnet_forward.1} parent=0 // pred_region
    _
  $region37: #{bcnet_forward.1} parent=0 // pred_fallthru
    _
  // Predicated region
  $region38: #{bcnet_forward.1} parent=0 // pred_check
    _
  $region39: #{bcnet_forward.1} parent=0 // pred_check_branch
    %39 = sbr.rel (0) target = $region41
  $region40: #{bcnet_forward.1} parent=0 // pred_region
    _
  $region41: #{bcnet_forward.1} parent=0 // pred_fallthru
    _
  // Predicated region
  $region42: #{bcnet_forward.1} parent=0 // pred_check
    _
  $region43: #{bcnet_forward.1} parent=0 // pred_check_branch
    %41 = sbr.rel (0) target = $region45
  $region44: #{bcnet_forward.1} parent=0 // pred_region
    _
  $region45: #{bcnet_forward.1} parent=0 // pred_fallthru
    _
  // Predicated region
  $region46: #{bcnet_forward.1} parent=0 // pred_check
    _
  $region47: #{bcnet_forward.1} parent=0 // pred_check_branch
    %43 = sbr.rel (0) target = $region49
  $region48: #{bcnet_forward.1} parent=0 // pred_region
    _
  $region49: #{bcnet_forward.1} parent=0 // pred_fallthru
    _
  // Predicated region
  $region50: #{bcnet_forward.1} parent=0 // pred_check
    _
  $region51: #{bcnet_forward.1} parent=0 // pred_check_branch
    %45 = sbr.rel (0) target = $region53
  $region52: #{bcnet_forward.1} parent=0 // pred_region
    _
  $region53: #{bcnet_forward.1} parent=0 // pred_fallthru
    _
  // Predicated region
  $region54: #{bcnet_forward.1} parent=0 // pred_check
    _
  $region55: #{bcnet_forward.1} parent=0 // pred_check_branch
    %47 = sbr.rel (0) target = $region57
  $region56: #{bcnet_forward.1} parent=0 // pred_region
    _
  $region57: #{bcnet_forward.1} parent=0 // pred_fallthru
    _
  // Predicated region
  $region58: #{bcnet_forward.1} parent=0 // pred_check
    _
  $region59: #{bcnet_forward.1} parent=0 // pred_check_branch
    %49 = sbr.rel (0) target = $region61
  $region60: #{bcnet_forward.1} parent=0 // pred_region
    _
  $region61: #{bcnet_forward.1} parent=0 // pred_fallthru
    _
  %v50 = vld [vmem:[%s0] sm:$0xf]
  %v51 = vld [vmem:[%s0 + $0x4] sm:$0xf]
  %v52 = vld [vmem:[%s1] sm:$0xff]
  %v53 = vld [vmem:[%s1 + $0x8] sm:$0xff]
  %v54 = vld [vmem:[%s1 + $0x10] sm:$0xff]
  %v55 = vld [vmem:[%s1 + $0x18] sm:$0xff]
  %v56 = vld [vmem:[%s1 + $0x20] sm:$0xff]
  %v57 = vld [vmem:[%s1 + $0x28] sm:$0xff]
  %v58 = vld [vmem:[%s1 + $0x30] sm:$0xff]
  %v59 = vld [vmem:[%s1 + $0x38] sm:$0xff]
  %v60 = vld [vmem:[%s1 + $0x40] sm:$0xff]
  %v61 = vld [vmem:[%s1 + $0x48] sm:$0xff]
  %v62 = vld [vmem:[%s1 + $0x50] sm:$0xff]
  %v63 = vld [vmem:[%s1 + $0x58] sm:$0xff]
  %v64 = vld [vmem:[%s1 + $0x60] sm:$0xff]
  %v65 = vld [vmem:[%s1 + $0x68] sm:$0xff]
  %v66 = vld [vmem:[%s1 + $0x70] sm:$0xff]
  %v67 = vld [vmem:[%s1 + $0x78] sm:$0xff]
  %v68 = vld [vmem:[%s1 + $0x80] sm:$0xff]
  %v69 = vld [vmem:[%s1 + $0x88] sm:$0xff]
  %v70 = vld [vmem:[%s1 + $0x90] sm:$0xff]
  %v71 = vld [vmem:[%s1 + $0x98] sm:$0xff]
  %v72 = vld [vmem:[%s1 + $0xa0] sm:$0xff]
  %v73 = vld [vmem:[%s1 + $0xa8] sm:$0xff]
  %v74 = vld [vmem:[%s1 + $0xb0] sm:$0xff]
  %v75 = vld [vmem:[%s1 + $0xb8] sm:$0xff]
  %v76 = vld [vmem:[%s1 + $0xc0] sm:$0xff]
  %v77 = vld [vmem:[%s1 + $0xc8] sm:$0xff]
  %v78 = vld [vmem:[%s1 + $0xd0] sm:$0xff]
  %v79 = vld [vmem:[%s1 + $0xd8] sm:$0xff]
  %v80 = vld [vmem:[%s1 + $0xe0] sm:$0xff]
  %v81 = vld [vmem:[%s1 + $0xe8] sm:$0xff]
  %v82 = vld [vmem:[%s1 + $0xf0] sm:$0xff]
  %v83 = vld [vmem:[%s1 + $0xf8] sm:$0xff]
  %v84 = vld [vmem:[%s2] sm:$0xf]
  %v86 = vperm.slane %v84, 0
  %v87 = vperm.slane %v84, 1
  %v88 = vperm.slane %v84, 2
  %v89 = vperm.slane %v84, 3
  %v96 = vunpack.c.l.b16 %v50
  %v97 = vunpack.c.l.b16 %v51
  %v98 = vpack.c.b16 %v97, %v96
  %v132 = vunpack.c.l.b16 %v52
  %v133 = vunpack.c.h.b16 %v52
  %v134 = vunpack.c.l.b16 %v53
  %v135 = vunpack.c.h.b16 %v53
  %v136 = vunpack.c.l.b16 %v54
  %v137 = vunpack.c.h.b16 %v54
  %v138 = vunpack.c.l.b16 %v55
  %v139 = vunpack.c.h.b16 %v55
  %v140 = vunpack.c.l.b16 %v56
  %v141 = vunpack.c.h.b16 %v56
  %v142 = vunpack.c.l.b16 %v57
  %v143 = vunpack.c.h.b16 %v57
  %v144 = vunpack.c.l.b16 %v58
  %v145 = vunpack.c.h.b16 %v58
  %v146 = vunpack.c.l.b16 %v59
  %v147 = vunpack.c.h.b16 %v59
  %v148 = vunpack.c.l.b16 %v60
  %v149 = vunpack.c.h.b16 %v60
  %v150 = vunpack.c.l.b16 %v61
  %v151 = vunpack.c.h.b16 %v61
  %v152 = vunpack.c.l.b16 %v62
  %v153 = vunpack.c.h.b16 %v62
  %v154 = vunpack.c.l.b16 %v63
  %v155 = vunpack.c.h.b16 %v63
  %v156 = vunpack.c.l.b16 %v64
  %v157 = vunpack.c.h.b16 %v64
  %v158 = vunpack.c.l.b16 %v65
  %v159 = vunpack.c.h.b16 %v65
  %v160 = vunpack.c.l.b16 %v66
  %v161 = vunpack.c.h.b16 %v66
  %v162 = vunpack.c.l.b16 %v67
  %v163 = vunpack.c.h.b16 %v67
  %v164 = vunpack.c.l.b16 %v68
  %v165 = vunpack.c.h.b16 %v68
  %v166 = vunpack.c.l.b16 %v69
  %v167 = vunpack.c.h.b16 %v69
  %v168 = vunpack.c.l.b16 %v70
  %v169 = vunpack.c.h.b16 %v70
  %v170 = vunpack.c.l.b16 %v71
  %v171 = vunpack.c.h.b16 %v71
  %v172 = vunpack.c.l.b16 %v72
  %v173 = vunpack.c.h.b16 %v72
  %v174 = vunpack.c.l.b16 %v73
  %v175 = vunpack.c.h.b16 %v73
  %v176 = vunpack.c.l.b16 %v74
  %v177 = vunpack.c.h.b16 %v74
  %v178 = vunpack.c.l.b16 %v75
  %v179 = vunpack.c.h.b16 %v75
  %v180 = vunpack.c.l.b16 %v76
  %v181 = vunpack.c.h.b16 %v76
  %v182 = vunpack.c.l.b16 %v77
  %v183 = vunpack.c.h.b16 %v77
  %v184 = vunpack.c.l.b16 %v78
  %v185 = vunpack.c.h.b16 %v78
  %v186 = vunpack.c.l.b16 %v79
  %v187 = vunpack.c.h.b16 %v79
  %v188 = vunpack.c.l.b16 %v80
  %v189 = vunpack.c.h.b16 %v80
  %v190 = vunpack.c.l.b16 %v81
  %v191 = vunpack.c.h.b16 %v81
  %v192 = vunpack.c.l.b16 %v82
  %v193 = vunpack.c.h.b16 %v82
  %v194 = vunpack.c.l.b16 %v83
  %v195 = vunpack.c.h.b16 %v83
  %v196 = vpack.c.b16 %v136, %v132
  %v197 = vpack.c.b16 %v137, %v133
  %v198 = vpack.c.b16 %v138, %v134
  %v199 = vpack.c.b16 %v139, %v135
  %v200 = vpack.c.b16 %v144, %v140
  %v201 = vpack.c.b16 %v145, %v141
  %v202 = vpack.c.b16 %v146, %v142
  %v203 = vpack.c.b16 %v147, %v143
  %v204 = vpack.c.b16 %v152, %v148
  %v205 = vpack.c.b16 %v153, %v149
  %v206 = vpack.c.b16 %v154, %v150
  %v207 = vpack.c.b16 %v155, %v151
  %v208 = vpack.c.b16 %v160, %v156
  %v209 = vpack.c.b16 %v161, %v157
  %v210 = vpack.c.b16 %v162, %v158
  %v211 = vpack.c.b16 %v163, %v159
  %v212 = vpack.c.b16 %v168, %v164
  %v213 = vpack.c.b16 %v169, %v165
  %v214 = vpack.c.b16 %v170, %v166
  %v215 = vpack.c.b16 %v171, %v167
  %v216 = vpack.c.b16 %v176, %v172
  %v217 = vpack.c.b16 %v177, %v173
  %v218 = vpack.c.b16 %v178, %v174
  %v219 = vpack.c.b16 %v179, %v175
  %v220 = vpack.c.b16 %v184, %v180
  %v221 = vpack.c.b16 %v185, %v181
  %v222 = vpack.c.b16 %v186, %v182
  %v223 = vpack.c.b16 %v187, %v183
  %v224 = vpack.c.b16 %v192, %v188
  %v225 = vpack.c.b16 %v193, %v189
  %v226 = vpack.c.b16 %v194, %v190
  %v227 = vpack.c.b16 %v195, %v191
  %260 = vmatpush.bf16.msra.mxu0 %v224
  %261 = vmatpush.bf16.msra.mxu0 %v220
  %262 = vmatpush.bf16.msra.mxu0 %v216
  %263 = vmatpush.bf16.msra.mxu0 %v212
  %264 = vmatpush.bf16.msra.mxu0 %v208
  %265 = vmatpush.bf16.msra.mxu0 %v204
  %266 = vmatpush.bf16.msra.mxu0 %v200
  %267 = vmatpush.bf16.msra.mxu0 %v196
  %268 = vmatmul.bf16.gmra.mxu0 %v98
  %v269 = vpop.f32.mrf.mxu0
  %v270 = vadd.f32 %v86, %v269
  %v271 = vpop.f32.mrf.mxu0
  %v272 = vadd.f32 %v86, %v271
  %273 = vdwg.mxu0
  %274 = vmatpush.bf16.msra.mxu0 %v225
  %275 = vmatpush.bf16.msra.mxu0 %v221
  %276 = vmatpush.bf16.msra.mxu0 %v217
  %277 = vmatpush.bf16.msra.mxu0 %v213
  %278 = vmatpush.bf16.msra.mxu0 %v209
  %279 = vmatpush.bf16.msra.mxu0 %v205
  %280 = vmatpush.bf16.msra.mxu0 %v201
  %281 = vmatpush.bf16.msra.mxu0 %v197
  %282 = vmatmul.bf16.gmra.mxu0 %v98
  %v283 = vpop.f32.mrf.mxu0
  %v284 = vadd.f32 %v87, %v283
  %v285 = vpop.f32.mrf.mxu0
  %v286 = vadd.f32 %v87, %v285
  %287 = vdwg.mxu0
  %288 = vmatpush.bf16.msra.mxu0 %v226
  %289 = vmatpush.bf16.msra.mxu0 %v222
  %290 = vmatpush.bf16.msra.mxu0 %v218
  %291 = vmatpush.bf16.msra.mxu0 %v214
  %292 = vmatpush.bf16.msra.mxu0 %v210
  %293 = vmatpush.bf16.msra.mxu0 %v206
  %294 = vmatpush.bf16.msra.mxu0 %v202
  %295 = vmatpush.bf16.msra.mxu0 %v198
  %296 = vmatmul.bf16.gmra.mxu0 %v98
  %v297 = vpop.f32.mrf.mxu0
  %v298 = vadd.f32 %v88, %v297
  %v299 = vpop.f32.mrf.mxu0
  %v300 = vadd.f32 %v88, %v299
  %301 = vdwg.mxu0
  %302 = vmatpush.bf16.msra.mxu0 %v227
  %303 = vmatpush.bf16.msra.mxu0 %v223
  %304 = vmatpush.bf16.msra.mxu0 %v219
  %305 = vmatpush.bf16.msra.mxu0 %v215
  %306 = vmatpush.bf16.msra.mxu0 %v211
  %307 = vmatpush.bf16.msra.mxu0 %v207
  %308 = vmatpush.bf16.msra.mxu0 %v203
  %309 = vmatpush.bf16.msra.mxu0 %v199
  %310 = vmatmul.bf16.gmra.mxu0 %v98
  %v311 = vpop.f32.mrf.mxu0
  %v312 = vadd.f32 %v89, %v311
  %v313 = vpop.f32.mrf.mxu0
  %v314 = vadd.f32 %v89, %v313
  %315 = vdwg.mxu0
  %v316 = vpack.c.bf16 %v284, %v270
  %v317 = vpack.c.bf16 %v312, %v298
  %v318 = vpack.c.bf16 %v286, %v272
  %v319 = vpack.c.bf16 %v314, %v300
  %v320 = vunpack.c.l.bf16 %v316
  %v321 = vunpack.c.h.bf16 %v316
  %v322 = vunpack.c.l.bf16 %v317
  %v323 = vunpack.c.h.bf16 %v317
  %v324 = vunpack.c.l.bf16 %v318
  %v325 = vunpack.c.h.bf16 %v318
  %v326 = vunpack.c.l.bf16 %v319
  %v327 = vunpack.c.h.bf16 %v319
  %v328 = vmax.f32 %v320, 0.0
  %v329 = vmax.f32 %v321, 0.0
  %v330 = vmax.f32 %v322, 0.0
  %v331 = vmax.f32 %v323, 0.0
  %v332 = vmax.f32 %v324, 0.0
  %v333 = vmax.f32 %v325, 0.0
  %v334 = vmax.f32 %v326, 0.0
  %v335 = vmax.f32 %v327, 0.0
  %v336 = vpack.c.bf16 %v332, %v328
  %v337 = vpack.c.bf16 %v333, %v329
  %v338 = vpack.c.bf16 %v334, %v330
  %v339 = vpack.c.bf16 %v335, %v331
  %v340 = vld [vmem:[%s3] sm:$0xff]
  %v341 = vld [vmem:[%s3 + $0x8] sm:$0xff]
  %v342 = vld [vmem:[%s3 + $0x10] sm:$0xff]
  %v343 = vld [vmem:[%s3 + $0x18] sm:$0xff]
  %v344 = vld [vmem:[%s3 + $0x20] sm:$0xff]
  %v345 = vld [vmem:[%s3 + $0x28] sm:$0xff]
  %v346 = vld [vmem:[%s3 + $0x30] sm:$0xff]
  %v347 = vld [vmem:[%s3 + $0x38] sm:$0xff]
  %v348 = vld [vmem:[%s3 + $0x40] sm:$0xff]
  %v349 = vld [vmem:[%s3 + $0x48] sm:$0xff]
  %v350 = vld [vmem:[%s3 + $0x50] sm:$0xff]
  %v351 = vld [vmem:[%s3 + $0x58] sm:$0xff]
  %v352 = vld [vmem:[%s3 + $0x60] sm:$0xff]
  %v353 = vld [vmem:[%s3 + $0x68] sm:$0xff]
  %v354 = vld [vmem:[%s3 + $0x70] sm:$0xff]
  %v355 = vld [vmem:[%s3 + $0x78] sm:$0xff]
  %v356 = vld [vmem:[%s3 + $0x80] sm:$0xff]
  %v357 = vld [vmem:[%s3 + $0x88] sm:$0xff]
  %v358 = vld [vmem:[%s3 + $0x90] sm:$0xff]
  %v359 = vld [vmem:[%s3 + $0x98] sm:$0xff]
  %v360 = vld [vmem:[%s3 + $0xa0] sm:$0xff]
  %v361 = vld [vmem:[%s3 + $0xa8] sm:$0xff]
  %v362 = vld [vmem:[%s3 + $0xb0] sm:$0xff]
  %v363 = vld [vmem:[%s3 + $0xb8] sm:$0xff]
  %v364 = vld [vmem:[%s3 + $0xc0] sm:$0xff]
  %v365 = vld [vmem:[%s3 + $0xc8] sm:$0xff]
  %v366 = vld [vmem:[%s3 + $0xd0] sm:$0xff]
  %v367 = vld [vmem:[%s3 + $0xd8] sm:$0xff]
  %v368 = vld [vmem:[%s3 + $0xe0] sm:$0xff]
  %v369 = vld [vmem:[%s3 + $0xe8] sm:$0xff]
  %v370 = vld [vmem:[%s3 + $0xf0] sm:$0xff]
  %v371 = vld [vmem:[%s3 + $0xf8] sm:$0xff]
  %v372 = vld [vmem:[%s3 + $0x100] sm:$0xff]
  %v373 = vld [vmem:[%s3 + $0x108] sm:$0xff]
  %v374 = vld [vmem:[%s3 + $0x110] sm:$0xff]
  %v375 = vld [vmem:[%s3 + $0x118] sm:$0xff]
  %v376 = vld [vmem:[%s3 + $0x120] sm:$0xff]
  %v377 = vld [vmem:[%s3 + $0x128] sm:$0xff]
  %v378 = vld [vmem:[%s3 + $0x130] sm:$0xff]
  %v379 = vld [vmem:[%s3 + $0x138] sm:$0xff]
  %v380 = vld [vmem:[%s3 + $0x140] sm:$0xff]
  %v381 = vld [vmem:[%s3 + $0x148] sm:$0xff]
  %v382 = vld [vmem:[%s3 + $0x150] sm:$0xff]
  %v383 = vld [vmem:[%s3 + $0x158] sm:$0xff]
  %v384 = vld [vmem:[%s3 + $0x160] sm:$0xff]
  %v385 = vld [vmem:[%s3 + $0x168] sm:$0xff]
  %v386 = vld [vmem:[%s3 + $0x170] sm:$0xff]
  %v387 = vld [vmem:[%s3 + $0x178] sm:$0xff]
  %v388 = vld [vmem:[%s3 + $0x180] sm:$0xff]
  %v389 = vld [vmem:[%s3 + $0x188] sm:$0xff]
  %v390 = vld [vmem:[%s3 + $0x190] sm:$0xff]
  %v391 = vld [vmem:[%s3 + $0x198] sm:$0xff]
  %v392 = vld [vmem:[%s3 + $0x1a0] sm:$0xff]
  %v393 = vld [vmem:[%s3 + $0x1a8] sm:$0xff]
  %v394 = vld [vmem:[%s3 + $0x1b0] sm:$0xff]
  %v395 = vld [vmem:[%s3 + $0x1b8] sm:$0xff]
  %v396 = vld [vmem:[%s3 + $0x1c0] sm:$0xff]
  %v397 = vld [vmem:[%s3 + $0x1c8] sm:$0xff]
  %v398 = vld [vmem:[%s3 + $0x1d0] sm:$0xff]
  %v399 = vld [vmem:[%s3 + $0x1d8] sm:$0xff]
  %v400 = vld [vmem:[%s3 + $0x1e0] sm:$0xff]
  %v401 = vld [vmem:[%s3 + $0x1e8] sm:$0xff]
  %v402 = vld [vmem:[%s3 + $0x1f0] sm:$0xff]
  %v403 = vld [vmem:[%s3 + $0x1f8] sm:$0xff]
  %v404 = vld [vmem:[%s3 + $0x200] sm:$0xff]
  %v405 = vld [vmem:[%s3 + $0x208] sm:$0xff]
  %v406 = vld [vmem:[%s3 + $0x210] sm:$0xff]
  %v407 = vld [vmem:[%s3 + $0x218] sm:$0xff]
  %v408 = vld [vmem:[%s3 + $0x220] sm:$0xff]
  %v409 = vld [vmem:[%s3 + $0x228] sm:$0xff]
  %v410 = vld [vmem:[%s3 + $0x230] sm:$0xff]
  %v411 = vld [vmem:[%s3 + $0x238] sm:$0xff]
  %v412 = vld [vmem:[%s3 + $0x240] sm:$0xff]
  %v413 = vld [vmem:[%s3 + $0x248] sm:$0xff]
  %v414 = vld [vmem:[%s3 + $0x250] sm:$0xff]
  %v415 = vld [vmem:[%s3 + $0x258] sm:$0xff]
  %v416 = vld [vmem:[%s3 + $0x260] sm:$0xff]
  %v417 = vld [vmem:[%s3 + $0x268] sm:$0xff]
  %v418 = vld [vmem:[%s3 + $0x270] sm:$0xff]
  %v419 = vld [vmem:[%s3 + $0x278] sm:$0xff]
  %v420 = vld [vmem:[%s3 + $0x280] sm:$0xff]
  %v421 = vld [vmem:[%s3 + $0x288] sm:$0xff]
  %v422 = vld [vmem:[%s3 + $0x290] sm:$0xff]
  %v423 = vld [vmem:[%s3 + $0x298] sm:$0xff]
  %v424 = vld [vmem:[%s3 + $0x2a0] sm:$0xff]
  %v425 = vld [vmem:[%s3 + $0x2a8] sm:$0xff]
  %v426 = vld [vmem:[%s3 + $0x2b0] sm:$0xff]
  %v427 = vld [vmem:[%s3 + $0x2b8] sm:$0xff]
  %v428 = vld [vmem:[%s3 + $0x2c0] sm:$0xff]
  %v429 = vld [vmem:[%s3 + $0x2c8] sm:$0xff]
  %v430 = vld [vmem:[%s3 + $0x2d0] sm:$0xff]
  %v431 = vld [vmem:[%s3 + $0x2d8] sm:$0xff]
  %v432 = vld [vmem:[%s3 + $0x2e0] sm:$0xff]
  %v433 = vld [vmem:[%s3 + $0x2e8] sm:$0xff]
  %v434 = vld [vmem:[%s3 + $0x2f0] sm:$0xff]
  %v435 = vld [vmem:[%s3 + $0x2f8] sm:$0xff]
  %v436 = vld [vmem:[%s3 + $0x300] sm:$0xff]
  %v437 = vld [vmem:[%s3 + $0x308] sm:$0xff]
  %v438 = vld [vmem:[%s3 + $0x310] sm:$0xff]
  %v439 = vld [vmem:[%s3 + $0x318] sm:$0xff]
  %v440 = vld [vmem:[%s3 + $0x320] sm:$0xff]
  %v441 = vld [vmem:[%s3 + $0x328] sm:$0xff]
  %v442 = vld [vmem:[%s3 + $0x330] sm:$0xff]
  %v443 = vld [vmem:[%s3 + $0x338] sm:$0xff]
  %v444 = vld [vmem:[%s3 + $0x340] sm:$0xff]
  %v445 = vld [vmem:[%s3 + $0x348] sm:$0xff]
  %v446 = vld [vmem:[%s3 + $0x350] sm:$0xff]
  %v447 = vld [vmem:[%s3 + $0x358] sm:$0xff]
  %v448 = vld [vmem:[%s3 + $0x360] sm:$0xff]
  %v449 = vld [vmem:[%s3 + $0x368] sm:$0xff]
  %v450 = vld [vmem:[%s3 + $0x370] sm:$0xff]
  %v451 = vld [vmem:[%s3 + $0x378] sm:$0xff]
  %v452 = vld [vmem:[%s3 + $0x380] sm:$0xff]
  %v453 = vld [vmem:[%s3 + $0x388] sm:$0xff]
  %v454 = vld [vmem:[%s3 + $0x390] sm:$0xff]
  %v455 = vld [vmem:[%s3 + $0x398] sm:$0xff]
  %v456 = vld [vmem:[%s3 + $0x3a0] sm:$0xff]
  %v457 = vld [vmem:[%s3 + $0x3a8] sm:$0xff]
  %v458 = vld [vmem:[%s3 + $0x3b0] sm:$0xff]
  %v459 = vld [vmem:[%s3 + $0x3b8] sm:$0xff]
  %v460 = vld [vmem:[%s3 + $0x3c0] sm:$0xff]
  %v461 = vld [vmem:[%s3 + $0x3c8] sm:$0xff]
  %v462 = vld [vmem:[%s3 + $0x3d0] sm:$0xff]
  %v463 = vld [vmem:[%s3 + $0x3d8] sm:$0xff]
  %v464 = vld [vmem:[%s3 + $0x3e0] sm:$0xff]
  %v465 = vld [vmem:[%s3 + $0x3e8] sm:$0xff]
  %v466 = vld [vmem:[%s3 + $0x3f0] sm:$0xff]
  %v467 = vld [vmem:[%s3 + $0x3f8] sm:$0xff]
  %v468 = vld [vmem:[%s3 + $0x400] sm:$0xff]
  %v469 = vld [vmem:[%s3 + $0x408] sm:$0xff]
  %v470 = vld [vmem:[%s3 + $0x410] sm:$0xff]
  %v471 = vld [vmem:[%s3 + $0x418] sm:$0xff]
  %v472 = vld [vmem:[%s3 + $0x420] sm:$0xff]
  %v473 = vld [vmem:[%s3 + $0x428] sm:$0xff]
  %v474 = vld [vmem:[%s3 + $0x430] sm:$0xff]
  %v475 = vld [vmem:[%s3 + $0x438] sm:$0xff]
  %v476 = vld [vmem:[%s3 + $0x440] sm:$0xff]
  %v477 = vld [vmem:[%s3 + $0x448] sm:$0xff]
  %v478 = vld [vmem:[%s3 + $0x450] sm:$0xff]
  %v479 = vld [vmem:[%s3 + $0x458] sm:$0xff]
  %v480 = vld [vmem:[%s3 + $0x460] sm:$0xff]
  %v481 = vld [vmem:[%s3 + $0x468] sm:$0xff]
  %v482 = vld [vmem:[%s3 + $0x470] sm:$0xff]
  %v483 = vld [vmem:[%s3 + $0x478] sm:$0xff]
  %v484 = vld [vmem:[%s3 + $0x480] sm:$0xff]
  %v485 = vld [vmem:[%s3 + $0x488] sm:$0xff]
  %v486 = vld [vmem:[%s3 + $0x490] sm:$0xff]
  %v487 = vld [vmem:[%s3 + $0x498] sm:$0xff]
  %v488 = vld [vmem:[%s3 + $0x4a0] sm:$0xff]
  %v489 = vld [vmem:[%s3 + $0x4a8] sm:$0xff]
  %v490 = vld [vmem:[%s3 + $0x4b0] sm:$0xff]
  %v491 = vld [vmem:[%s3 + $0x4b8] sm:$0xff]
  %v492 = vld [vmem:[%s3 + $0x4c0] sm:$0xff]
  %v493 = vld [vmem:[%s3 + $0x4c8] sm:$0xff]
  %v494 = vld [vmem:[%s3 + $0x4d0] sm:$0xff]
  %v495 = vld [vmem:[%s3 + $0x4d8] sm:$0xff]
  %v496 = vld [vmem:[%s3 + $0x4e0] sm:$0xff]
  %v497 = vld [vmem:[%s3 + $0x4e8] sm:$0xff]
  %v498 = vld [vmem:[%s3 + $0x4f0] sm:$0xff]
  %v499 = vld [vmem:[%s3 + $0x4f8] sm:$0xff]
  %v500 = vld [vmem:[%s3 + $0x500] sm:$0xff]
  %v501 = vld [vmem:[%s3 + $0x508] sm:$0xff]
  %v502 = vld [vmem:[%s3 + $0x510] sm:$0xff]
  %v503 = vld [vmem:[%s3 + $0x518] sm:$0xff]
  %v504 = vld [vmem:[%s3 + $0x520] sm:$0xff]
  %v505 = vld [vmem:[%s3 + $0x528] sm:$0xff]
  %v506 = vld [vmem:[%s3 + $0x530] sm:$0xff]
  %v507 = vld [vmem:[%s3 + $0x538] sm:$0xff]
  %v508 = vld [vmem:[%s3 + $0x540] sm:$0xff]
  %v509 = vld [vmem:[%s3 + $0x548] sm:$0xff]
  %v510 = vld [vmem:[%s3 + $0x550] sm:$0xff]
  %v511 = vld [vmem:[%s3 + $0x558] sm:$0xff]
  %v512 = vld [vmem:[%s3 + $0x560] sm:$0xff]
  %v513 = vld [vmem:[%s3 + $0x568] sm:$0xff]
  %v514 = vld [vmem:[%s3 + $0x570] sm:$0xff]
  %v515 = vld [vmem:[%s3 + $0x578] sm:$0xff]
  %v516 = vld [vmem:[%s3 + $0x580] sm:$0xff]
  %v517 = vld [vmem:[%s3 + $0x588] sm:$0xff]
  %v518 = vld [vmem:[%s3 + $0x590] sm:$0xff]
  %v519 = vld [vmem:[%s3 + $0x598] sm:$0xff]
  %v520 = vld [vmem:[%s3 + $0x5a0] sm:$0xff]
  %v521 = vld [vmem:[%s3 + $0x5a8] sm:$0xff]
  %v522 = vld [vmem:[%s3 + $0x5b0] sm:$0xff]
  %v523 = vld [vmem:[%s3 + $0x5b8] sm:$0xff]
  %v524 = vld [vmem:[%s3 + $0x5c0] sm:$0xff]
  %v525 = vld [vmem:[%s3 + $0x5c8] sm:$0xff]
  %v526 = vld [vmem:[%s3 + $0x5d0] sm:$0xff]
  %v527 = vld [vmem:[%s3 + $0x5d8] sm:$0xff]
  %v528 = vld [vmem:[%s3 + $0x5e0] sm:$0xff]
  %v529 = vld [vmem:[%s3 + $0x5e8] sm:$0xff]
  %v530 = vld [vmem:[%s3 + $0x5f0] sm:$0xff]
  %v531 = vld [vmem:[%s3 + $0x5f8] sm:$0xff]
  %v532 = vld [vmem:[%s3 + $0x600] sm:$0xff]
  %v533 = vld [vmem:[%s3 + $0x608] sm:$0xff]
  %v534 = vld [vmem:[%s3 + $0x610] sm:$0xff]
  %v535 = vld [vmem:[%s3 + $0x618] sm:$0xff]
  %v536 = vld [vmem:[%s3 + $0x620] sm:$0xff]
  %v537 = vld [vmem:[%s3 + $0x628] sm:$0xff]
  %v538 = vld [vmem:[%s3 + $0x630] sm:$0xff]
  %v539 = vld [vmem:[%s3 + $0x638] sm:$0xff]
  %v540 = vld [vmem:[%s3 + $0x640] sm:$0xff]
  %v541 = vld [vmem:[%s3 + $0x648] sm:$0xff]
  %v542 = vld [vmem:[%s3 + $0x650] sm:$0xff]
  %v543 = vld [vmem:[%s3 + $0x658] sm:$0xff]
  %v544 = vld [vmem:[%s3 + $0x660] sm:$0xff]
  %v545 = vld [vmem:[%s3 + $0x668] sm:$0xff]
  %v546 = vld [vmem:[%s3 + $0x670] sm:$0xff]
  %v547 = vld [vmem:[%s3 + $0x678] sm:$0xff]
  %v548 = vld [vmem:[%s3 + $0x680] sm:$0xff]
  %v549 = vld [vmem:[%s3 + $0x688] sm:$0xff]
  %v550 = vld [vmem:[%s3 + $0x690] sm:$0xff]
  %v551 = vld [vmem:[%s3 + $0x698] sm:$0xff]
  %v552 = vld [vmem:[%s3 + $0x6a0] sm:$0xff]
  %v553 = vld [vmem:[%s3 + $0x6a8] sm:$0xff]
  %v554 = vld [vmem:[%s3 + $0x6b0] sm:$0xff]
  %v555 = vld [vmem:[%s3 + $0x6b8] sm:$0xff]
  %v556 = vld [vmem:[%s3 + $0x6c0] sm:$0xff]
  %v557 = vld [vmem:[%s3 + $0x6c8] sm:$0xff]
  %v558 = vld [vmem:[%s3 + $0x6d0] sm:$0xff]
  %v559 = vld [vmem:[%s3 + $0x6d8] sm:$0xff]
  %v560 = vld [vmem:[%s3 + $0x6e0] sm:$0xff]
  %v561 = vld [vmem:[%s3 + $0x6e8] sm:$0xff]
  %v562 = vld [vmem:[%s3 + $0x6f0] sm:$0xff]
  %v563 = vld [vmem:[%s3 + $0x6f8] sm:$0xff]
  %v564 = vld [vmem:[%s3 + $0x700] sm:$0xff]
  %v565 = vld [vmem:[%s3 + $0x708] sm:$0xff]
  %v566 = vld [vmem:[%s3 + $0x710] sm:$0xff]
  %v567 = vld [vmem:[%s3 + $0x718] sm:$0xff]
  %v568 = vld [vmem:[%s3 + $0x720] sm:$0xff]
  %v569 = vld [vmem:[%s3 + $0x728] sm:$0xff]
  %v570 = vld [vmem:[%s3 + $0x730] sm:$0xff]
  %v571 = vld [vmem:[%s3 + $0x738] sm:$0xff]
  %v572 = vld [vmem:[%s3 + $0x740] sm:$0xff]
  %v573 = vld [vmem:[%s3 + $0x748] sm:$0xff]
  %v574 = vld [vmem:[%s3 + $0x750] sm:$0xff]
  %v575 = vld [vmem:[%s3 + $0x758] sm:$0xff]
  %v576 = vld [vmem:[%s3 + $0x760] sm:$0xff]
  %v577 = vld [vmem:[%s3 + $0x768] sm:$0xff]
  %v578 = vld [vmem:[%s3 + $0x770] sm:$0xff]
  %v579 = vld [vmem:[%s3 + $0x778] sm:$0xff]
  %v580 = vld [vmem:[%s3 + $0x780] sm:$0xff]
  %v581 = vld [vmem:[%s3 + $0x788] sm:$0xff]
  %v582 = vld [vmem:[%s3 + $0x790] sm:$0xff]
  %v583 = vld [vmem:[%s3 + $0x798] sm:$0xff]
  %v584 = vld [vmem:[%s3 + $0x7a0] sm:$0xff]
  %v585 = vld [vmem:[%s3 + $0x7a8] sm:$0xff]
  %v586 = vld [vmem:[%s3 + $0x7b0] sm:$0xff]
  %v587 = vld [vmem:[%s3 + $0x7b8] sm:$0xff]
  %v588 = vld [vmem:[%s3 + $0x7c0] sm:$0xff]
  %v589 = vld [vmem:[%s3 + $0x7c8] sm:$0xff]
  %v590 = vld [vmem:[%s3 + $0x7d0] sm:$0xff]
  %v591 = vld [vmem:[%s3 + $0x7d8] sm:$0xff]
  %v592 = vld [vmem:[%s3 + $0x7e0] sm:$0xff]
  %v593 = vld [vmem:[%s3 + $0x7e8] sm:$0xff]
  %v594 = vld [vmem:[%s3 + $0x7f0] sm:$0xff]
  %v595 = vld [vmem:[%s3 + $0x7f8] sm:$0xff]
  %v596 = vld [vmem:[%s4] sm:$0xff]
  %v598 = vperm.slane %v596, 0
  %v599 = vperm.slane %v596, 1
  %v600 = vperm.slane %v596, 2
  %v601 = vperm.slane %v596, 3
  %v602 = vperm.slane %v596, 4
  %v603 = vperm.slane %v596, 5
  %v604 = vperm.slane %v596, 6
  %v605 = vperm.slane %v596, 7
  %v870 = vunpack.c.l.b16 %v340
  %v871 = vunpack.c.h.b16 %v340
  %v872 = vunpack.c.l.b16 %v341
  %v873 = vunpack.c.h.b16 %v341
  %v874 = vunpack.c.l.b16 %v342
  %v875 = vunpack.c.h.b16 %v342
  %v876 = vunpack.c.l.b16 %v343
  %v877 = vunpack.c.h.b16 %v343
  %v878 = vunpack.c.l.b16 %v344
  %v879 = vunpack.c.h.b16 %v344
  %v880 = vunpack.c.l.b16 %v345
  %v881 = vunpack.c.h.b16 %v345
  %v882 = vunpack.c.l.b16 %v346
  %v883 = vunpack.c.h.b16 %v346
  %v884 = vunpack.c.l.b16 %v347
  %v885 = vunpack.c.h.b16 %v347
  %v886 = vunpack.c.l.b16 %v348
  %v887 = vunpack.c.h.b16 %v348
  %v888 = vunpack.c.l.b16 %v349
  %v889 = vunpack.c.h.b16 %v349
  %v890 = vunpack.c.l.b16 %v350
  %v891 = vunpack.c.h.b16 %v350
  %v892 = vunpack.c.l.b16 %v351
  %v893 = vunpack.c.h.b16 %v351
  %v894 = vunpack.c.l.b16 %v352
  %v895 = vunpack.c.h.b16 %v352
  %v896 = vunpack.c.l.b16 %v353
  %v897 = vunpack.c.h.b16 %v353
  %v898 = vunpack.c.l.b16 %v354
  %v899 = vunpack.c.h.b16 %v354
  %v900 = vunpack.c.l.b16 %v355
  %v901 = vunpack.c.h.b16 %v355
  %v902 = vunpack.c.l.b16 %v356
  %v903 = vunpack.c.h.b16 %v356
  %v904 = vunpack.c.l.b16 %v357
  %v905 = vunpack.c.h.b16 %v357
  %v906 = vunpack.c.l.b16 %v358
  %v907 = vunpack.c.h.b16 %v358
  %v908 = vunpack.c.l.b16 %v359
  %v909 = vunpack.c.h.b16 %v359
  %v910 = vunpack.c.l.b16 %v360
  %v911 = vunpack.c.h.b16 %v360
  %v912 = vunpack.c.l.b16 %v361
  %v913 = vunpack.c.h.b16 %v361
  %v914 = vunpack.c.l.b16 %v362
  %v915 = vunpack.c.h.b16 %v362
  %v916 = vunpack.c.l.b16 %v363
  %v917 = vunpack.c.h.b16 %v363
  %v918 = vunpack.c.l.b16 %v364
  %v919 = vunpack.c.h.b16 %v364
  %v920 = vunpack.c.l.b16 %v365
  %v921 = vunpack.c.h.b16 %v365
  %v922 = vunpack.c.l.b16 %v366
  %v923 = vunpack.c.h.b16 %v366
  %v924 = vunpack.c.l.b16 %v367
  %v925 = vunpack.c.h.b16 %v367
  %v926 = vunpack.c.l.b16 %v368
  %v927 = vunpack.c.h.b16 %v368
  %v928 = vunpack.c.l.b16 %v369
  %v929 = vunpack.c.h.b16 %v369
  %v930 = vunpack.c.l.b16 %v370
  %v931 = vunpack.c.h.b16 %v370
  %v932 = vunpack.c.l.b16 %v371
  %v933 = vunpack.c.h.b16 %v371
  %v934 = vunpack.c.l.b16 %v372
  %v935 = vunpack.c.h.b16 %v372
  %v936 = vunpack.c.l.b16 %v373
  %v937 = vunpack.c.h.b16 %v373
  %v938 = vunpack.c.l.b16 %v374
  %v939 = vunpack.c.h.b16 %v374
  %v940 = vunpack.c.l.b16 %v375
  %v941 = vunpack.c.h.b16 %v375
  %v942 = vunpack.c.l.b16 %v376
  %v943 = vunpack.c.h.b16 %v376
  %v944 = vunpack.c.l.b16 %v377
  %v945 = vunpack.c.h.b16 %v377
  %v946 = vunpack.c.l.b16 %v378
  %v947 = vunpack.c.h.b16 %v378
  %v948 = vunpack.c.l.b16 %v379
  %v949 = vunpack.c.h.b16 %v379
  %v950 = vunpack.c.l.b16 %v380
  %v951 = vunpack.c.h.b16 %v380
  %v952 = vunpack.c.l.b16 %v381
  %v953 = vunpack.c.h.b16 %v381
  %v954 = vunpack.c.l.b16 %v382
  %v955 = vunpack.c.h.b16 %v382
  %v956 = vunpack.c.l.b16 %v383
  %v957 = vunpack.c.h.b16 %v383
  %v958 = vunpack.c.l.b16 %v384
  %v959 = vunpack.c.h.b16 %v384
  %v960 = vunpack.c.l.b16 %v385
  %v961 = vunpack.c.h.b16 %v385
  %v962 = vunpack.c.l.b16 %v386
  %v963 = vunpack.c.h.b16 %v386
  %v964 = vunpack.c.l.b16 %v387
  %v965 = vunpack.c.h.b16 %v387
  %v966 = vunpack.c.l.b16 %v388
  %v967 = vunpack.c.h.b16 %v388
  %v968 = vunpack.c.l.b16 %v389
  %v969 = vunpack.c.h.b16 %v389
  %v970 = vunpack.c.l.b16 %v390
  %v971 = vunpack.c.h.b16 %v390
  %v972 = vunpack.c.l.b16 %v391
  %v973 = vunpack.c.h.b16 %v391
  %v974 = vunpack.c.l.b16 %v392
  %v975 = vunpack.c.h.b16 %v392
  %v976 = vunpack.c.l.b16 %v393
  %v977 = vunpack.c.h.b16 %v393
  %v978 = vunpack.c.l.b16 %v394
  %v979 = vunpack.c.h.b16 %v394
  %v980 = vunpack.c.l.b16 %v395
  %v981 = vunpack.c.h.b16 %v395
  %v982 = vunpack.c.l.b16 %v396
  %v983 = vunpack.c.h.b16 %v396
  %v984 = vunpack.c.l.b16 %v397
  %v985 = vunpack.c.h.b16 %v397
  %v986 = vunpack.c.l.b16 %v398
  %v987 = vunpack.c.h.b16 %v398
  %v988 = vunpack.c.l.b16 %v399
  %v989 = vunpack.c.h.b16 %v399
  %v990 = vunpack.c.l.b16 %v400
  %v991 = vunpack.c.h.b16 %v400
  %v992 = vunpack.c.l.b16 %v401
  %v993 = vunpack.c.h.b16 %v401
  %v994 = vunpack.c.l.b16 %v402
  %v995 = vunpack.c.h.b16 %v402
  %v996 = vunpack.c.l.b16 %v403
  %v997 = vunpack.c.h.b16 %v403
  %v998 = vunpack.c.l.b16 %v404
  %v999 = vunpack.c.h.b16 %v404
  %v1000 = vunpack.c.l.b16 %v405
  %v1001 = vunpack.c.h.b16 %v405
  %v1002 = vunpack.c.l.b16 %v406
  %v1003 = vunpack.c.h.b16 %v406
  %v1004 = vunpack.c.l.b16 %v407
  %v1005 = vunpack.c.h.b16 %v407
  %v1006 = vunpack.c.l.b16 %v408
  %v1007 = vunpack.c.h.b16 %v408
  %v1008 = vunpack.c.l.b16 %v409
  %v1009 = vunpack.c.h.b16 %v409
  %v1010 = vunpack.c.l.b16 %v410
  %v1011 = vunpack.c.h.b16 %v410
  %v1012 = vunpack.c.l.b16 %v411
  %v1013 = vunpack.c.h.b16 %v411
  %v1014 = vunpack.c.l.b16 %v412
  %v1015 = vunpack.c.h.b16 %v412
  %v1016 = vunpack.c.l.b16 %v413
  %v1017 = vunpack.c.h.b16 %v413
  %v1018 = vunpack.c.l.b16 %v414
  %v1019 = vunpack.c.h.b16 %v414
  %v1020 = vunpack.c.l.b16 %v415
  %v1021 = vunpack.c.h.b16 %v415
  %v1022 = vunpack.c.l.b16 %v416
  %v1023 = vunpack.c.h.b16 %v416
  %v1024 = vunpack.c.l.b16 %v417
  %v1025 = vunpack.c.h.b16 %v417
  %v1026 = vunpack.c.l.b16 %v418
  %v1027 = vunpack.c.h.b16 %v418
  %v1028 = vunpack.c.l.b16 %v419
  %v1029 = vunpack.c.h.b16 %v419
  %v1030 = vunpack.c.l.b16 %v420
  %v1031 = vunpack.c.h.b16 %v420
  %v1032 = vunpack.c.l.b16 %v421
  %v1033 = vunpack.c.h.b16 %v421
  %v1034 = vunpack.c.l.b16 %v422
  %v1035 = vunpack.c.h.b16 %v422
  %v1036 = vunpack.c.l.b16 %v423
  %v1037 = vunpack.c.h.b16 %v423
  %v1038 = vunpack.c.l.b16 %v424
  %v1039 = vunpack.c.h.b16 %v424
  %v1040 = vunpack.c.l.b16 %v425
  %v1041 = vunpack.c.h.b16 %v425
  %v1042 = vunpack.c.l.b16 %v426
  %v1043 = vunpack.c.h.b16 %v426
  %v1044 = vunpack.c.l.b16 %v427
  %v1045 = vunpack.c.h.b16 %v427
  %v1046 = vunpack.c.l.b16 %v428
  %v1047 = vunpack.c.h.b16 %v428
  %v1048 = vunpack.c.l.b16 %v429
  %v1049 = vunpack.c.h.b16 %v429
  %v1050 = vunpack.c.l.b16 %v430
  %v1051 = vunpack.c.h.b16 %v430
  %v1052 = vunpack.c.l.b16 %v431
  %v1053 = vunpack.c.h.b16 %v431
  %v1054 = vunpack.c.l.b16 %v432
  %v1055 = vunpack.c.h.b16 %v432
  %v1056 = vunpack.c.l.b16 %v433
  %v1057 = vunpack.c.h.b16 %v433
  %v1058 = vunpack.c.l.b16 %v434
  %v1059 = vunpack.c.h.b16 %v434
  %v1060 = vunpack.c.l.b16 %v435
  %v1061 = vunpack.c.h.b16 %v435
  %v1062 = vunpack.c.l.b16 %v436
  %v1063 = vunpack.c.h.b16 %v436
  %v1064 = vunpack.c.l.b16 %v437
  %v1065 = vunpack.c.h.b16 %v437
  %v1066 = vunpack.c.l.b16 %v438
  %v1067 = vunpack.c.h.b16 %v438
  %v1068 = vunpack.c.l.b16 %v439
  %v1069 = vunpack.c.h.b16 %v439
  %v1070 = vunpack.c.l.b16 %v440
  %v1071 = vunpack.c.h.b16 %v440
  %v1072 = vunpack.c.l.b16 %v441
  %v1073 = vunpack.c.h.b16 %v441
  %v1074 = vunpack.c.l.b16 %v442
  %v1075 = vunpack.c.h.b16 %v442
  %v1076 = vunpack.c.l.b16 %v443
  %v1077 = vunpack.c.h.b16 %v443
  %v1078 = vunpack.c.l.b16 %v444
  %v1079 = vunpack.c.h.b16 %v444
  %v1080 = vunpack.c.l.b16 %v445
  %v1081 = vunpack.c.h.b16 %v445
  %v1082 = vunpack.c.l.b16 %v446
  %v1083 = vunpack.c.h.b16 %v446
  %v1084 = vunpack.c.l.b16 %v447
  %v1085 = vunpack.c.h.b16 %v447
  %v1086 = vunpack.c.l.b16 %v448
  %v1087 = vunpack.c.h.b16 %v448
  %v1088 = vunpack.c.l.b16 %v449
  %v1089 = vunpack.c.h.b16 %v449
  %v1090 = vunpack.c.l.b16 %v450
  %v1091 = vunpack.c.h.b16 %v450
  %v1092 = vunpack.c.l.b16 %v451
  %v1093 = vunpack.c.h.b16 %v451
  %v1094 = vunpack.c.l.b16 %v452
  %v1095 = vunpack.c.h.b16 %v452
  %v1096 = vunpack.c.l.b16 %v453
  %v1097 = vunpack.c.h.b16 %v453
  %v1098 = vunpack.c.l.b16 %v454
  %v1099 = vunpack.c.h.b16 %v454
  %v1100 = vunpack.c.l.b16 %v455
  %v1101 = vunpack.c.h.b16 %v455
  %v1102 = vunpack.c.l.b16 %v456
  %v1103 = vunpack.c.h.b16 %v456
  %v1104 = vunpack.c.l.b16 %v457
  %v1105 = vunpack.c.h.b16 %v457
  %v1106 = vunpack.c.l.b16 %v458
  %v1107 = vunpack.c.h.b16 %v458
  %v1108 = vunpack.c.l.b16 %v459
  %v1109 = vunpack.c.h.b16 %v459
  %v1110 = vunpack.c.l.b16 %v460
  %v1111 = vunpack.c.h.b16 %v460
  %v1112 = vunpack.c.l.b16 %v461
  %v1113 = vunpack.c.h.b16 %v461
  %v1114 = vunpack.c.l.b16 %v462
  %v1115 = vunpack.c.h.b16 %v462
  %v1116 = vunpack.c.l.b16 %v463
  %v1117 = vunpack.c.h.b16 %v463
  %v1118 = vunpack.c.l.b16 %v464
  %v1119 = vunpack.c.h.b16 %v464
  %v1120 = vunpack.c.l.b16 %v465
  %v1121 = vunpack.c.h.b16 %v465
  %v1122 = vunpack.c.l.b16 %v466
  %v1123 = vunpack.c.h.b16 %v466
  %v1124 = vunpack.c.l.b16 %v467
  %v1125 = vunpack.c.h.b16 %v467
  %v1126 = vunpack.c.l.b16 %v468
  %v1127 = vunpack.c.h.b16 %v468
  %v1128 = vunpack.c.l.b16 %v469
  %v1129 = vunpack.c.h.b16 %v469
  %v1130 = vunpack.c.l.b16 %v470
  %v1131 = vunpack.c.h.b16 %v470
  %v1132 = vunpack.c.l.b16 %v471
  %v1133 = vunpack.c.h.b16 %v471
  %v1134 = vunpack.c.l.b16 %v472
  %v1135 = vunpack.c.h.b16 %v472
  %v1136 = vunpack.c.l.b16 %v473
  %v1137 = vunpack.c.h.b16 %v473
  %v1138 = vunpack.c.l.b16 %v474
  %v1139 = vunpack.c.h.b16 %v474
  %v1140 = vunpack.c.l.b16 %v475
  %v1141 = vunpack.c.h.b16 %v475
  %v1142 = vunpack.c.l.b16 %v476
  %v1143 = vunpack.c.h.b16 %v476
  %v1144 = vunpack.c.l.b16 %v477
  %v1145 = vunpack.c.h.b16 %v477
  %v1146 = vunpack.c.l.b16 %v478
  %v1147 = vunpack.c.h.b16 %v478
  %v1148 = vunpack.c.l.b16 %v479
  %v1149 = vunpack.c.h.b16 %v479
  %v1150 = vunpack.c.l.b16 %v480
  %v1151 = vunpack.c.h.b16 %v480
  %v1152 = vunpack.c.l.b16 %v481
  %v1153 = vunpack.c.h.b16 %v481
  %v1154 = vunpack.c.l.b16 %v482
  %v1155 = vunpack.c.h.b16 %v482
  %v1156 = vunpack.c.l.b16 %v483
  %v1157 = vunpack.c.h.b16 %v483
  %v1158 = vunpack.c.l.b16 %v484
  %v1159 = vunpack.c.h.b16 %v484
  %v1160 = vunpack.c.l.b16 %v485
  %v1161 = vunpack.c.h.b16 %v485
  %v1162 = vunpack.c.l.b16 %v486
  %v1163 = vunpack.c.h.b16 %v486
  %v1164 = vunpack.c.l.b16 %v487
  %v1165 = vunpack.c.h.b16 %v487
  %v1166 = vunpack.c.l.b16 %v488
  %v1167 = vunpack.c.h.b16 %v488
  %v1168 = vunpack.c.l.b16 %v489
  %v1169 = vunpack.c.h.b16 %v489
  %v1170 = vunpack.c.l.b16 %v490
  %v1171 = vunpack.c.h.b16 %v490
  %v1172 = vunpack.c.l.b16 %v491
  %v1173 = vunpack.c.h.b16 %v491
  %v1174 = vunpack.c.l.b16 %v492
  %v1175 = vunpack.c.h.b16 %v492
  %v1176 = vunpack.c.l.b16 %v493
  %v1177 = vunpack.c.h.b16 %v493
  %v1178 = vunpack.c.l.b16 %v494
  %v1179 = vunpack.c.h.b16 %v494
  %v1180 = vunpack.c.l.b16 %v495
  %v1181 = vunpack.c.h.b16 %v495
  %v1182 = vunpack.c.l.b16 %v496
  %v1183 = vunpack.c.h.b16 %v496
  %v1184 = vunpack.c.l.b16 %v497
  %v1185 = vunpack.c.h.b16 %v497
  %v1186 = vunpack.c.l.b16 %v498
  %v1187 = vunpack.c.h.b16 %v498
  %v1188 = vunpack.c.l.b16 %v499
  %v1189 = vunpack.c.h.b16 %v499
  %v1190 = vunpack.c.l.b16 %v500
  %v1191 = vunpack.c.h.b16 %v500
  %v1192 = vunpack.c.l.b16 %v501
  %v1193 = vunpack.c.h.b16 %v501
  %v1194 = vunpack.c.l.b16 %v502
  %v1195 = vunpack.c.h.b16 %v502
  %v1196 = vunpack.c.l.b16 %v503
  %v1197 = vunpack.c.h.b16 %v503
  %v1198 = vunpack.c.l.b16 %v504
  %v1199 = vunpack.c.h.b16 %v504
  %v1200 = vunpack.c.l.b16 %v505
  %v1201 = vunpack.c.h.b16 %v505
  %v1202 = vunpack.c.l.b16 %v506
  %v1203 = vunpack.c.h.b16 %v506
  %v1204 = vunpack.c.l.b16 %v507
  %v1205 = vunpack.c.h.b16 %v507
  %v1206 = vunpack.c.l.b16 %v508
  %v1207 = vunpack.c.h.b16 %v508
  %v1208 = vunpack.c.l.b16 %v509
  %v1209 = vunpack.c.h.b16 %v509
  %v1210 = vunpack.c.l.b16 %v510
  %v1211 = vunpack.c.h.b16 %v510
  %v1212 = vunpack.c.l.b16 %v511
  %v1213 = vunpack.c.h.b16 %v511
  %v1214 = vunpack.c.l.b16 %v512
  %v1215 = vunpack.c.h.b16 %v512
  %v1216 = vunpack.c.l.b16 %v513
  %v1217 = vunpack.c.h.b16 %v513
  %v1218 = vunpack.c.l.b16 %v514
  %v1219 = vunpack.c.h.b16 %v514
  %v1220 = vunpack.c.l.b16 %v515
  %v1221 = vunpack.c.h.b16 %v515
  %v1222 = vunpack.c.l.b16 %v516
  %v1223 = vunpack.c.h.b16 %v516
  %v1224 = vunpack.c.l.b16 %v517
  %v1225 = vunpack.c.h.b16 %v517
  %v1226 = vunpack.c.l.b16 %v518
  %v1227 = vunpack.c.h.b16 %v518
  %v1228 = vunpack.c.l.b16 %v519
  %v1229 = vunpack.c.h.b16 %v519
  %v1230 = vunpack.c.l.b16 %v520
  %v1231 = vunpack.c.h.b16 %v520
  %v1232 = vunpack.c.l.b16 %v521
  %v1233 = vunpack.c.h.b16 %v521
  %v1234 = vunpack.c.l.b16 %v522
  %v1235 = vunpack.c.h.b16 %v522
  %v1236 = vunpack.c.l.b16 %v523
  %v1237 = vunpack.c.h.b16 %v523
  %v1238 = vunpack.c.l.b16 %v524
  %v1239 = vunpack.c.h.b16 %v524
  %v1240 = vunpack.c.l.b16 %v525
  %v1241 = vunpack.c.h.b16 %v525
  %v1242 = vunpack.c.l.b16 %v526
  %v1243 = vunpack.c.h.b16 %v526
  %v1244 = vunpack.c.l.b16 %v527
  %v1245 = vunpack.c.h.b16 %v527
  %v1246 = vunpack.c.l.b16 %v528
  %v1247 = vunpack.c.h.b16 %v528
  %v1248 = vunpack.c.l.b16 %v529
  %v1249 = vunpack.c.h.b16 %v529
  %v1250 = vunpack.c.l.b16 %v530
  %v1251 = vunpack.c.h.b16 %v530
  %v1252 = vunpack.c.l.b16 %v531
  %v1253 = vunpack.c.h.b16 %v531
  %v1254 = vunpack.c.l.b16 %v532
  %v1255 = vunpack.c.h.b16 %v532
  %v1256 = vunpack.c.l.b16 %v533
  %v1257 = vunpack.c.h.b16 %v533
  %v1258 = vunpack.c.l.b16 %v534
  %v1259 = vunpack.c.h.b16 %v534
  %v1260 = vunpack.c.l.b16 %v535
  %v1261 = vunpack.c.h.b16 %v535
  %v1262 = vunpack.c.l.b16 %v536
  %v1263 = vunpack.c.h.b16 %v536
  %v1264 = vunpack.c.l.b16 %v537
  %v1265 = vunpack.c.h.b16 %v537
  %v1266 = vunpack.c.l.b16 %v538
  %v1267 = vunpack.c.h.b16 %v538
  %v1268 = vunpack.c.l.b16 %v539
  %v1269 = vunpack.c.h.b16 %v539
  %v1270 = vunpack.c.l.b16 %v540
  %v1271 = vunpack.c.h.b16 %v540
  %v1272 = vunpack.c.l.b16 %v541
  %v1273 = vunpack.c.h.b16 %v541
  %v1274 = vunpack.c.l.b16 %v542
  %v1275 = vunpack.c.h.b16 %v542
  %v1276 = vunpack.c.l.b16 %v543
  %v1277 = vunpack.c.h.b16 %v543
  %v1278 = vunpack.c.l.b16 %v544
  %v1279 = vunpack.c.h.b16 %v544
  %v1280 = vunpack.c.l.b16 %v545
  %v1281 = vunpack.c.h.b16 %v545
  %v1282 = vunpack.c.l.b16 %v546
  %v1283 = vunpack.c.h.b16 %v546
  %v1284 = vunpack.c.l.b16 %v547
  %v1285 = vunpack.c.h.b16 %v547
  %v1286 = vunpack.c.l.b16 %v548
  %v1287 = vunpack.c.h.b16 %v548
  %v1288 = vunpack.c.l.b16 %v549
  %v1289 = vunpack.c.h.b16 %v549
  %v1290 = vunpack.c.l.b16 %v550
  %v1291 = vunpack.c.h.b16 %v550
  %v1292 = vunpack.c.l.b16 %v551
  %v1293 = vunpack.c.h.b16 %v551
  %v1294 = vunpack.c.l.b16 %v552
  %v1295 = vunpack.c.h.b16 %v552
  %v1296 = vunpack.c.l.b16 %v553
  %v1297 = vunpack.c.h.b16 %v553
  %v1298 = vunpack.c.l.b16 %v554
  %v1299 = vunpack.c.h.b16 %v554
  %v1300 = vunpack.c.l.b16 %v555
  %v1301 = vunpack.c.h.b16 %v555
  %v1302 = vunpack.c.l.b16 %v556
  %v1303 = vunpack.c.h.b16 %v556
  %v1304 = vunpack.c.l.b16 %v557
  %v1305 = vunpack.c.h.b16 %v557
  %v1306 = vunpack.c.l.b16 %v558
  %v1307 = vunpack.c.h.b16 %v558
  %v1308 = vunpack.c.l.b16 %v559
  %v1309 = vunpack.c.h.b16 %v559
  %v1310 = vunpack.c.l.b16 %v560
  %v1311 = vunpack.c.h.b16 %v560
  %v1312 = vunpack.c.l.b16 %v561
  %v1313 = vunpack.c.h.b16 %v561
  %v1314 = vunpack.c.l.b16 %v562
  %v1315 = vunpack.c.h.b16 %v562
  %v1316 = vunpack.c.l.b16 %v563
  %v1317 = vunpack.c.h.b16 %v563
  %v1318 = vunpack.c.l.b16 %v564
  %v1319 = vunpack.c.h.b16 %v564
  %v1320 = vunpack.c.l.b16 %v565
  %v1321 = vunpack.c.h.b16 %v565
  %v1322 = vunpack.c.l.b16 %v566
  %v1323 = vunpack.c.h.b16 %v566
  %v1324 = vunpack.c.l.b16 %v567
  %v1325 = vunpack.c.h.b16 %v567
  %v1326 = vunpack.c.l.b16 %v568
  %v1327 = vunpack.c.h.b16 %v568
  %v1328 = vunpack.c.l.b16 %v569
  %v1329 = vunpack.c.h.b16 %v569
  %v1330 = vunpack.c.l.b16 %v570
  %v1331 = vunpack.c.h.b16 %v570
  %v1332 = vunpack.c.l.b16 %v571
  %v1333 = vunpack.c.h.b16 %v571
  %v1334 = vunpack.c.l.b16 %v572
  %v1335 = vunpack.c.h.b16 %v572
  %v1336 = vunpack.c.l.b16 %v573
  %v1337 = vunpack.c.h.b16 %v573
  %v1338 = vunpack.c.l.b16 %v574
  %v1339 = vunpack.c.h.b16 %v574
  %v1340 = vunpack.c.l.b16 %v575
  %v1341 = vunpack.c.h.b16 %v575
  %v1342 = vunpack.c.l.b16 %v576
  %v1343 = vunpack.c.h.b16 %v576
  %v1344 = vunpack.c.l.b16 %v577
  %v1345 = vunpack.c.h.b16 %v577
  %v1346 = vunpack.c.l.b16 %v578
  %v1347 = vunpack.c.h.b16 %v578
  %v1348 = vunpack.c.l.b16 %v579
  %v1349 = vunpack.c.h.b16 %v579
  %v1350 = vunpack.c.l.b16 %v580
  %v1351 = vunpack.c.h.b16 %v580
  %v1352 = vunpack.c.l.b16 %v581
  %v1353 = vunpack.c.h.b16 %v581
  %v1354 = vunpack.c.l.b16 %v582
  %v1355 = vunpack.c.h.b16 %v582
  %v1356 = vunpack.c.l.b16 %v583
  %v1357 = vunpack.c.h.b16 %v583
  %v1358 = vunpack.c.l.b16 %v584
  %v1359 = vunpack.c.h.b16 %v584
  %v1360 = vunpack.c.l.b16 %v585
  %v1361 = vunpack.c.h.b16 %v585
  %v1362 = vunpack.c.l.b16 %v586
  %v1363 = vunpack.c.h.b16 %v586
  %v1364 = vunpack.c.l.b16 %v587
  %v1365 = vunpack.c.h.b16 %v587
  %v1366 = vunpack.c.l.b16 %v588
  %v1367 = vunpack.c.h.b16 %v588
  %v1368 = vunpack.c.l.b16 %v589
  %v1369 = vunpack.c.h.b16 %v589
  %v1370 = vunpack.c.l.b16 %v590
  %v1371 = vunpack.c.h.b16 %v590
  %v1372 = vunpack.c.l.b16 %v591
  %v1373 = vunpack.c.h.b16 %v591
  %v1374 = vunpack.c.l.b16 %v592
  %v1375 = vunpack.c.h.b16 %v592
  %v1376 = vunpack.c.l.b16 %v593
  %v1377 = vunpack.c.h.b16 %v593
  %v1378 = vunpack.c.l.b16 %v594
  %v1379 = vunpack.c.h.b16 %v594
  %v1380 = vunpack.c.l.b16 %v595
  %v1381 = vunpack.c.h.b16 %v595
  %v1382 = vpack.c.b16 %v878, %v870
  %v1383 = vpack.c.b16 %v879, %v871
  %v1384 = vpack.c.b16 %v880, %v872
  %v1385 = vpack.c.b16 %v881, %v873
  %v1386 = vpack.c.b16 %v882, %v874
  %v1387 = vpack.c.b16 %v883, %v875
  %v1388 = vpack.c.b16 %v884, %v876
  %v1389 = vpack.c.b16 %v885, %v877
  %v1390 = vpack.c.b16 %v894, %v886
  %v1391 = vpack.c.b16 %v895, %v887
  %v1392 = vpack.c.b16 %v896, %v888
  %v1393 = vpack.c.b16 %v897, %v889
  %v1394 = vpack.c.b16 %v898, %v890
  %v1395 = vpack.c.b16 %v899, %v891
  %v1396 = vpack.c.b16 %v900, %v892
  %v1397 = vpack.c.b16 %v901, %v893
  %v1398 = vpack.c.b16 %v910, %v902
  %v1399 = vpack.c.b16 %v911, %v903
  %v1400 = vpack.c.b16 %v912, %v904
  %v1401 = vpack.c.b16 %v913, %v905
  %v1402 = vpack.c.b16 %v914, %v906
  %v1403 = vpack.c.b16 %v915, %v907
  %v1404 = vpack.c.b16 %v916, %v908
  %v1405 = vpack.c.b16 %v917, %v909
  %v1406 = vpack.c.b16 %v926, %v918
  %v1407 = vpack.c.b16 %v927, %v919
  %v1408 = vpack.c.b16 %v928, %v920
  %v1409 = vpack.c.b16 %v929, %v921
  %v1410 = vpack.c.b16 %v930, %v922
  %v1411 = vpack.c.b16 %v931, %v923
  %v1412 = vpack.c.b16 %v932, %v924
  %v1413 = vpack.c.b16 %v933, %v925
  %v1414 = vpack.c.b16 %v942, %v934
  %v1415 = vpack.c.b16 %v943, %v935
  %v1416 = vpack.c.b16 %v944, %v936
  %v1417 = vpack.c.b16 %v945, %v937
  %v1418 = vpack.c.b16 %v946, %v938
  %v1419 = vpack.c.b16 %v947, %v939
  %v1420 = vpack.c.b16 %v948, %v940
  %v1421 = vpack.c.b16 %v949, %v941
  %v1422 = vpack.c.b16 %v958, %v950
  %v1423 = vpack.c.b16 %v959, %v951
  %v1424 = vpack.c.b16 %v960, %v952
  %v1425 = vpack.c.b16 %v961, %v953
  %v1426 = vpack.c.b16 %v962, %v954
  %v1427 = vpack.c.b16 %v963, %v955
  %v1428 = vpack.c.b16 %v964, %v956
  %v1429 = vpack.c.b16 %v965, %v957
  %v1430 = vpack.c.b16 %v974, %v966
  %v1431 = vpack.c.b16 %v975, %v967
  %v1432 = vpack.c.b16 %v976, %v968
  %v1433 = vpack.c.b16 %v977, %v969
  %v1434 = vpack.c.b16 %v978, %v970
  %v1435 = vpack.c.b16 %v979, %v971
  %v1436 = vpack.c.b16 %v980, %v972
  %v1437 = vpack.c.b16 %v981, %v973
  %v1438 = vpack.c.b16 %v990, %v982
  %v1439 = vpack.c.b16 %v991, %v983
  %v1440 = vpack.c.b16 %v992, %v984
  %v1441 = vpack.c.b16 %v993, %v985
  %v1442 = vpack.c.b16 %v994, %v986
  %v1443 = vpack.c.b16 %v995, %v987
  %v1444 = vpack.c.b16 %v996, %v988
  %v1445 = vpack.c.b16 %v997, %v989
  %v1446 = vpack.c.b16 %v1006, %v998
  %v1447 = vpack.c.b16 %v1007, %v999
  %v1448 = vpack.c.b16 %v1008, %v1000
  %v1449 = vpack.c.b16 %v1009, %v1001
  %v1450 = vpack.c.b16 %v1010, %v1002
  %v1451 = vpack.c.b16 %v1011, %v1003
  %v1452 = vpack.c.b16 %v1012, %v1004
  %v1453 = vpack.c.b16 %v1013, %v1005
  %v1454 = vpack.c.b16 %v1022, %v1014
  %v1455 = vpack.c.b16 %v1023, %v1015
  %v1456 = vpack.c.b16 %v1024, %v1016
  %v1457 = vpack.c.b16 %v1025, %v1017
  %v1458 = vpack.c.b16 %v1026, %v1018
  %v1459 = vpack.c.b16 %v1027, %v1019
  %v1460 = vpack.c.b16 %v1028, %v1020
  %v1461 = vpack.c.b16 %v1029, %v1021
  %v1462 = vpack.c.b16 %v1038, %v1030
  %v1463 = vpack.c.b16 %v1039, %v1031
  %v1464 = vpack.c.b16 %v1040, %v1032
  %v1465 = vpack.c.b16 %v1041, %v1033
  %v1466 = vpack.c.b16 %v1042, %v1034
  %v1467 = vpack.c.b16 %v1043, %v1035
  %v1468 = vpack.c.b16 %v1044, %v1036
  %v1469 = vpack.c.b16 %v1045, %v1037
  %v1470 = vpack.c.b16 %v1054, %v1046
  %v1471 = vpack.c.b16 %v1055, %v1047
  %v1472 = vpack.c.b16 %v1056, %v1048
  %v1473 = vpack.c.b16 %v1057, %v1049
  %v1474 = vpack.c.b16 %v1058, %v1050
  %v1475 = vpack.c.b16 %v1059, %v1051
  %v1476 = vpack.c.b16 %v1060, %v1052
  %v1477 = vpack.c.b16 %v1061, %v1053
  %v1478 = vpack.c.b16 %v1070, %v1062
  %v1479 = vpack.c.b16 %v1071, %v1063
  %v1480 = vpack.c.b16 %v1072, %v1064
  %v1481 = vpack.c.b16 %v1073, %v1065
  %v1482 = vpack.c.b16 %v1074, %v1066
  %v1483 = vpack.c.b16 %v1075, %v1067
  %v1484 = vpack.c.b16 %v1076, %v1068
  %v1485 = vpack.c.b16 %v1077, %v1069
  %v1486 = vpack.c.b16 %v1086, %v1078
  %v1487 = vpack.c.b16 %v1087, %v1079
  %v1488 = vpack.c.b16 %v1088, %v1080
  %v1489 = vpack.c.b16 %v1089, %v1081
  %v1490 = vpack.c.b16 %v1090, %v1082
  %v1491 = vpack.c.b16 %v1091, %v1083
  %v1492 = vpack.c.b16 %v1092, %v1084
  %v1493 = vpack.c.b16 %v1093, %v1085
  %v1494 = vpack.c.b16 %v1102, %v1094
  %v1495 = vpack.c.b16 %v1103, %v1095
  %v1496 = vpack.c.b16 %v1104, %v1096
  %v1497 = vpack.c.b16 %v1105, %v1097
  %v1498 = vpack.c.b16 %v1106, %v1098
  %v1499 = vpack.c.b16 %v1107, %v1099
  %v1500 = vpack.c.b16 %v1108, %v1100
  %v1501 = vpack.c.b16 %v1109, %v1101
  %v1502 = vpack.c.b16 %v1118, %v1110
  %v1503 = vpack.c.b16 %v1119, %v1111
  %v1504 = vpack.c.b16 %v1120, %v1112
  %v1505 = vpack.c.b16 %v1121, %v1113
  %v1506 = vpack.c.b16 %v1122, %v1114
  %v1507 = vpack.c.b16 %v1123, %v1115
  %v1508 = vpack.c.b16 %v1124, %v1116
  %v1509 = vpack.c.b16 %v1125, %v1117
  %v1510 = vpack.c.b16 %v1134, %v1126
  %v1511 = vpack.c.b16 %v1135, %v1127
  %v1512 = vpack.c.b16 %v1136, %v1128
  %v1513 = vpack.c.b16 %v1137, %v1129
  %v1514 = vpack.c.b16 %v1138, %v1130
  %v1515 = vpack.c.b16 %v1139, %v1131
  %v1516 = vpack.c.b16 %v1140, %v1132
  %v1517 = vpack.c.b16 %v1141, %v1133
  %v1518 = vpack.c.b16 %v1150, %v1142
  %v1519 = vpack.c.b16 %v1151, %v1143
  %v1520 = vpack.c.b16 %v1152, %v1144
  %v1521 = vpack.c.b16 %v1153, %v1145
  %v1522 = vpack.c.b16 %v1154, %v1146
  %v1523 = vpack.c.b16 %v1155, %v1147
  %v1524 = vpack.c.b16 %v1156, %v1148
  %v1525 = vpack.c.b16 %v1157, %v1149
  %v1526 = vpack.c.b16 %v1166, %v1158
  %v1527 = vpack.c.b16 %v1167, %v1159
  %v1528 = vpack.c.b16 %v1168, %v1160
  %v1529 = vpack.c.b16 %v1169, %v1161
  %v1530 = vpack.c.b16 %v1170, %v1162
  %v1531 = vpack.c.b16 %v1171, %v1163
  %v1532 = vpack.c.b16 %v1172, %v1164
  %v1533 = vpack.c.b16 %v1173, %v1165
  %v1534 = vpack.c.b16 %v1182, %v1174
  %v1535 = vpack.c.b16 %v1183, %v1175
  %v1536 = vpack.c.b16 %v1184, %v1176
  %v1537 = vpack.c.b16 %v1185, %v1177
  %v1538 = vpack.c.b16 %v1186, %v1178
  %v1539 = vpack.c.b16 %v1187, %v1179
  %v1540 = vpack.c.b16 %v1188, %v1180
  %v1541 = vpack.c.b16 %v1189, %v1181
  %v1542 = vpack.c.b16 %v1198, %v1190
  %v1543 = vpack.c.b16 %v1199, %v1191
  %v1544 = vpack.c.b16 %v1200, %v1192
  %v1545 = vpack.c.b16 %v1201, %v1193
  %v1546 = vpack.c.b16 %v1202, %v1194
  %v1547 = vpack.c.b16 %v1203, %v1195
  %v1548 = vpack.c.b16 %v1204, %v1196
  %v1549 = vpack.c.b16 %v1205, %v1197
  %v1550 = vpack.c.b16 %v1214, %v1206
  %v1551 = vpack.c.b16 %v1215, %v1207
  %v1552 = vpack.c.b16 %v1216, %v1208
  %v1553 = vpack.c.b16 %v1217, %v1209
  %v1554 = vpack.c.b16 %v1218, %v1210
  %v1555 = vpack.c.b16 %v1219, %v1211
  %v1556 = vpack.c.b16 %v1220, %v1212
  %v1557 = vpack.c.b16 %v1221, %v1213
  %v1558 = vpack.c.b16 %v1230, %v1222
  %v1559 = vpack.c.b16 %v1231, %v1223
  %v1560 = vpack.c.b16 %v1232, %v1224
  %v1561 = vpack.c.b16 %v1233, %v1225
  %v1562 = vpack.c.b16 %v1234, %v1226
  %v1563 = vpack.c.b16 %v1235, %v1227
  %v1564 = vpack.c.b16 %v1236, %v1228
  %v1565 = vpack.c.b16 %v1237, %v1229
  %v1566 = vpack.c.b16 %v1246, %v1238
  %v1567 = vpack.c.b16 %v1247, %v1239
  %v1568 = vpack.c.b16 %v1248, %v1240
  %v1569 = vpack.c.b16 %v1249, %v1241
  %v1570 = vpack.c.b16 %v1250, %v1242
  %v1571 = vpack.c.b16 %v1251, %v1243
  %v1572 = vpack.c.b16 %v1252, %v1244
  %v1573 = vpack.c.b16 %v1253, %v1245
  %v1574 = vpack.c.b16 %v1262, %v1254
  %v1575 = vpack.c.b16 %v1263, %v1255
  %v1576 = vpack.c.b16 %v1264, %v1256
  %v1577 = vpack.c.b16 %v1265, %v1257
  %v1578 = vpack.c.b16 %v1266, %v1258
  %v1579 = vpack.c.b16 %v1267, %v1259
  %v1580 = vpack.c.b16 %v1268, %v1260
  %v1581 = vpack.c.b16 %v1269, %v1261
  %v1582 = vpack.c.b16 %v1278, %v1270
  %v1583 = vpack.c.b16 %v1279, %v1271
  %v1584 = vpack.c.b16 %v1280, %v1272
  %v1585 = vpack.c.b16 %v1281, %v1273
  %v1586 = vpack.c.b16 %v1282, %v1274
  %v1587 = vpack.c.b16 %v1283, %v1275
  %v1588 = vpack.c.b16 %v1284, %v1276
  %v1589 = vpack.c.b16 %v1285, %v1277
  %v1590 = vpack.c.b16 %v1294, %v1286
  %v1591 = vpack.c.b16 %v1295, %v1287
  %v1592 = vpack.c.b16 %v1296, %v1288
  %v1593 = vpack.c.b16 %v1297, %v1289
  %v1594 = vpack.c.b16 %v1298, %v1290
  %v1595 = vpack.c.b16 %v1299, %v1291
  %v1596 = vpack.c.b16 %v1300, %v1292
  %v1597 = vpack.c.b16 %v1301, %v1293
  %v1598 = vpack.c.b16 %v1310, %v1302
  %v1599 = vpack.c.b16 %v1311, %v1303
  %v1600 = vpack.c.b16 %v1312, %v1304
  %v1601 = vpack.c.b16 %v1313, %v1305
  %v1602 = vpack.c.b16 %v1314, %v1306
  %v1603 = vpack.c.b16 %v1315, %v1307
  %v1604 = vpack.c.b16 %v1316, %v1308
  %v1605 = vpack.c.b16 %v1317, %v1309
  %v1606 = vpack.c.b16 %v1326, %v1318
  %v1607 = vpack.c.b16 %v1327, %v1319
  %v1608 = vpack.c.b16 %v1328, %v1320
  %v1609 = vpack.c.b16 %v1329, %v1321
  %v1610 = vpack.c.b16 %v1330, %v1322
  %v1611 = vpack.c.b16 %v1331, %v1323
  %v1612 = vpack.c.b16 %v1332, %v1324
  %v1613 = vpack.c.b16 %v1333, %v1325
  %v1614 = vpack.c.b16 %v1342, %v1334
  %v1615 = vpack.c.b16 %v1343, %v1335
  %v1616 = vpack.c.b16 %v1344, %v1336
  %v1617 = vpack.c.b16 %v1345, %v1337
  %v1618 = vpack.c.b16 %v1346, %v1338
  %v1619 = vpack.c.b16 %v1347, %v1339
  %v1620 = vpack.c.b16 %v1348, %v1340
  %v1621 = vpack.c.b16 %v1349, %v1341
  %v1622 = vpack.c.b16 %v1358, %v1350
  %v1623 = vpack.c.b16 %v1359, %v1351
  %v1624 = vpack.c.b16 %v1360, %v1352
  %v1625 = vpack.c.b16 %v1361, %v1353
  %v1626 = vpack.c.b16 %v1362, %v1354
  %v1627 = vpack.c.b16 %v1363, %v1355
  %v1628 = vpack.c.b16 %v1364, %v1356
  %v1629 = vpack.c.b16 %v1365, %v1357
  %v1630 = vpack.c.b16 %v1374, %v1366
  %v1631 = vpack.c.b16 %v1375, %v1367
  %v1632 = vpack.c.b16 %v1376, %v1368
  %v1633 = vpack.c.b16 %v1377, %v1369
  %v1634 = vpack.c.b16 %v1378, %v1370
  %v1635 = vpack.c.b16 %v1379, %v1371
  %v1636 = vpack.c.b16 %v1380, %v1372
  %v1637 = vpack.c.b16 %v1381, %v1373
  %1894 = vmatpush.bf16.msra.mxu0 %v1438
  %1895 = vmatpush.bf16.msra.mxu0 %v1430
  %1896 = vmatpush.bf16.msra.mxu0 %v1422
  %1897 = vmatpush.bf16.msra.mxu0 %v1414
  %1898 = vmatpush.bf16.msra.mxu0 %v1406
  %1899 = vmatpush.bf16.msra.mxu0 %v1398
  %1900 = vmatpush.bf16.msra.mxu0 %v1390
  %1901 = vmatpush.bf16.msra.mxu0 %v1382
  %1902 = vmatmul.bf16.gmra.mxu0 %v336
  %v1903 = vpop.f32.mrf.mxu0
  %v1904 = vadd.f32 %v598, %v1903
  %v1905 = vpop.f32.mrf.mxu0
  %v1906 = vadd.f32 %v598, %v1905
  %1907 = vdwg.mxu0
  %1908 = vmatpush.bf16.msra.mxu0 %v1502
  %1909 = vmatpush.bf16.msra.mxu0 %v1494
  %1910 = vmatpush.bf16.msra.mxu0 %v1486
  %1911 = vmatpush.bf16.msra.mxu0 %v1478
  %1912 = vmatpush.bf16.msra.mxu0 %v1470
  %1913 = vmatpush.bf16.msra.mxu0 %v1462
  %1914 = vmatpush.bf16.msra.mxu0 %v1454
  %1915 = vmatpush.bf16.msra.mxu0 %v1446
  %1916 = vmatmul.bf16.gmra.mxu0 %v337
  %v1917 = vpop.f32.mrf.mxu0
  %v1918 = vadd.f32 %v1904, %v1917
  %v1919 = vpop.f32.mrf.mxu0
  %v1920 = vadd.f32 %v1906, %v1919
  %1921 = vdwg.mxu0
  %1922 = vmatpush.bf16.msra.mxu0 %v1566
  %1923 = vmatpush.bf16.msra.mxu0 %v1558
  %1924 = vmatpush.bf16.msra.mxu0 %v1550
  %1925 = vmatpush.bf16.msra.mxu0 %v1542
  %1926 = vmatpush.bf16.msra.mxu0 %v1534
  %1927 = vmatpush.bf16.msra.mxu0 %v1526
  %1928 = vmatpush.bf16.msra.mxu0 %v1518
  %1929 = vmatpush.bf16.msra.mxu0 %v1510
  %1930 = vmatmul.bf16.gmra.mxu0 %v338
  %v1931 = vpop.f32.mrf.mxu0
  %v1932 = vadd.f32 %v1918, %v1931
  %v1933 = vpop.f32.mrf.mxu0
  %v1934 = vadd.f32 %v1920, %v1933
  %1935 = vdwg.mxu0
  %1936 = vmatpush.bf16.msra.mxu0 %v1630
  %1937 = vmatpush.bf16.msra.mxu0 %v1622
  %1938 = vmatpush.bf16.msra.mxu0 %v1614
  %1939 = vmatpush.bf16.msra.mxu0 %v1606
  %1940 = vmatpush.bf16.msra.mxu0 %v1598
  %1941 = vmatpush.bf16.msra.mxu0 %v1590
  %1942 = vmatpush.bf16.msra.mxu0 %v1582
  %1943 = vmatpush.bf16.msra.mxu0 %v1574
  %1944 = vmatmul.bf16.gmra.mxu0 %v339
  %v1945 = vpop.f32.mrf.mxu0
  %v1946 = vadd.f32 %v1932, %v1945
  %v1947 = vpop.f32.mrf.mxu0
  %v1948 = vadd.f32 %v1934, %v1947
  %1949 = vdwg.mxu0
  %1950 = vmatpush.bf16.msra.mxu0 %v1439
  %1951 = vmatpush.bf16.msra.mxu0 %v1431
  %1952 = vmatpush.bf16.msra.mxu0 %v1423
  %1953 = vmatpush.bf16.msra.mxu0 %v1415
  %1954 = vmatpush.bf16.msra.mxu0 %v1407
  %1955 = vmatpush.bf16.msra.mxu0 %v1399
  %1956 = vmatpush.bf16.msra.mxu0 %v1391
  %1957 = vmatpush.bf16.msra.mxu0 %v1383
  %1958 = vmatmul.bf16.gmra.mxu0 %v336
  %v1959 = vpop.f32.mrf.mxu0
  %v1960 = vadd.f32 %v599, %v1959
  %v1961 = vpop.f32.mrf.mxu0
  %v1962 = vadd.f32 %v599, %v1961
  %1963 = vdwg.mxu0
  %1964 = vmatpush.bf16.msra.mxu0 %v1503
  %1965 = vmatpush.bf16.msra.mxu0 %v1495
  %1966 = vmatpush.bf16.msra.mxu0 %v1487
  %1967 = vmatpush.bf16.msra.mxu0 %v1479
  %1968 = vmatpush.bf16.msra.mxu0 %v1471
  %1969 = vmatpush.bf16.msra.mxu0 %v1463
  %1970 = vmatpush.bf16.msra.mxu0 %v1455
  %1971 = vmatpush.bf16.msra.mxu0 %v1447
  %1972 = vmatmul.bf16.gmra.mxu0 %v337
  %v1973 = vpop.f32.mrf.mxu0
  %v1974 = vadd.f32 %v1960, %v1973
  %v1975 = vpop.f32.mrf.mxu0
  %v1976 = vadd.f32 %v1962, %v1975
  %1977 = vdwg.mxu0
  %1978 = vmatpush.bf16.msra.mxu0 %v1567
  %1979 = vmatpush.bf16.msra.mxu0 %v1559
  %1980 = vmatpush.bf16.msra.mxu0 %v1551
  %1981 = vmatpush.bf16.msra.mxu0 %v1543
  %1982 = vmatpush.bf16.msra.mxu0 %v1535
  %1983 = vmatpush.bf16.msra.mxu0 %v1527
  %1984 = vmatpush.bf16.msra.mxu0 %v1519
  %1985 = vmatpush.bf16.msra.mxu0 %v1511
  %1986 = vmatmul.bf16.gmra.mxu0 %v338
  %v1987 = vpop.f32.mrf.mxu0
  %v1988 = vadd.f32 %v1974, %v1987
  %v1989 = vpop.f32.mrf.mxu0
  %v1990 = vadd.f32 %v1976, %v1989
  %1991 = vdwg.mxu0
  %1992 = vmatpush.bf16.msra.mxu0 %v1631
  %1993 = vmatpush.bf16.msra.mxu0 %v1623
  %1994 = vmatpush.bf16.msra.mxu0 %v1615
  %1995 = vmatpush.bf16.msra.mxu0 %v1607
  %1996 = vmatpush.bf16.msra.mxu0 %v1599
  %1997 = vmatpush.bf16.msra.mxu0 %v1591
  %1998 = vmatpush.bf16.msra.mxu0 %v1583
  %1999 = vmatpush.bf16.msra.mxu0 %v1575
  %2000 = vmatmul.bf16.gmra.mxu0 %v339
  %v2001 = vpop.f32.mrf.mxu0
  %v2002 = vadd.f32 %v1988, %v2001
  %v2003 = vpop.f32.mrf.mxu0
  %v2004 = vadd.f32 %v1990, %v2003
  %2005 = vdwg.mxu0
  %2006 = vmatpush.bf16.msra.mxu0 %v1440
  %2007 = vmatpush.bf16.msra.mxu0 %v1432
  %2008 = vmatpush.bf16.msra.mxu0 %v1424
  %2009 = vmatpush.bf16.msra.mxu0 %v1416
  %2010 = vmatpush.bf16.msra.mxu0 %v1408
  %2011 = vmatpush.bf16.msra.mxu0 %v1400
  %2012 = vmatpush.bf16.msra.mxu0 %v1392
  %2013 = vmatpush.bf16.msra.mxu0 %v1384
  %2014 = vmatmul.bf16.gmra.mxu0 %v336
  %v2015 = vpop.f32.mrf.mxu0
  %v2016 = vadd.f32 %v600, %v2015
  %v2017 = vpop.f32.mrf.mxu0
  %v2018 = vadd.f32 %v600, %v2017
  %2019 = vdwg.mxu0
  %2020 = vmatpush.bf16.msra.mxu0 %v1504
  %2021 = vmatpush.bf16.msra.mxu0 %v1496
  %2022 = vmatpush.bf16.msra.mxu0 %v1488
  %2023 = vmatpush.bf16.msra.mxu0 %v1480
  %2024 = vmatpush.bf16.msra.mxu0 %v1472
  %2025 = vmatpush.bf16.msra.mxu0 %v1464
  %2026 = vmatpush.bf16.msra.mxu0 %v1456
  %2027 = vmatpush.bf16.msra.mxu0 %v1448
  %2028 = vmatmul.bf16.gmra.mxu0 %v337
  %v2029 = vpop.f32.mrf.mxu0
  %v2030 = vadd.f32 %v2016, %v2029
  %v2031 = vpop.f32.mrf.mxu0
  %v2032 = vadd.f32 %v2018, %v2031
  %2033 = vdwg.mxu0
  %2034 = vmatpush.bf16.msra.mxu0 %v1568
  %2035 = vmatpush.bf16.msra.mxu0 %v1560
  %2036 = vmatpush.bf16.msra.mxu0 %v1552
  %2037 = vmatpush.bf16.msra.mxu0 %v1544
  %2038 = vmatpush.bf16.msra.mxu0 %v1536
  %2039 = vmatpush.bf16.msra.mxu0 %v1528
  %2040 = vmatpush.bf16.msra.mxu0 %v1520
  %2041 = vmatpush.bf16.msra.mxu0 %v1512
  %2042 = vmatmul.bf16.gmra.mxu0 %v338
  %v2043 = vpop.f32.mrf.mxu0
  %v2044 = vadd.f32 %v2030, %v2043
  %v2045 = vpop.f32.mrf.mxu0
  %v2046 = vadd.f32 %v2032, %v2045
  %2047 = vdwg.mxu0
  %2048 = vmatpush.bf16.msra.mxu0 %v1632
  %2049 = vmatpush.bf16.msra.mxu0 %v1624
  %2050 = vmatpush.bf16.msra.mxu0 %v1616
  %2051 = vmatpush.bf16.msra.mxu0 %v1608
  %2052 = vmatpush.bf16.msra.mxu0 %v1600
  %2053 = vmatpush.bf16.msra.mxu0 %v1592
  %2054 = vmatpush.bf16.msra.mxu0 %v1584
  %2055 = vmatpush.bf16.msra.mxu0 %v1576
  %2056 = vmatmul.bf16.gmra.mxu0 %v339
  %v2057 = vpop.f32.mrf.mxu0
  %v2058 = vadd.f32 %v2044, %v2057
  %v2059 = vpop.f32.mrf.mxu0
  %v2060 = vadd.f32 %v2046, %v2059
  %2061 = vdwg.mxu0
  %2062 = vmatpush.bf16.msra.mxu0 %v1441
  %2063 = vmatpush.bf16.msra.mxu0 %v1433
  %2064 = vmatpush.bf16.msra.mxu0 %v1425
  %2065 = vmatpush.bf16.msra.mxu0 %v1417
  %2066 = vmatpush.bf16.msra.mxu0 %v1409
  %2067 = vmatpush.bf16.msra.mxu0 %v1401
  %2068 = vmatpush.bf16.msra.mxu0 %v1393
  %2069 = vmatpush.bf16.msra.mxu0 %v1385
  %2070 = vmatmul.bf16.gmra.mxu0 %v336
  %v2071 = vpop.f32.mrf.mxu0
  %v2072 = vadd.f32 %v601, %v2071
  %v2073 = vpop.f32.mrf.mxu0
  %v2074 = vadd.f32 %v601, %v2073
  %2075 = vdwg.mxu0
  %2076 = vmatpush.bf16.msra.mxu0 %v1505
  %2077 = vmatpush.bf16.msra.mxu0 %v1497
  %2078 = vmatpush.bf16.msra.mxu0 %v1489
  %2079 = vmatpush.bf16.msra.mxu0 %v1481
  %2080 = vmatpush.bf16.msra.mxu0 %v1473
  %2081 = vmatpush.bf16.msra.mxu0 %v1465
  %2082 = vmatpush.bf16.msra.mxu0 %v1457
  %2083 = vmatpush.bf16.msra.mxu0 %v1449
  %2084 = vmatmul.bf16.gmra.mxu0 %v337
  %v2085 = vpop.f32.mrf.mxu0
  %v2086 = vadd.f32 %v2072, %v2085
  %v2087 = vpop.f32.mrf.mxu0
  %v2088 = vadd.f32 %v2074, %v2087
  %2089 = vdwg.mxu0
  %2090 = vmatpush.bf16.msra.mxu0 %v1569
  %2091 = vmatpush.bf16.msra.mxu0 %v1561
  %2092 = vmatpush.bf16.msra.mxu0 %v1553
  %2093 = vmatpush.bf16.msra.mxu0 %v1545
  %2094 = vmatpush.bf16.msra.mxu0 %v1537
  %2095 = vmatpush.bf16.msra.mxu0 %v1529
  %2096 = vmatpush.bf16.msra.mxu0 %v1521
  %2097 = vmatpush.bf16.msra.mxu0 %v1513
  %2098 = vmatmul.bf16.gmra.mxu0 %v338
  %v2099 = vpop.f32.mrf.mxu0
  %v2100 = vadd.f32 %v2086, %v2099
  %v2101 = vpop.f32.mrf.mxu0
  %v2102 = vadd.f32 %v2088, %v2101
  %2103 = vdwg.mxu0
  %2104 = vmatpush.bf16.msra.mxu0 %v1633
  %2105 = vmatpush.bf16.msra.mxu0 %v1625
  %2106 = vmatpush.bf16.msra.mxu0 %v1617
  %2107 = vmatpush.bf16.msra.mxu0 %v1609
  %2108 = vmatpush.bf16.msra.mxu0 %v1601
  %2109 = vmatpush.bf16.msra.mxu0 %v1593
  %2110 = vmatpush.bf16.msra.mxu0 %v1585
  %2111 = vmatpush.bf16.msra.mxu0 %v1577
  %2112 = vmatmul.bf16.gmra.mxu0 %v339
  %v2113 = vpop.f32.mrf.mxu0
  %v2114 = vadd.f32 %v2100, %v2113
  %v2115 = vpop.f32.mrf.mxu0
  %v2116 = vadd.f32 %v2102, %v2115
  %2117 = vdwg.mxu0
  %2118 = vmatpush.bf16.msra.mxu0 %v1442
  %2119 = vmatpush.bf16.msra.mxu0 %v1434
  %2120 = vmatpush.bf16.msra.mxu0 %v1426
  %2121 = vmatpush.bf16.msra.mxu0 %v1418
  %2122 = vmatpush.bf16.msra.mxu0 %v1410
  %2123 = vmatpush.bf16.msra.mxu0 %v1402
  %2124 = vmatpush.bf16.msra.mxu0 %v1394
  %2125 = vmatpush.bf16.msra.mxu0 %v1386
  %2126 = vmatmul.bf16.gmra.mxu0 %v336
  %v2127 = vpop.f32.mrf.mxu0
  %v2128 = vadd.f32 %v602, %v2127
  %v2129 = vpop.f32.mrf.mxu0
  %v2130 = vadd.f32 %v602, %v2129
  %2131 = vdwg.mxu0
  %2132 = vmatpush.bf16.msra.mxu0 %v1506
  %2133 = vmatpush.bf16.msra.mxu0 %v1498
  %2134 = vmatpush.bf16.msra.mxu0 %v1490
  %2135 = vmatpush.bf16.msra.mxu0 %v1482
  %2136 = vmatpush.bf16.msra.mxu0 %v1474
  %2137 = vmatpush.bf16.msra.mxu0 %v1466
  %2138 = vmatpush.bf16.msra.mxu0 %v1458
  %2139 = vmatpush.bf16.msra.mxu0 %v1450
  %2140 = vmatmul.bf16.gmra.mxu0 %v337
  %v2141 = vpop.f32.mrf.mxu0
  %v2142 = vadd.f32 %v2128, %v2141
  %v2143 = vpop.f32.mrf.mxu0
  %v2144 = vadd.f32 %v2130, %v2143
  %2145 = vdwg.mxu0
  %2146 = vmatpush.bf16.msra.mxu0 %v1570
  %2147 = vmatpush.bf16.msra.mxu0 %v1562
  %2148 = vmatpush.bf16.msra.mxu0 %v1554
  %2149 = vmatpush.bf16.msra.mxu0 %v1546
  %2150 = vmatpush.bf16.msra.mxu0 %v1538
  %2151 = vmatpush.bf16.msra.mxu0 %v1530
  %2152 = vmatpush.bf16.msra.mxu0 %v1522
  %2153 = vmatpush.bf16.msra.mxu0 %v1514
  %2154 = vmatmul.bf16.gmra.mxu0 %v338
  %v2155 = vpop.f32.mrf.mxu0
  %v2156 = vadd.f32 %v2142, %v2155
  %v2157 = vpop.f32.mrf.mxu0
  %v2158 = vadd.f32 %v2144, %v2157
  %2159 = vdwg.mxu0
  %2160 = vmatpush.bf16.msra.mxu0 %v1634
  %2161 = vmatpush.bf16.msra.mxu0 %v1626
  %2162 = vmatpush.bf16.msra.mxu0 %v1618
  %2163 = vmatpush.bf16.msra.mxu0 %v1610
  %2164 = vmatpush.bf16.msra.mxu0 %v1602
  %2165 = vmatpush.bf16.msra.mxu0 %v1594
  %2166 = vmatpush.bf16.msra.mxu0 %v1586
  %2167 = vmatpush.bf16.msra.mxu0 %v1578
  %2168 = vmatmul.bf16.gmra.mxu0 %v339
  %v2169 = vpop.f32.mrf.mxu0
  %v2170 = vadd.f32 %v2156, %v2169
  %v2171 = vpop.f32.mrf.mxu0
  %v2172 = vadd.f32 %v2158, %v2171
  %2173 = vdwg.mxu0
  %2174 = vmatpush.bf16.msra.mxu0 %v1443
  %2175 = vmatpush.bf16.msra.mxu0 %v1435
  %2176 = vmatpush.bf16.msra.mxu0 %v1427
  %2177 = vmatpush.bf16.msra.mxu0 %v1419
  %2178 = vmatpush.bf16.msra.mxu0 %v1411
  %2179 = vmatpush.bf16.msra.mxu0 %v1403
  %2180 = vmatpush.bf16.msra.mxu0 %v1395
  %2181 = vmatpush.bf16.msra.mxu0 %v1387
  %2182 = vmatmul.bf16.gmra.mxu0 %v336
  %v2183 = vpop.f32.mrf.mxu0
  %v2184 = vadd.f32 %v603, %v2183
  %v2185 = vpop.f32.mrf.mxu0
  %v2186 = vadd.f32 %v603, %v2185
  %2187 = vdwg.mxu0
  %2188 = vmatpush.bf16.msra.mxu0 %v1507
  %2189 = vmatpush.bf16.msra.mxu0 %v1499
  %2190 = vmatpush.bf16.msra.mxu0 %v1491
  %2191 = vmatpush.bf16.msra.mxu0 %v1483
  %2192 = vmatpush.bf16.msra.mxu0 %v1475
  %2193 = vmatpush.bf16.msra.mxu0 %v1467
  %2194 = vmatpush.bf16.msra.mxu0 %v1459
  %2195 = vmatpush.bf16.msra.mxu0 %v1451
  %2196 = vmatmul.bf16.gmra.mxu0 %v337
  %v2197 = vpop.f32.mrf.mxu0
  %v2198 = vadd.f32 %v2184, %v2197
  %v2199 = vpop.f32.mrf.mxu0
  %v2200 = vadd.f32 %v2186, %v2199
  %2201 = vdwg.mxu0
  %2202 = vmatpush.bf16.msra.mxu0 %v1571
  %2203 = vmatpush.bf16.msra.mxu0 %v1563
  %2204 = vmatpush.bf16.msra.mxu0 %v1555
  %2205 = vmatpush.bf16.msra.mxu0 %v1547
  %2206 = vmatpush.bf16.msra.mxu0 %v1539
  %2207 = vmatpush.bf16.msra.mxu0 %v1531
  %2208 = vmatpush.bf16.msra.mxu0 %v1523
  %2209 = vmatpush.bf16.msra.mxu0 %v1515
  %2210 = vmatmul.bf16.gmra.mxu0 %v338
  %v2211 = vpop.f32.mrf.mxu0
  %v2212 = vadd.f32 %v2198, %v2211
  %v2213 = vpop.f32.mrf.mxu0
  %v2214 = vadd.f32 %v2200, %v2213
  %2215 = vdwg.mxu0
  %2216 = vmatpush.bf16.msra.mxu0 %v1635
  %2217 = vmatpush.bf16.msra.mxu0 %v1627
  %2218 = vmatpush.bf16.msra.mxu0 %v1619
  %2219 = vmatpush.bf16.msra.mxu0 %v1611
  %2220 = vmatpush.bf16.msra.mxu0 %v1603
  %2221 = vmatpush.bf16.msra.mxu0 %v1595
  %2222 = vmatpush.bf16.msra.mxu0 %v1587
  %2223 = vmatpush.bf16.msra.mxu0 %v1579
  %2224 = vmatmul.bf16.gmra.mxu0 %v339
  %v2225 = vpop.f32.mrf.mxu0
  %v2226 = vadd.f32 %v2212, %v2225
  %v2227 = vpop.f32.mrf.mxu0
  %v2228 = vadd.f32 %v2214, %v2227
  %2229 = vdwg.mxu0
  %2230 = vmatpush.bf16.msra.mxu0 %v1444
  %2231 = vmatpush.bf16.msra.mxu0 %v1436
  %2232 = vmatpush.bf16.msra.mxu0 %v1428
  %2233 = vmatpush.bf16.msra.mxu0 %v1420
  %2234 = vmatpush.bf16.msra.mxu0 %v1412
  %2235 = vmatpush.bf16.msra.mxu0 %v1404
  %2236 = vmatpush.bf16.msra.mxu0 %v1396
  %2237 = vmatpush.bf16.msra.mxu0 %v1388
  %2238 = vmatmul.bf16.gmra.mxu0 %v336
  %v2239 = vpop.f32.mrf.mxu0
  %v2240 = vadd.f32 %v604, %v2239
  %v2241 = vpop.f32.mrf.mxu0
  %v2242 = vadd.f32 %v604, %v2241
  %2243 = vdwg.mxu0
  %2244 = vmatpush.bf16.msra.mxu0 %v1508
  %2245 = vmatpush.bf16.msra.mxu0 %v1500
  %2246 = vmatpush.bf16.msra.mxu0 %v1492
  %2247 = vmatpush.bf16.msra.mxu0 %v1484
  %2248 = vmatpush.bf16.msra.mxu0 %v1476
  %2249 = vmatpush.bf16.msra.mxu0 %v1468
  %2250 = vmatpush.bf16.msra.mxu0 %v1460
  %2251 = vmatpush.bf16.msra.mxu0 %v1452
  %2252 = vmatmul.bf16.gmra.mxu0 %v337
  %v2253 = vpop.f32.mrf.mxu0
  %v2254 = vadd.f32 %v2240, %v2253
  %v2255 = vpop.f32.mrf.mxu0
  %v2256 = vadd.f32 %v2242, %v2255
  %2257 = vdwg.mxu0
  %2258 = vmatpush.bf16.msra.mxu0 %v1572
  %2259 = vmatpush.bf16.msra.mxu0 %v1564
  %2260 = vmatpush.bf16.msra.mxu0 %v1556
  %2261 = vmatpush.bf16.msra.mxu0 %v1548
  %2262 = vmatpush.bf16.msra.mxu0 %v1540
  %2263 = vmatpush.bf16.msra.mxu0 %v1532
  %2264 = vmatpush.bf16.msra.mxu0 %v1524
  %2265 = vmatpush.bf16.msra.mxu0 %v1516
  %2266 = vmatmul.bf16.gmra.mxu0 %v338
  %v2267 = vpop.f32.mrf.mxu0
  %v2268 = vadd.f32 %v2254, %v2267
  %v2269 = vpop.f32.mrf.mxu0
  %v2270 = vadd.f32 %v2256, %v2269
  %2271 = vdwg.mxu0
  %2272 = vmatpush.bf16.msra.mxu0 %v1636
  %2273 = vmatpush.bf16.msra.mxu0 %v1628
  %2274 = vmatpush.bf16.msra.mxu0 %v1620
  %2275 = vmatpush.bf16.msra.mxu0 %v1612
  %2276 = vmatpush.bf16.msra.mxu0 %v1604
  %2277 = vmatpush.bf16.msra.mxu0 %v1596
  %2278 = vmatpush.bf16.msra.mxu0 %v1588
  %2279 = vmatpush.bf16.msra.mxu0 %v1580
  %2280 = vmatmul.bf16.gmra.mxu0 %v339
  %v2281 = vpop.f32.mrf.mxu0
  %v2282 = vadd.f32 %v2268, %v2281
  %v2283 = vpop.f32.mrf.mxu0
  %v2284 = vadd.f32 %v2270, %v2283
  %2285 = vdwg.mxu0
  %2286 = vmatpush.bf16.msra.mxu0 %v1445
  %2287 = vmatpush.bf16.msra.mxu0 %v1437
  %2288 = vmatpush.bf16.msra.mxu0 %v1429
  %2289 = vmatpush.bf16.msra.mxu0 %v1421
  %2290 = vmatpush.bf16.msra.mxu0 %v1413
  %2291 = vmatpush.bf16.msra.mxu0 %v1405
  %2292 = vmatpush.bf16.msra.mxu0 %v1397
  %2293 = vmatpush.bf16.msra.mxu0 %v1389
  %2294 = vmatmul.bf16.gmra.mxu0 %v336
  %v2295 = vpop.f32.mrf.mxu0
  %v2296 = vadd.f32 %v605, %v2295
  %v2297 = vpop.f32.mrf.mxu0
  %v2298 = vadd.f32 %v605, %v2297
  %2299 = vdwg.mxu0
  %2300 = vmatpush.bf16.msra.mxu0 %v1509
  %2301 = vmatpush.bf16.msra.mxu0 %v1501
  %2302 = vmatpush.bf16.msra.mxu0 %v1493
  %2303 = vmatpush.bf16.msra.mxu0 %v1485
  %2304 = vmatpush.bf16.msra.mxu0 %v1477
  %2305 = vmatpush.bf16.msra.mxu0 %v1469
  %2306 = vmatpush.bf16.msra.mxu0 %v1461
  %2307 = vmatpush.bf16.msra.mxu0 %v1453
  %2308 = vmatmul.bf16.gmra.mxu0 %v337
  %v2309 = vpop.f32.mrf.mxu0
  %v2310 = vadd.f32 %v2296, %v2309
  %v2311 = vpop.f32.mrf.mxu0
  %v2312 = vadd.f32 %v2298, %v2311
  %2313 = vdwg.mxu0
  %2314 = vmatpush.bf16.msra.mxu0 %v1573
  %2315 = vmatpush.bf16.msra.mxu0 %v1565
  %2316 = vmatpush.bf16.msra.mxu0 %v1557
  %2317 = vmatpush.bf16.msra.mxu0 %v1549
  %2318 = vmatpush.bf16.msra.mxu0 %v1541
  %2319 = vmatpush.bf16.msra.mxu0 %v1533
  %2320 = vmatpush.bf16.msra.mxu0 %v1525
  %2321 = vmatpush.bf16.msra.mxu0 %v1517
  %2322 = vmatmul.bf16.gmra.mxu0 %v338
  %v2323 = vpop.f32.mrf.mxu0
  %v2324 = vadd.f32 %v2310, %v2323
  %v2325 = vpop.f32.mrf.mxu0
  %v2326 = vadd.f32 %v2312, %v2325
  %2327 = vdwg.mxu0
  %2328 = vmatpush.bf16.msra.mxu0 %v1637
  %2329 = vmatpush.bf16.msra.mxu0 %v1629
  %2330 = vmatpush.bf16.msra.mxu0 %v1621
  %2331 = vmatpush.bf16.msra.mxu0 %v1613
  %2332 = vmatpush.bf16.msra.mxu0 %v1605
  %2333 = vmatpush.bf16.msra.mxu0 %v1597
  %2334 = vmatpush.bf16.msra.mxu0 %v1589
  %2335 = vmatpush.bf16.msra.mxu0 %v1581
  %2336 = vmatmul.bf16.gmra.mxu0 %v339
  %v2337 = vpop.f32.mrf.mxu0
  %v2338 = vadd.f32 %v2324, %v2337
  %v2339 = vpop.f32.mrf.mxu0
  %v2340 = vadd.f32 %v2326, %v2339
  %2341 = vdwg.mxu0
  %v2342 = vpack.c.bf16 %v2002, %v1946
  %v2343 = vpack.c.bf16 %v2114, %v2058
  %v2344 = vpack.c.bf16 %v2226, %v2170
  %v2345 = vpack.c.bf16 %v2338, %v2282
  %v2346 = vpack.c.bf16 %v2004, %v1948
  %v2347 = vpack.c.bf16 %v2116, %v2060
  %v2348 = vpack.c.bf16 %v2228, %v2172
  %v2349 = vpack.c.bf16 %v2340, %v2284
  %v2350 = vunpack.c.l.bf16 %v2342
  %v2351 = vunpack.c.h.bf16 %v2342
  %v2352 = vunpack.c.l.bf16 %v2343
  %v2353 = vunpack.c.h.bf16 %v2343
  %v2354 = vunpack.c.l.bf16 %v2344
  %v2355 = vunpack.c.h.bf16 %v2344
  %v2356 = vunpack.c.l.bf16 %v2345
  %v2357 = vunpack.c.h.bf16 %v2345
  %v2358 = vunpack.c.l.bf16 %v2346
  %v2359 = vunpack.c.h.bf16 %v2346
  %v2360 = vunpack.c.l.bf16 %v2347
  %v2361 = vunpack.c.h.bf16 %v2347
  %v2362 = vunpack.c.l.bf16 %v2348
  %v2363 = vunpack.c.h.bf16 %v2348
  %v2364 = vunpack.c.l.bf16 %v2349
  %v2365 = vunpack.c.h.bf16 %v2349
  %v2366 = vmax.f32 %v2350, 0.0
  %v2367 = vmax.f32 %v2351, 0.0
  %v2368 = vmax.f32 %v2352, 0.0
  %v2369 = vmax.f32 %v2353, 0.0
  %v2370 = vmax.f32 %v2354, 0.0
  %v2371 = vmax.f32 %v2355, 0.0
  %v2372 = vmax.f32 %v2356, 0.0
  %v2373 = vmax.f32 %v2357, 0.0
  %v2374 = vmax.f32 %v2358, 0.0
  %v2375 = vmax.f32 %v2359, 0.0
  %v2376 = vmax.f32 %v2360, 0.0
  %v2377 = vmax.f32 %v2361, 0.0
  %v2378 = vmax.f32 %v2362, 0.0
  %v2379 = vmax.f32 %v2363, 0.0
  %v2380 = vmax.f32 %v2364, 0.0
  %v2381 = vmax.f32 %v2365, 0.0
  %v2382 = vpack.c.bf16 %v2374, %v2366
  %v2383 = vpack.c.bf16 %v2375, %v2367
  %v2384 = vpack.c.bf16 %v2376, %v2368
  %v2385 = vpack.c.bf16 %v2377, %v2369
  %v2386 = vpack.c.bf16 %v2378, %v2370
  %v2387 = vpack.c.bf16 %v2379, %v2371
  %v2388 = vpack.c.bf16 %v2380, %v2372
  %v2389 = vpack.c.bf16 %v2381, %v2373
  %v2390 = vld [vmem:[%s5] sm:$0xff]
  %v2391 = vld [vmem:[%s5 + $0x8] sm:$0xff]
  %v2392 = vld [vmem:[%s5 + $0x10] sm:$0xff]
  %v2393 = vld [vmem:[%s5 + $0x18] sm:$0xff]
  %v2394 = vld [vmem:[%s5 + $0x20] sm:$0xff]
  %v2395 = vld [vmem:[%s5 + $0x28] sm:$0xff]
  %v2396 = vld [vmem:[%s5 + $0x30] sm:$0xff]
  %v2397 = vld [vmem:[%s5 + $0x38] sm:$0xff]
  %v2398 = vld [vmem:[%s5 + $0x40] sm:$0xff]
  %v2399 = vld [vmem:[%s5 + $0x48] sm:$0xff]
  %v2400 = vld [vmem:[%s5 + $0x50] sm:$0xff]
  %v2401 = vld [vmem:[%s5 + $0x58] sm:$0xff]
  %v2402 = vld [vmem:[%s5 + $0x60] sm:$0xff]
  %v2403 = vld [vmem:[%s5 + $0x68] sm:$0xff]
  %v2404 = vld [vmem:[%s5 + $0x70] sm:$0xff]
  %v2405 = vld [vmem:[%s5 + $0x78] sm:$0xff]
  %v2406 = vld [vmem:[%s5 + $0x80] sm:$0xff]
  %v2407 = vld [vmem:[%s5 + $0x88] sm:$0xff]
  %v2408 = vld [vmem:[%s5 + $0x90] sm:$0xff]
  %v2409 = vld [vmem:[%s5 + $0x98] sm:$0xff]
  %v2410 = vld [vmem:[%s5 + $0xa0] sm:$0xff]
  %v2411 = vld [vmem:[%s5 + $0xa8] sm:$0xff]
  %v2412 = vld [vmem:[%s5 + $0xb0] sm:$0xff]
  %v2413 = vld [vmem:[%s5 + $0xb8] sm:$0xff]
  %v2414 = vld [vmem:[%s5 + $0xc0] sm:$0xff]
  %v2415 = vld [vmem:[%s5 + $0xc8] sm:$0xff]
  %v2416 = vld [vmem:[%s5 + $0xd0] sm:$0xff]
  %v2417 = vld [vmem:[%s5 + $0xd8] sm:$0xff]
  %v2418 = vld [vmem:[%s5 + $0xe0] sm:$0xff]
  %v2419 = vld [vmem:[%s5 + $0xe8] sm:$0xff]
  %v2420 = vld [vmem:[%s5 + $0xf0] sm:$0xff]
  %v2421 = vld [vmem:[%s5 + $0xf8] sm:$0xff]
  %v2422 = vld [vmem:[%s5 + $0x100] sm:$0xff]
  %v2423 = vld [vmem:[%s5 + $0x108] sm:$0xff]
  %v2424 = vld [vmem:[%s5 + $0x110] sm:$0xff]
  %v2425 = vld [vmem:[%s5 + $0x118] sm:$0xff]
  %v2426 = vld [vmem:[%s5 + $0x120] sm:$0xff]
  %v2427 = vld [vmem:[%s5 + $0x128] sm:$0xff]
  %v2428 = vld [vmem:[%s5 + $0x130] sm:$0xff]
  %v2429 = vld [vmem:[%s5 + $0x138] sm:$0xff]
  %v2430 = vld [vmem:[%s5 + $0x140] sm:$0xff]
  %v2431 = vld [vmem:[%s5 + $0x148] sm:$0xff]
  %v2432 = vld [vmem:[%s5 + $0x150] sm:$0xff]
  %v2433 = vld [vmem:[%s5 + $0x158] sm:$0xff]
  %v2434 = vld [vmem:[%s5 + $0x160] sm:$0xff]
  %v2435 = vld [vmem:[%s5 + $0x168] sm:$0xff]
  %v2436 = vld [vmem:[%s5 + $0x170] sm:$0xff]
  %v2437 = vld [vmem:[%s5 + $0x178] sm:$0xff]
  %v2438 = vld [vmem:[%s5 + $0x180] sm:$0xff]
  %v2439 = vld [vmem:[%s5 + $0x188] sm:$0xff]
  %v2440 = vld [vmem:[%s5 + $0x190] sm:$0xff]
  %v2441 = vld [vmem:[%s5 + $0x198] sm:$0xff]
  %v2442 = vld [vmem:[%s5 + $0x1a0] sm:$0xff]
  %v2443 = vld [vmem:[%s5 + $0x1a8] sm:$0xff]
  %v2444 = vld [vmem:[%s5 + $0x1b0] sm:$0xff]
  %v2445 = vld [vmem:[%s5 + $0x1b8] sm:$0xff]
  %v2446 = vld [vmem:[%s5 + $0x1c0] sm:$0xff]
  %v2447 = vld [vmem:[%s5 + $0x1c8] sm:$0xff]
  %v2448 = vld [vmem:[%s5 + $0x1d0] sm:$0xff]
  %v2449 = vld [vmem:[%s5 + $0x1d8] sm:$0xff]
  %v2450 = vld [vmem:[%s5 + $0x1e0] sm:$0xff]
  %v2451 = vld [vmem:[%s5 + $0x1e8] sm:$0xff]
  %v2452 = vld [vmem:[%s5 + $0x1f0] sm:$0xff]
  %v2453 = vld [vmem:[%s5 + $0x1f8] sm:$0xff]
  %v2454 = vld [vmem:[%s5 + $0x200] sm:$0xff]
  %v2455 = vld [vmem:[%s5 + $0x208] sm:$0xff]
  %v2456 = vld [vmem:[%s5 + $0x210] sm:$0xff]
  %v2457 = vld [vmem:[%s5 + $0x218] sm:$0xff]
  %v2458 = vld [vmem:[%s5 + $0x220] sm:$0xff]
  %v2459 = vld [vmem:[%s5 + $0x228] sm:$0xff]
  %v2460 = vld [vmem:[%s5 + $0x230] sm:$0xff]
  %v2461 = vld [vmem:[%s5 + $0x238] sm:$0xff]
  %v2462 = vld [vmem:[%s5 + $0x240] sm:$0xff]
  %v2463 = vld [vmem:[%s5 + $0x248] sm:$0xff]
  %v2464 = vld [vmem:[%s5 + $0x250] sm:$0xff]
  %v2465 = vld [vmem:[%s5 + $0x258] sm:$0xff]
  %v2466 = vld [vmem:[%s5 + $0x260] sm:$0xff]
  %v2467 = vld [vmem:[%s5 + $0x268] sm:$0xff]
  %v2468 = vld [vmem:[%s5 + $0x270] sm:$0xff]
  %v2469 = vld [vmem:[%s5 + $0x278] sm:$0xff]
  %v2470 = vld [vmem:[%s5 + $0x280] sm:$0xff]
  %v2471 = vld [vmem:[%s5 + $0x288] sm:$0xff]
  %v2472 = vld [vmem:[%s5 + $0x290] sm:$0xff]
  %v2473 = vld [vmem:[%s5 + $0x298] sm:$0xff]
  %v2474 = vld [vmem:[%s5 + $0x2a0] sm:$0xff]
  %v2475 = vld [vmem:[%s5 + $0x2a8] sm:$0xff]
  %v2476 = vld [vmem:[%s5 + $0x2b0] sm:$0xff]
  %v2477 = vld [vmem:[%s5 + $0x2b8] sm:$0xff]
  %v2478 = vld [vmem:[%s5 + $0x2c0] sm:$0xff]
  %v2479 = vld [vmem:[%s5 + $0x2c8] sm:$0xff]
  %v2480 = vld [vmem:[%s5 + $0x2d0] sm:$0xff]
  %v2481 = vld [vmem:[%s5 + $0x2d8] sm:$0xff]
  %v2482 = vld [vmem:[%s5 + $0x2e0] sm:$0xff]
  %v2483 = vld [vmem:[%s5 + $0x2e8] sm:$0xff]
  %v2484 = vld [vmem:[%s5 + $0x2f0] sm:$0xff]
  %v2485 = vld [vmem:[%s5 + $0x2f8] sm:$0xff]
  %v2486 = vld [vmem:[%s5 + $0x300] sm:$0xff]
  %v2487 = vld [vmem:[%s5 + $0x308] sm:$0xff]
  %v2488 = vld [vmem:[%s5 + $0x310] sm:$0xff]
  %v2489 = vld [vmem:[%s5 + $0x318] sm:$0xff]
  %v2490 = vld [vmem:[%s5 + $0x320] sm:$0xff]
  %v2491 = vld [vmem:[%s5 + $0x328] sm:$0xff]
  %v2492 = vld [vmem:[%s5 + $0x330] sm:$0xff]
  %v2493 = vld [vmem:[%s5 + $0x338] sm:$0xff]
  %v2494 = vld [vmem:[%s5 + $0x340] sm:$0xff]
  %v2495 = vld [vmem:[%s5 + $0x348] sm:$0xff]
  %v2496 = vld [vmem:[%s5 + $0x350] sm:$0xff]
  %v2497 = vld [vmem:[%s5 + $0x358] sm:$0xff]
  %v2498 = vld [vmem:[%s5 + $0x360] sm:$0xff]
  %v2499 = vld [vmem:[%s5 + $0x368] sm:$0xff]
  %v2500 = vld [vmem:[%s5 + $0x370] sm:$0xff]
  %v2501 = vld [vmem:[%s5 + $0x378] sm:$0xff]
  %v2502 = vld [vmem:[%s5 + $0x380] sm:$0xff]
  %v2503 = vld [vmem:[%s5 + $0x388] sm:$0xff]
  %v2504 = vld [vmem:[%s5 + $0x390] sm:$0xff]
  %v2505 = vld [vmem:[%s5 + $0x398] sm:$0xff]
  %v2506 = vld [vmem:[%s5 + $0x3a0] sm:$0xff]
  %v2507 = vld [vmem:[%s5 + $0x3a8] sm:$0xff]
  %v2508 = vld [vmem:[%s5 + $0x3b0] sm:$0xff]
  %v2509 = vld [vmem:[%s5 + $0x3b8] sm:$0xff]
  %v2510 = vld [vmem:[%s5 + $0x3c0] sm:$0xff]
  %v2511 = vld [vmem:[%s5 + $0x3c8] sm:$0xff]
  %v2512 = vld [vmem:[%s5 + $0x3d0] sm:$0xff]
  %v2513 = vld [vmem:[%s5 + $0x3d8] sm:$0xff]
  %v2514 = vld [vmem:[%s5 + $0x3e0] sm:$0xff]
  %v2515 = vld [vmem:[%s5 + $0x3e8] sm:$0xff]
  %v2516 = vld [vmem:[%s5 + $0x3f0] sm:$0xff]
  %v2517 = vld [vmem:[%s5 + $0x3f8] sm:$0xff]
  %v2518 = vld [vmem:[%s5 + $0x400] sm:$0xff]
  %v2519 = vld [vmem:[%s5 + $0x408] sm:$0xff]
  %v2520 = vld [vmem:[%s5 + $0x410] sm:$0xff]
  %v2521 = vld [vmem:[%s5 + $0x418] sm:$0xff]
  %v2522 = vld [vmem:[%s5 + $0x420] sm:$0xff]
  %v2523 = vld [vmem:[%s5 + $0x428] sm:$0xff]
  %v2524 = vld [vmem:[%s5 + $0x430] sm:$0xff]
  %v2525 = vld [vmem:[%s5 + $0x438] sm:$0xff]
  %v2526 = vld [vmem:[%s5 + $0x440] sm:$0xff]
  %v2527 = vld [vmem:[%s5 + $0x448] sm:$0xff]
  %v2528 = vld [vmem:[%s5 + $0x450] sm:$0xff]
  %v2529 = vld [vmem:[%s5 + $0x458] sm:$0xff]
  %v2530 = vld [vmem:[%s5 + $0x460] sm:$0xff]
  %v2531 = vld [vmem:[%s5 + $0x468] sm:$0xff]
  %v2532 = vld [vmem:[%s5 + $0x470] sm:$0xff]
  %v2533 = vld [vmem:[%s5 + $0x478] sm:$0xff]
  %v2534 = vld [vmem:[%s5 + $0x480] sm:$0xff]
  %v2535 = vld [vmem:[%s5 + $0x488] sm:$0xff]
  %v2536 = vld [vmem:[%s5 + $0x490] sm:$0xff]
  %v2537 = vld [vmem:[%s5 + $0x498] sm:$0xff]
  %v2538 = vld [vmem:[%s5 + $0x4a0] sm:$0xff]
  %v2539 = vld [vmem:[%s5 + $0x4a8] sm:$0xff]
  %v2540 = vld [vmem:[%s5 + $0x4b0] sm:$0xff]
  %v2541 = vld [vmem:[%s5 + $0x4b8] sm:$0xff]
  %v2542 = vld [vmem:[%s5 + $0x4c0] sm:$0xff]
  %v2543 = vld [vmem:[%s5 + $0x4c8] sm:$0xff]
  %v2544 = vld [vmem:[%s5 + $0x4d0] sm:$0xff]
  %v2545 = vld [vmem:[%s5 + $0x4d8] sm:$0xff]
  %v2546 = vld [vmem:[%s5 + $0x4e0] sm:$0xff]
  %v2547 = vld [vmem:[%s5 + $0x4e8] sm:$0xff]
  %v2548 = vld [vmem:[%s5 + $0x4f0] sm:$0xff]
  %v2549 = vld [vmem:[%s5 + $0x4f8] sm:$0xff]
  %v2550 = vld [vmem:[%s5 + $0x500] sm:$0xff]
  %v2551 = vld [vmem:[%s5 + $0x508] sm:$0xff]
  %v2552 = vld [vmem:[%s5 + $0x510] sm:$0xff]
  %v2553 = vld [vmem:[%s5 + $0x518] sm:$0xff]
  %v2554 = vld [vmem:[%s5 + $0x520] sm:$0xff]
  %v2555 = vld [vmem:[%s5 + $0x528] sm:$0xff]
  %v2556 = vld [vmem:[%s5 + $0x530] sm:$0xff]
  %v2557 = vld [vmem:[%s5 + $0x538] sm:$0xff]
  %v2558 = vld [vmem:[%s5 + $0x540] sm:$0xff]
  %v2559 = vld [vmem:[%s5 + $0x548] sm:$0xff]
  %v2560 = vld [vmem:[%s5 + $0x550] sm:$0xff]
  %v2561 = vld [vmem:[%s5 + $0x558] sm:$0xff]
  %v2562 = vld [vmem:[%s5 + $0x560] sm:$0xff]
  %v2563 = vld [vmem:[%s5 + $0x568] sm:$0xff]
  %v2564 = vld [vmem:[%s5 + $0x570] sm:$0xff]
  %v2565 = vld [vmem:[%s5 + $0x578] sm:$0xff]
  %v2566 = vld [vmem:[%s5 + $0x580] sm:$0xff]
  %v2567 = vld [vmem:[%s5 + $0x588] sm:$0xff]
  %v2568 = vld [vmem:[%s5 + $0x590] sm:$0xff]
  %v2569 = vld [vmem:[%s5 + $0x598] sm:$0xff]
  %v2570 = vld [vmem:[%s5 + $0x5a0] sm:$0xff]
  %v2571 = vld [vmem:[%s5 + $0x5a8] sm:$0xff]
  %v2572 = vld [vmem:[%s5 + $0x5b0] sm:$0xff]
  %v2573 = vld [vmem:[%s5 + $0x5b8] sm:$0xff]
  %v2574 = vld [vmem:[%s5 + $0x5c0] sm:$0xff]
  %v2575 = vld [vmem:[%s5 + $0x5c8] sm:$0xff]
  %v2576 = vld [vmem:[%s5 + $0x5d0] sm:$0xff]
  %v2577 = vld [vmem:[%s5 + $0x5d8] sm:$0xff]
  %v2578 = vld [vmem:[%s5 + $0x5e0] sm:$0xff]
  %v2579 = vld [vmem:[%s5 + $0x5e8] sm:$0xff]
  %v2580 = vld [vmem:[%s5 + $0x5f0] sm:$0xff]
  %v2581 = vld [vmem:[%s5 + $0x5f8] sm:$0xff]
  %v2582 = vld [vmem:[%s5 + $0x600] sm:$0xff]
  %v2583 = vld [vmem:[%s5 + $0x608] sm:$0xff]
  %v2584 = vld [vmem:[%s5 + $0x610] sm:$0xff]
  %v2585 = vld [vmem:[%s5 + $0x618] sm:$0xff]
  %v2586 = vld [vmem:[%s5 + $0x620] sm:$0xff]
  %v2587 = vld [vmem:[%s5 + $0x628] sm:$0xff]
  %v2588 = vld [vmem:[%s5 + $0x630] sm:$0xff]
  %v2589 = vld [vmem:[%s5 + $0x638] sm:$0xff]
  %v2590 = vld [vmem:[%s5 + $0x640] sm:$0xff]
  %v2591 = vld [vmem:[%s5 + $0x648] sm:$0xff]
  %v2592 = vld [vmem:[%s5 + $0x650] sm:$0xff]
  %v2593 = vld [vmem:[%s5 + $0x658] sm:$0xff]
  %v2594 = vld [vmem:[%s5 + $0x660] sm:$0xff]
  %v2595 = vld [vmem:[%s5 + $0x668] sm:$0xff]
  %v2596 = vld [vmem:[%s5 + $0x670] sm:$0xff]
  %v2597 = vld [vmem:[%s5 + $0x678] sm:$0xff]
  %v2598 = vld [vmem:[%s5 + $0x680] sm:$0xff]
  %v2599 = vld [vmem:[%s5 + $0x688] sm:$0xff]
  %v2600 = vld [vmem:[%s5 + $0x690] sm:$0xff]
  %v2601 = vld [vmem:[%s5 + $0x698] sm:$0xff]
  %v2602 = vld [vmem:[%s5 + $0x6a0] sm:$0xff]
  %v2603 = vld [vmem:[%s5 + $0x6a8] sm:$0xff]
  %v2604 = vld [vmem:[%s5 + $0x6b0] sm:$0xff]
  %v2605 = vld [vmem:[%s5 + $0x6b8] sm:$0xff]
  %v2606 = vld [vmem:[%s5 + $0x6c0] sm:$0xff]
  %v2607 = vld [vmem:[%s5 + $0x6c8] sm:$0xff]
  %v2608 = vld [vmem:[%s5 + $0x6d0] sm:$0xff]
  %v2609 = vld [vmem:[%s5 + $0x6d8] sm:$0xff]
  %v2610 = vld [vmem:[%s5 + $0x6e0] sm:$0xff]
  %v2611 = vld [vmem:[%s5 + $0x6e8] sm:$0xff]
  %v2612 = vld [vmem:[%s5 + $0x6f0] sm:$0xff]
  %v2613 = vld [vmem:[%s5 + $0x6f8] sm:$0xff]
  %v2614 = vld [vmem:[%s5 + $0x700] sm:$0xff]
  %v2615 = vld [vmem:[%s5 + $0x708] sm:$0xff]
  %v2616 = vld [vmem:[%s5 + $0x710] sm:$0xff]
  %v2617 = vld [vmem:[%s5 + $0x718] sm:$0xff]
  %v2618 = vld [vmem:[%s5 + $0x720] sm:$0xff]
  %v2619 = vld [vmem:[%s5 + $0x728] sm:$0xff]
  %v2620 = vld [vmem:[%s5 + $0x730] sm:$0xff]
  %v2621 = vld [vmem:[%s5 + $0x738] sm:$0xff]
  %v2622 = vld [vmem:[%s5 + $0x740] sm:$0xff]
  %v2623 = vld [vmem:[%s5 + $0x748] sm:$0xff]
  %v2624 = vld [vmem:[%s5 + $0x750] sm:$0xff]
  %v2625 = vld [vmem:[%s5 + $0x758] sm:$0xff]
  %v2626 = vld [vmem:[%s5 + $0x760] sm:$0xff]
  %v2627 = vld [vmem:[%s5 + $0x768] sm:$0xff]
  %v2628 = vld [vmem:[%s5 + $0x770] sm:$0xff]
  %v2629 = vld [vmem:[%s5 + $0x778] sm:$0xff]
  %v2630 = vld [vmem:[%s5 + $0x780] sm:$0xff]
  %v2631 = vld [vmem:[%s5 + $0x788] sm:$0xff]
  %v2632 = vld [vmem:[%s5 + $0x790] sm:$0xff]
  %v2633 = vld [vmem:[%s5 + $0x798] sm:$0xff]
  %v2634 = vld [vmem:[%s5 + $0x7a0] sm:$0xff]
  %v2635 = vld [vmem:[%s5 + $0x7a8] sm:$0xff]
  %v2636 = vld [vmem:[%s5 + $0x7b0] sm:$0xff]
  %v2637 = vld [vmem:[%s5 + $0x7b8] sm:$0xff]
  %v2638 = vld [vmem:[%s5 + $0x7c0] sm:$0xff]
  %v2639 = vld [vmem:[%s5 + $0x7c8] sm:$0xff]
  %v2640 = vld [vmem:[%s5 + $0x7d0] sm:$0xff]
  %v2641 = vld [vmem:[%s5 + $0x7d8] sm:$0xff]
  %v2642 = vld [vmem:[%s5 + $0x7e0] sm:$0xff]
  %v2643 = vld [vmem:[%s5 + $0x7e8] sm:$0xff]
  %v2644 = vld [vmem:[%s5 + $0x7f0] sm:$0xff]
  %v2645 = vld [vmem:[%s5 + $0x7f8] sm:$0xff]
  %v2646 = vld [vmem:[%s6] sm:$0xf]
  %v2648 = vperm.slane %v2646, 0
  %v2649 = vperm.slane %v2646, 1
  %v2650 = vperm.slane %v2646, 2
  %v2651 = vperm.slane %v2646, 3
  %v2912 = vunpack.c.l.b16 %v2390
  %v2913 = vunpack.c.h.b16 %v2390
  %v2914 = vunpack.c.l.b16 %v2391
  %v2915 = vunpack.c.h.b16 %v2391
  %v2916 = vunpack.c.l.b16 %v2392
  %v2917 = vunpack.c.h.b16 %v2392
  %v2918 = vunpack.c.l.b16 %v2393
  %v2919 = vunpack.c.h.b16 %v2393
  %v2920 = vunpack.c.l.b16 %v2394
  %v2921 = vunpack.c.h.b16 %v2394
  %v2922 = vunpack.c.l.b16 %v2395
  %v2923 = vunpack.c.h.b16 %v2395
  %v2924 = vunpack.c.l.b16 %v2396
  %v2925 = vunpack.c.h.b16 %v2396
  %v2926 = vunpack.c.l.b16 %v2397
  %v2927 = vunpack.c.h.b16 %v2397
  %v2928 = vunpack.c.l.b16 %v2398
  %v2929 = vunpack.c.h.b16 %v2398
  %v2930 = vunpack.c.l.b16 %v2399
  %v2931 = vunpack.c.h.b16 %v2399
  %v2932 = vunpack.c.l.b16 %v2400
  %v2933 = vunpack.c.h.b16 %v2400
  %v2934 = vunpack.c.l.b16 %v2401
  %v2935 = vunpack.c.h.b16 %v2401
  %v2936 = vunpack.c.l.b16 %v2402
  %v2937 = vunpack.c.h.b16 %v2402
  %v2938 = vunpack.c.l.b16 %v2403
  %v2939 = vunpack.c.h.b16 %v2403
  %v2940 = vunpack.c.l.b16 %v2404
  %v2941 = vunpack.c.h.b16 %v2404
  %v2942 = vunpack.c.l.b16 %v2405
  %v2943 = vunpack.c.h.b16 %v2405
  %v2944 = vunpack.c.l.b16 %v2406
  %v2945 = vunpack.c.h.b16 %v2406
  %v2946 = vunpack.c.l.b16 %v2407
  %v2947 = vunpack.c.h.b16 %v2407
  %v2948 = vunpack.c.l.b16 %v2408
  %v2949 = vunpack.c.h.b16 %v2408
  %v2950 = vunpack.c.l.b16 %v2409
  %v2951 = vunpack.c.h.b16 %v2409
  %v2952 = vunpack.c.l.b16 %v2410
  %v2953 = vunpack.c.h.b16 %v2410
  %v2954 = vunpack.c.l.b16 %v2411
  %v2955 = vunpack.c.h.b16 %v2411
  %v2956 = vunpack.c.l.b16 %v2412
  %v2957 = vunpack.c.h.b16 %v2412
  %v2958 = vunpack.c.l.b16 %v2413
  %v2959 = vunpack.c.h.b16 %v2413
  %v2960 = vunpack.c.l.b16 %v2414
  %v2961 = vunpack.c.h.b16 %v2414
  %v2962 = vunpack.c.l.b16 %v2415
  %v2963 = vunpack.c.h.b16 %v2415
  %v2964 = vunpack.c.l.b16 %v2416
  %v2965 = vunpack.c.h.b16 %v2416
  %v2966 = vunpack.c.l.b16 %v2417
  %v2967 = vunpack.c.h.b16 %v2417
  %v2968 = vunpack.c.l.b16 %v2418
  %v2969 = vunpack.c.h.b16 %v2418
  %v2970 = vunpack.c.l.b16 %v2419
  %v2971 = vunpack.c.h.b16 %v2419
  %v2972 = vunpack.c.l.b16 %v2420
  %v2973 = vunpack.c.h.b16 %v2420
  %v2974 = vunpack.c.l.b16 %v2421
  %v2975 = vunpack.c.h.b16 %v2421
  %v2976 = vunpack.c.l.b16 %v2422
  %v2977 = vunpack.c.h.b16 %v2422
  %v2978 = vunpack.c.l.b16 %v2423
  %v2979 = vunpack.c.h.b16 %v2423
  %v2980 = vunpack.c.l.b16 %v2424
  %v2981 = vunpack.c.h.b16 %v2424
  %v2982 = vunpack.c.l.b16 %v2425
  %v2983 = vunpack.c.h.b16 %v2425
  %v2984 = vunpack.c.l.b16 %v2426
  %v2985 = vunpack.c.h.b16 %v2426
  %v2986 = vunpack.c.l.b16 %v2427
  %v2987 = vunpack.c.h.b16 %v2427
  %v2988 = vunpack.c.l.b16 %v2428
  %v2989 = vunpack.c.h.b16 %v2428
  %v2990 = vunpack.c.l.b16 %v2429
  %v2991 = vunpack.c.h.b16 %v2429
  %v2992 = vunpack.c.l.b16 %v2430
  %v2993 = vunpack.c.h.b16 %v2430
  %v2994 = vunpack.c.l.b16 %v2431
  %v2995 = vunpack.c.h.b16 %v2431
  %v2996 = vunpack.c.l.b16 %v2432
  %v2997 = vunpack.c.h.b16 %v2432
  %v2998 = vunpack.c.l.b16 %v2433
  %v2999 = vunpack.c.h.b16 %v2433
  %v3000 = vunpack.c.l.b16 %v2434
  %v3001 = vunpack.c.h.b16 %v2434
  %v3002 = vunpack.c.l.b16 %v2435
  %v3003 = vunpack.c.h.b16 %v2435
  %v3004 = vunpack.c.l.b16 %v2436
  %v3005 = vunpack.c.h.b16 %v2436
  %v3006 = vunpack.c.l.b16 %v2437
  %v3007 = vunpack.c.h.b16 %v2437
  %v3008 = vunpack.c.l.b16 %v2438
  %v3009 = vunpack.c.h.b16 %v2438
  %v3010 = vunpack.c.l.b16 %v2439
  %v3011 = vunpack.c.h.b16 %v2439
  %v3012 = vunpack.c.l.b16 %v2440
  %v3013 = vunpack.c.h.b16 %v2440
  %v3014 = vunpack.c.l.b16 %v2441
  %v3015 = vunpack.c.h.b16 %v2441
  %v3016 = vunpack.c.l.b16 %v2442
  %v3017 = vunpack.c.h.b16 %v2442
  %v3018 = vunpack.c.l.b16 %v2443
  %v3019 = vunpack.c.h.b16 %v2443
  %v3020 = vunpack.c.l.b16 %v2444
  %v3021 = vunpack.c.h.b16 %v2444
  %v3022 = vunpack.c.l.b16 %v2445
  %v3023 = vunpack.c.h.b16 %v2445
  %v3024 = vunpack.c.l.b16 %v2446
  %v3025 = vunpack.c.h.b16 %v2446
  %v3026 = vunpack.c.l.b16 %v2447
  %v3027 = vunpack.c.h.b16 %v2447
  %v3028 = vunpack.c.l.b16 %v2448
  %v3029 = vunpack.c.h.b16 %v2448
  %v3030 = vunpack.c.l.b16 %v2449
  %v3031 = vunpack.c.h.b16 %v2449
  %v3032 = vunpack.c.l.b16 %v2450
  %v3033 = vunpack.c.h.b16 %v2450
  %v3034 = vunpack.c.l.b16 %v2451
  %v3035 = vunpack.c.h.b16 %v2451
  %v3036 = vunpack.c.l.b16 %v2452
  %v3037 = vunpack.c.h.b16 %v2452
  %v3038 = vunpack.c.l.b16 %v2453
  %v3039 = vunpack.c.h.b16 %v2453
  %v3040 = vunpack.c.l.b16 %v2454
  %v3041 = vunpack.c.h.b16 %v2454
  %v3042 = vunpack.c.l.b16 %v2455
  %v3043 = vunpack.c.h.b16 %v2455
  %v3044 = vunpack.c.l.b16 %v2456
  %v3045 = vunpack.c.h.b16 %v2456
  %v3046 = vunpack.c.l.b16 %v2457
  %v3047 = vunpack.c.h.b16 %v2457
  %v3048 = vunpack.c.l.b16 %v2458
  %v3049 = vunpack.c.h.b16 %v2458
  %v3050 = vunpack.c.l.b16 %v2459
  %v3051 = vunpack.c.h.b16 %v2459
  %v3052 = vunpack.c.l.b16 %v2460
  %v3053 = vunpack.c.h.b16 %v2460
  %v3054 = vunpack.c.l.b16 %v2461
  %v3055 = vunpack.c.h.b16 %v2461
  %v3056 = vunpack.c.l.b16 %v2462
  %v3057 = vunpack.c.h.b16 %v2462
  %v3058 = vunpack.c.l.b16 %v2463
  %v3059 = vunpack.c.h.b16 %v2463
  %v3060 = vunpack.c.l.b16 %v2464
  %v3061 = vunpack.c.h.b16 %v2464
  %v3062 = vunpack.c.l.b16 %v2465
  %v3063 = vunpack.c.h.b16 %v2465
  %v3064 = vunpack.c.l.b16 %v2466
  %v3065 = vunpack.c.h.b16 %v2466
  %v3066 = vunpack.c.l.b16 %v2467
  %v3067 = vunpack.c.h.b16 %v2467
  %v3068 = vunpack.c.l.b16 %v2468
  %v3069 = vunpack.c.h.b16 %v2468
  %v3070 = vunpack.c.l.b16 %v2469
  %v3071 = vunpack.c.h.b16 %v2469
  %v3072 = vunpack.c.l.b16 %v2470
  %v3073 = vunpack.c.h.b16 %v2470
  %v3074 = vunpack.c.l.b16 %v2471
  %v3075 = vunpack.c.h.b16 %v2471
  %v3076 = vunpack.c.l.b16 %v2472
  %v3077 = vunpack.c.h.b16 %v2472
  %v3078 = vunpack.c.l.b16 %v2473
  %v3079 = vunpack.c.h.b16 %v2473
  %v3080 = vunpack.c.l.b16 %v2474
  %v3081 = vunpack.c.h.b16 %v2474
  %v3082 = vunpack.c.l.b16 %v2475
  %v3083 = vunpack.c.h.b16 %v2475
  %v3084 = vunpack.c.l.b16 %v2476
  %v3085 = vunpack.c.h.b16 %v2476
  %v3086 = vunpack.c.l.b16 %v2477
  %v3087 = vunpack.c.h.b16 %v2477
  %v3088 = vunpack.c.l.b16 %v2478
  %v3089 = vunpack.c.h.b16 %v2478
  %v3090 = vunpack.c.l.b16 %v2479
  %v3091 = vunpack.c.h.b16 %v2479
  %v3092 = vunpack.c.l.b16 %v2480
  %v3093 = vunpack.c.h.b16 %v2480
  %v3094 = vunpack.c.l.b16 %v2481
  %v3095 = vunpack.c.h.b16 %v2481
  %v3096 = vunpack.c.l.b16 %v2482
  %v3097 = vunpack.c.h.b16 %v2482
  %v3098 = vunpack.c.l.b16 %v2483
  %v3099 = vunpack.c.h.b16 %v2483
  %v3100 = vunpack.c.l.b16 %v2484
  %v3101 = vunpack.c.h.b16 %v2484
  %v3102 = vunpack.c.l.b16 %v2485
  %v3103 = vunpack.c.h.b16 %v2485
  %v3104 = vunpack.c.l.b16 %v2486
  %v3105 = vunpack.c.h.b16 %v2486
  %v3106 = vunpack.c.l.b16 %v2487
  %v3107 = vunpack.c.h.b16 %v2487
  %v3108 = vunpack.c.l.b16 %v2488
  %v3109 = vunpack.c.h.b16 %v2488
  %v3110 = vunpack.c.l.b16 %v2489
  %v3111 = vunpack.c.h.b16 %v2489
  %v3112 = vunpack.c.l.b16 %v2490
  %v3113 = vunpack.c.h.b16 %v2490
  %v3114 = vunpack.c.l.b16 %v2491
  %v3115 = vunpack.c.h.b16 %v2491
  %v3116 = vunpack.c.l.b16 %v2492
  %v3117 = vunpack.c.h.b16 %v2492
  %v3118 = vunpack.c.l.b16 %v2493
  %v3119 = vunpack.c.h.b16 %v2493
  %v3120 = vunpack.c.l.b16 %v2494
  %v3121 = vunpack.c.h.b16 %v2494
  %v3122 = vunpack.c.l.b16 %v2495
  %v3123 = vunpack.c.h.b16 %v2495
  %v3124 = vunpack.c.l.b16 %v2496
  %v3125 = vunpack.c.h.b16 %v2496
  %v3126 = vunpack.c.l.b16 %v2497
  %v3127 = vunpack.c.h.b16 %v2497
  %v3128 = vunpack.c.l.b16 %v2498
  %v3129 = vunpack.c.h.b16 %v2498
  %v3130 = vunpack.c.l.b16 %v2499
  %v3131 = vunpack.c.h.b16 %v2499
  %v3132 = vunpack.c.l.b16 %v2500
  %v3133 = vunpack.c.h.b16 %v2500
  %v3134 = vunpack.c.l.b16 %v2501
  %v3135 = vunpack.c.h.b16 %v2501
  %v3136 = vunpack.c.l.b16 %v2502
  %v3137 = vunpack.c.h.b16 %v2502
  %v3138 = vunpack.c.l.b16 %v2503
  %v3139 = vunpack.c.h.b16 %v2503
  %v3140 = vunpack.c.l.b16 %v2504
  %v3141 = vunpack.c.h.b16 %v2504
  %v3142 = vunpack.c.l.b16 %v2505
  %v3143 = vunpack.c.h.b16 %v2505
  %v3144 = vunpack.c.l.b16 %v2506
  %v3145 = vunpack.c.h.b16 %v2506
  %v3146 = vunpack.c.l.b16 %v2507
  %v3147 = vunpack.c.h.b16 %v2507
  %v3148 = vunpack.c.l.b16 %v2508
  %v3149 = vunpack.c.h.b16 %v2508
  %v3150 = vunpack.c.l.b16 %v2509
  %v3151 = vunpack.c.h.b16 %v2509
  %v3152 = vunpack.c.l.b16 %v2510
  %v3153 = vunpack.c.h.b16 %v2510
  %v3154 = vunpack.c.l.b16 %v2511
  %v3155 = vunpack.c.h.b16 %v2511
  %v3156 = vunpack.c.l.b16 %v2512
  %v3157 = vunpack.c.h.b16 %v2512
  %v3158 = vunpack.c.l.b16 %v2513
  %v3159 = vunpack.c.h.b16 %v2513
  %v3160 = vunpack.c.l.b16 %v2514
  %v3161 = vunpack.c.h.b16 %v2514
  %v3162 = vunpack.c.l.b16 %v2515
  %v3163 = vunpack.c.h.b16 %v2515
  %v3164 = vunpack.c.l.b16 %v2516
  %v3165 = vunpack.c.h.b16 %v2516
  %v3166 = vunpack.c.l.b16 %v2517
  %v3167 = vunpack.c.h.b16 %v2517
  %v3168 = vunpack.c.l.b16 %v2518
  %v3169 = vunpack.c.h.b16 %v2518
  %v3170 = vunpack.c.l.b16 %v2519
  %v3171 = vunpack.c.h.b16 %v2519
  %v3172 = vunpack.c.l.b16 %v2520
  %v3173 = vunpack.c.h.b16 %v2520
  %v3174 = vunpack.c.l.b16 %v2521
  %v3175 = vunpack.c.h.b16 %v2521
  %v3176 = vunpack.c.l.b16 %v2522
  %v3177 = vunpack.c.h.b16 %v2522
  %v3178 = vunpack.c.l.b16 %v2523
  %v3179 = vunpack.c.h.b16 %v2523
  %v3180 = vunpack.c.l.b16 %v2524
  %v3181 = vunpack.c.h.b16 %v2524
  %v3182 = vunpack.c.l.b16 %v2525
  %v3183 = vunpack.c.h.b16 %v2525
  %v3184 = vunpack.c.l.b16 %v2526
  %v3185 = vunpack.c.h.b16 %v2526
  %v3186 = vunpack.c.l.b16 %v2527
  %v3187 = vunpack.c.h.b16 %v2527
  %v3188 = vunpack.c.l.b16 %v2528
  %v3189 = vunpack.c.h.b16 %v2528
  %v3190 = vunpack.c.l.b16 %v2529
  %v3191 = vunpack.c.h.b16 %v2529
  %v3192 = vunpack.c.l.b16 %v2530
  %v3193 = vunpack.c.h.b16 %v2530
  %v3194 = vunpack.c.l.b16 %v2531
  %v3195 = vunpack.c.h.b16 %v2531
  %v3196 = vunpack.c.l.b16 %v2532
  %v3197 = vunpack.c.h.b16 %v2532
  %v3198 = vunpack.c.l.b16 %v2533
  %v3199 = vunpack.c.h.b16 %v2533
  %v3200 = vunpack.c.l.b16 %v2534
  %v3201 = vunpack.c.h.b16 %v2534
  %v3202 = vunpack.c.l.b16 %v2535
  %v3203 = vunpack.c.h.b16 %v2535
  %v3204 = vunpack.c.l.b16 %v2536
  %v3205 = vunpack.c.h.b16 %v2536
  %v3206 = vunpack.c.l.b16 %v2537
  %v3207 = vunpack.c.h.b16 %v2537
  %v3208 = vunpack.c.l.b16 %v2538
  %v3209 = vunpack.c.h.b16 %v2538
  %v3210 = vunpack.c.l.b16 %v2539
  %v3211 = vunpack.c.h.b16 %v2539
  %v3212 = vunpack.c.l.b16 %v2540
  %v3213 = vunpack.c.h.b16 %v2540
  %v3214 = vunpack.c.l.b16 %v2541
  %v3215 = vunpack.c.h.b16 %v2541
  %v3216 = vunpack.c.l.b16 %v2542
  %v3217 = vunpack.c.h.b16 %v2542
  %v3218 = vunpack.c.l.b16 %v2543
  %v3219 = vunpack.c.h.b16 %v2543
  %v3220 = vunpack.c.l.b16 %v2544
  %v3221 = vunpack.c.h.b16 %v2544
  %v3222 = vunpack.c.l.b16 %v2545
  %v3223 = vunpack.c.h.b16 %v2545
  %v3224 = vunpack.c.l.b16 %v2546
  %v3225 = vunpack.c.h.b16 %v2546
  %v3226 = vunpack.c.l.b16 %v2547
  %v3227 = vunpack.c.h.b16 %v2547
  %v3228 = vunpack.c.l.b16 %v2548
  %v3229 = vunpack.c.h.b16 %v2548
  %v3230 = vunpack.c.l.b16 %v2549
  %v3231 = vunpack.c.h.b16 %v2549
  %v3232 = vunpack.c.l.b16 %v2550
  %v3233 = vunpack.c.h.b16 %v2550
  %v3234 = vunpack.c.l.b16 %v2551
  %v3235 = vunpack.c.h.b16 %v2551
  %v3236 = vunpack.c.l.b16 %v2552
  %v3237 = vunpack.c.h.b16 %v2552
  %v3238 = vunpack.c.l.b16 %v2553
  %v3239 = vunpack.c.h.b16 %v2553
  %v3240 = vunpack.c.l.b16 %v2554
  %v3241 = vunpack.c.h.b16 %v2554
  %v3242 = vunpack.c.l.b16 %v2555
  %v3243 = vunpack.c.h.b16 %v2555
  %v3244 = vunpack.c.l.b16 %v2556
  %v3245 = vunpack.c.h.b16 %v2556
  %v3246 = vunpack.c.l.b16 %v2557
  %v3247 = vunpack.c.h.b16 %v2557
  %v3248 = vunpack.c.l.b16 %v2558
  %v3249 = vunpack.c.h.b16 %v2558
  %v3250 = vunpack.c.l.b16 %v2559
  %v3251 = vunpack.c.h.b16 %v2559
  %v3252 = vunpack.c.l.b16 %v2560
  %v3253 = vunpack.c.h.b16 %v2560
  %v3254 = vunpack.c.l.b16 %v2561
  %v3255 = vunpack.c.h.b16 %v2561
  %v3256 = vunpack.c.l.b16 %v2562
  %v3257 = vunpack.c.h.b16 %v2562
  %v3258 = vunpack.c.l.b16 %v2563
  %v3259 = vunpack.c.h.b16 %v2563
  %v3260 = vunpack.c.l.b16 %v2564
  %v3261 = vunpack.c.h.b16 %v2564
  %v3262 = vunpack.c.l.b16 %v2565
  %v3263 = vunpack.c.h.b16 %v2565
  %v3264 = vunpack.c.l.b16 %v2566
  %v3265 = vunpack.c.h.b16 %v2566
  %v3266 = vunpack.c.l.b16 %v2567
  %v3267 = vunpack.c.h.b16 %v2567
  %v3268 = vunpack.c.l.b16 %v2568
  %v3269 = vunpack.c.h.b16 %v2568
  %v3270 = vunpack.c.l.b16 %v2569
  %v3271 = vunpack.c.h.b16 %v2569
  %v3272 = vunpack.c.l.b16 %v2570
  %v3273 = vunpack.c.h.b16 %v2570
  %v3274 = vunpack.c.l.b16 %v2571
  %v3275 = vunpack.c.h.b16 %v2571
  %v3276 = vunpack.c.l.b16 %v2572
  %v3277 = vunpack.c.h.b16 %v2572
  %v3278 = vunpack.c.l.b16 %v2573
  %v3279 = vunpack.c.h.b16 %v2573
  %v3280 = vunpack.c.l.b16 %v2574
  %v3281 = vunpack.c.h.b16 %v2574
  %v3282 = vunpack.c.l.b16 %v2575
  %v3283 = vunpack.c.h.b16 %v2575
  %v3284 = vunpack.c.l.b16 %v2576
  %v3285 = vunpack.c.h.b16 %v2576
  %v3286 = vunpack.c.l.b16 %v2577
  %v3287 = vunpack.c.h.b16 %v2577
  %v3288 = vunpack.c.l.b16 %v2578
  %v3289 = vunpack.c.h.b16 %v2578
  %v3290 = vunpack.c.l.b16 %v2579
  %v3291 = vunpack.c.h.b16 %v2579
  %v3292 = vunpack.c.l.b16 %v2580
  %v3293 = vunpack.c.h.b16 %v2580
  %v3294 = vunpack.c.l.b16 %v2581
  %v3295 = vunpack.c.h.b16 %v2581
  %v3296 = vunpack.c.l.b16 %v2582
  %v3297 = vunpack.c.h.b16 %v2582
  %v3298 = vunpack.c.l.b16 %v2583
  %v3299 = vunpack.c.h.b16 %v2583
  %v3300 = vunpack.c.l.b16 %v2584
  %v3301 = vunpack.c.h.b16 %v2584
  %v3302 = vunpack.c.l.b16 %v2585
  %v3303 = vunpack.c.h.b16 %v2585
  %v3304 = vunpack.c.l.b16 %v2586
  %v3305 = vunpack.c.h.b16 %v2586
  %v3306 = vunpack.c.l.b16 %v2587
  %v3307 = vunpack.c.h.b16 %v2587
  %v3308 = vunpack.c.l.b16 %v2588
  %v3309 = vunpack.c.h.b16 %v2588
  %v3310 = vunpack.c.l.b16 %v2589
  %v3311 = vunpack.c.h.b16 %v2589
  %v3312 = vunpack.c.l.b16 %v2590
  %v3313 = vunpack.c.h.b16 %v2590
  %v3314 = vunpack.c.l.b16 %v2591
  %v3315 = vunpack.c.h.b16 %v2591
  %v3316 = vunpack.c.l.b16 %v2592
  %v3317 = vunpack.c.h.b16 %v2592
  %v3318 = vunpack.c.l.b16 %v2593
  %v3319 = vunpack.c.h.b16 %v2593
  %v3320 = vunpack.c.l.b16 %v2594
  %v3321 = vunpack.c.h.b16 %v2594
  %v3322 = vunpack.c.l.b16 %v2595
  %v3323 = vunpack.c.h.b16 %v2595
  %v3324 = vunpack.c.l.b16 %v2596
  %v3325 = vunpack.c.h.b16 %v2596
  %v3326 = vunpack.c.l.b16 %v2597
  %v3327 = vunpack.c.h.b16 %v2597
  %v3328 = vunpack.c.l.b16 %v2598
  %v3329 = vunpack.c.h.b16 %v2598
  %v3330 = vunpack.c.l.b16 %v2599
  %v3331 = vunpack.c.h.b16 %v2599
  %v3332 = vunpack.c.l.b16 %v2600
  %v3333 = vunpack.c.h.b16 %v2600
  %v3334 = vunpack.c.l.b16 %v2601
  %v3335 = vunpack.c.h.b16 %v2601
  %v3336 = vunpack.c.l.b16 %v2602
  %v3337 = vunpack.c.h.b16 %v2602
  %v3338 = vunpack.c.l.b16 %v2603
  %v3339 = vunpack.c.h.b16 %v2603
  %v3340 = vunpack.c.l.b16 %v2604
  %v3341 = vunpack.c.h.b16 %v2604
  %v3342 = vunpack.c.l.b16 %v2605
  %v3343 = vunpack.c.h.b16 %v2605
  %v3344 = vunpack.c.l.b16 %v2606
  %v3345 = vunpack.c.h.b16 %v2606
  %v3346 = vunpack.c.l.b16 %v2607
  %v3347 = vunpack.c.h.b16 %v2607
  %v3348 = vunpack.c.l.b16 %v2608
  %v3349 = vunpack.c.h.b16 %v2608
  %v3350 = vunpack.c.l.b16 %v2609
  %v3351 = vunpack.c.h.b16 %v2609
  %v3352 = vunpack.c.l.b16 %v2610
  %v3353 = vunpack.c.h.b16 %v2610
  %v3354 = vunpack.c.l.b16 %v2611
  %v3355 = vunpack.c.h.b16 %v2611
  %v3356 = vunpack.c.l.b16 %v2612
  %v3357 = vunpack.c.h.b16 %v2612
  %v3358 = vunpack.c.l.b16 %v2613
  %v3359 = vunpack.c.h.b16 %v2613
  %v3360 = vunpack.c.l.b16 %v2614
  %v3361 = vunpack.c.h.b16 %v2614
  %v3362 = vunpack.c.l.b16 %v2615
  %v3363 = vunpack.c.h.b16 %v2615
  %v3364 = vunpack.c.l.b16 %v2616
  %v3365 = vunpack.c.h.b16 %v2616
  %v3366 = vunpack.c.l.b16 %v2617
  %v3367 = vunpack.c.h.b16 %v2617
  %v3368 = vunpack.c.l.b16 %v2618
  %v3369 = vunpack.c.h.b16 %v2618
  %v3370 = vunpack.c.l.b16 %v2619
  %v3371 = vunpack.c.h.b16 %v2619
  %v3372 = vunpack.c.l.b16 %v2620
  %v3373 = vunpack.c.h.b16 %v2620
  %v3374 = vunpack.c.l.b16 %v2621
  %v3375 = vunpack.c.h.b16 %v2621
  %v3376 = vunpack.c.l.b16 %v2622
  %v3377 = vunpack.c.h.b16 %v2622
  %v3378 = vunpack.c.l.b16 %v2623
  %v3379 = vunpack.c.h.b16 %v2623
  %v3380 = vunpack.c.l.b16 %v2624
  %v3381 = vunpack.c.h.b16 %v2624
  %v3382 = vunpack.c.l.b16 %v2625
  %v3383 = vunpack.c.h.b16 %v2625
  %v3384 = vunpack.c.l.b16 %v2626
  %v3385 = vunpack.c.h.b16 %v2626
  %v3386 = vunpack.c.l.b16 %v2627
  %v3387 = vunpack.c.h.b16 %v2627
  %v3388 = vunpack.c.l.b16 %v2628
  %v3389 = vunpack.c.h.b16 %v2628
  %v3390 = vunpack.c.l.b16 %v2629
  %v3391 = vunpack.c.h.b16 %v2629
  %v3392 = vunpack.c.l.b16 %v2630
  %v3393 = vunpack.c.h.b16 %v2630
  %v3394 = vunpack.c.l.b16 %v2631
  %v3395 = vunpack.c.h.b16 %v2631
  %v3396 = vunpack.c.l.b16 %v2632
  %v3397 = vunpack.c.h.b16 %v2632
  %v3398 = vunpack.c.l.b16 %v2633
  %v3399 = vunpack.c.h.b16 %v2633
  %v3400 = vunpack.c.l.b16 %v2634
  %v3401 = vunpack.c.h.b16 %v2634
  %v3402 = vunpack.c.l.b16 %v2635
  %v3403 = vunpack.c.h.b16 %v2635
  %v3404 = vunpack.c.l.b16 %v2636
  %v3405 = vunpack.c.h.b16 %v2636
  %v3406 = vunpack.c.l.b16 %v2637
  %v3407 = vunpack.c.h.b16 %v2637
  %v3408 = vunpack.c.l.b16 %v2638
  %v3409 = vunpack.c.h.b16 %v2638
  %v3410 = vunpack.c.l.b16 %v2639
  %v3411 = vunpack.c.h.b16 %v2639
  %v3412 = vunpack.c.l.b16 %v2640
  %v3413 = vunpack.c.h.b16 %v2640
  %v3414 = vunpack.c.l.b16 %v2641
  %v3415 = vunpack.c.h.b16 %v2641
  %v3416 = vunpack.c.l.b16 %v2642
  %v3417 = vunpack.c.h.b16 %v2642
  %v3418 = vunpack.c.l.b16 %v2643
  %v3419 = vunpack.c.h.b16 %v2643
  %v3420 = vunpack.c.l.b16 %v2644
  %v3421 = vunpack.c.h.b16 %v2644
  %v3422 = vunpack.c.l.b16 %v2645
  %v3423 = vunpack.c.h.b16 %v2645
  %v3424 = vpack.c.b16 %v2916, %v2912
  %v3425 = vpack.c.b16 %v2917, %v2913
  %v3426 = vpack.c.b16 %v2918, %v2914
  %v3427 = vpack.c.b16 %v2919, %v2915
  %v3428 = vpack.c.b16 %v2924, %v2920
  %v3429 = vpack.c.b16 %v2925, %v2921
  %v3430 = vpack.c.b16 %v2926, %v2922
  %v3431 = vpack.c.b16 %v2927, %v2923
  %v3432 = vpack.c.b16 %v2932, %v2928
  %v3433 = vpack.c.b16 %v2933, %v2929
  %v3434 = vpack.c.b16 %v2934, %v2930
  %v3435 = vpack.c.b16 %v2935, %v2931
  %v3436 = vpack.c.b16 %v2940, %v2936
  %v3437 = vpack.c.b16 %v2941, %v2937
  %v3438 = vpack.c.b16 %v2942, %v2938
  %v3439 = vpack.c.b16 %v2943, %v2939
  %v3440 = vpack.c.b16 %v2948, %v2944
  %v3441 = vpack.c.b16 %v2949, %v2945
  %v3442 = vpack.c.b16 %v2950, %v2946
  %v3443 = vpack.c.b16 %v2951, %v2947
  %v3444 = vpack.c.b16 %v2956, %v2952
  %v3445 = vpack.c.b16 %v2957, %v2953
  %v3446 = vpack.c.b16 %v2958, %v2954
  %v3447 = vpack.c.b16 %v2959, %v2955
  %v3448 = vpack.c.b16 %v2964, %v2960
  %v3449 = vpack.c.b16 %v2965, %v2961
  %v3450 = vpack.c.b16 %v2966, %v2962
  %v3451 = vpack.c.b16 %v2967, %v2963
  %v3452 = vpack.c.b16 %v2972, %v2968
  %v3453 = vpack.c.b16 %v2973, %v2969
  %v3454 = vpack.c.b16 %v2974, %v2970
  %v3455 = vpack.c.b16 %v2975, %v2971
  %v3456 = vpack.c.b16 %v2980, %v2976
  %v3457 = vpack.c.b16 %v2981, %v2977
  %v3458 = vpack.c.b16 %v2982, %v2978
  %v3459 = vpack.c.b16 %v2983, %v2979
  %v3460 = vpack.c.b16 %v2988, %v2984
  %v3461 = vpack.c.b16 %v2989, %v2985
  %v3462 = vpack.c.b16 %v2990, %v2986
  %v3463 = vpack.c.b16 %v2991, %v2987
  %v3464 = vpack.c.b16 %v2996, %v2992
  %v3465 = vpack.c.b16 %v2997, %v2993
  %v3466 = vpack.c.b16 %v2998, %v2994
  %v3467 = vpack.c.b16 %v2999, %v2995
  %v3468 = vpack.c.b16 %v3004, %v3000
  %v3469 = vpack.c.b16 %v3005, %v3001
  %v3470 = vpack.c.b16 %v3006, %v3002
  %v3471 = vpack.c.b16 %v3007, %v3003
  %v3472 = vpack.c.b16 %v3012, %v3008
  %v3473 = vpack.c.b16 %v3013, %v3009
  %v3474 = vpack.c.b16 %v3014, %v3010
  %v3475 = vpack.c.b16 %v3015, %v3011
  %v3476 = vpack.c.b16 %v3020, %v3016
  %v3477 = vpack.c.b16 %v3021, %v3017
  %v3478 = vpack.c.b16 %v3022, %v3018
  %v3479 = vpack.c.b16 %v3023, %v3019
  %v3480 = vpack.c.b16 %v3028, %v3024
  %v3481 = vpack.c.b16 %v3029, %v3025
  %v3482 = vpack.c.b16 %v3030, %v3026
  %v3483 = vpack.c.b16 %v3031, %v3027
  %v3484 = vpack.c.b16 %v3036, %v3032
  %v3485 = vpack.c.b16 %v3037, %v3033
  %v3486 = vpack.c.b16 %v3038, %v3034
  %v3487 = vpack.c.b16 %v3039, %v3035
  %v3488 = vpack.c.b16 %v3044, %v3040
  %v3489 = vpack.c.b16 %v3045, %v3041
  %v3490 = vpack.c.b16 %v3046, %v3042
  %v3491 = vpack.c.b16 %v3047, %v3043
  %v3492 = vpack.c.b16 %v3052, %v3048
  %v3493 = vpack.c.b16 %v3053, %v3049
  %v3494 = vpack.c.b16 %v3054, %v3050
  %v3495 = vpack.c.b16 %v3055, %v3051
  %v3496 = vpack.c.b16 %v3060, %v3056
  %v3497 = vpack.c.b16 %v3061, %v3057
  %v3498 = vpack.c.b16 %v3062, %v3058
  %v3499 = vpack.c.b16 %v3063, %v3059
  %v3500 = vpack.c.b16 %v3068, %v3064
  %v3501 = vpack.c.b16 %v3069, %v3065
  %v3502 = vpack.c.b16 %v3070, %v3066
  %v3503 = vpack.c.b16 %v3071, %v3067
  %v3504 = vpack.c.b16 %v3076, %v3072
  %v3505 = vpack.c.b16 %v3077, %v3073
  %v3506 = vpack.c.b16 %v3078, %v3074
  %v3507 = vpack.c.b16 %v3079, %v3075
  %v3508 = vpack.c.b16 %v3084, %v3080
  %v3509 = vpack.c.b16 %v3085, %v3081
  %v3510 = vpack.c.b16 %v3086, %v3082
  %v3511 = vpack.c.b16 %v3087, %v3083
  %v3512 = vpack.c.b16 %v3092, %v3088
  %v3513 = vpack.c.b16 %v3093, %v3089
  %v3514 = vpack.c.b16 %v3094, %v3090
  %v3515 = vpack.c.b16 %v3095, %v3091
  %v3516 = vpack.c.b16 %v3100, %v3096
  %v3517 = vpack.c.b16 %v3101, %v3097
  %v3518 = vpack.c.b16 %v3102, %v3098
  %v3519 = vpack.c.b16 %v3103, %v3099
  %v3520 = vpack.c.b16 %v3108, %v3104
  %v3521 = vpack.c.b16 %v3109, %v3105
  %v3522 = vpack.c.b16 %v3110, %v3106
  %v3523 = vpack.c.b16 %v3111, %v3107
  %v3524 = vpack.c.b16 %v3116, %v3112
  %v3525 = vpack.c.b16 %v3117, %v3113
  %v3526 = vpack.c.b16 %v3118, %v3114
  %v3527 = vpack.c.b16 %v3119, %v3115
  %v3528 = vpack.c.b16 %v3124, %v3120
  %v3529 = vpack.c.b16 %v3125, %v3121
  %v3530 = vpack.c.b16 %v3126, %v3122
  %v3531 = vpack.c.b16 %v3127, %v3123
  %v3532 = vpack.c.b16 %v3132, %v3128
  %v3533 = vpack.c.b16 %v3133, %v3129
  %v3534 = vpack.c.b16 %v3134, %v3130
  %v3535 = vpack.c.b16 %v3135, %v3131
  %v3536 = vpack.c.b16 %v3140, %v3136
  %v3537 = vpack.c.b16 %v3141, %v3137
  %v3538 = vpack.c.b16 %v3142, %v3138
  %v3539 = vpack.c.b16 %v3143, %v3139
  %v3540 = vpack.c.b16 %v3148, %v3144
  %v3541 = vpack.c.b16 %v3149, %v3145
  %v3542 = vpack.c.b16 %v3150, %v3146
  %v3543 = vpack.c.b16 %v3151, %v3147
  %v3544 = vpack.c.b16 %v3156, %v3152
  %v3545 = vpack.c.b16 %v3157, %v3153
  %v3546 = vpack.c.b16 %v3158, %v3154
  %v3547 = vpack.c.b16 %v3159, %v3155
  %v3548 = vpack.c.b16 %v3164, %v3160
  %v3549 = vpack.c.b16 %v3165, %v3161
  %v3550 = vpack.c.b16 %v3166, %v3162
  %v3551 = vpack.c.b16 %v3167, %v3163
  %v3552 = vpack.c.b16 %v3172, %v3168
  %v3553 = vpack.c.b16 %v3173, %v3169
  %v3554 = vpack.c.b16 %v3174, %v3170
  %v3555 = vpack.c.b16 %v3175, %v3171
  %v3556 = vpack.c.b16 %v3180, %v3176
  %v3557 = vpack.c.b16 %v3181, %v3177
  %v3558 = vpack.c.b16 %v3182, %v3178
  %v3559 = vpack.c.b16 %v3183, %v3179
  %v3560 = vpack.c.b16 %v3188, %v3184
  %v3561 = vpack.c.b16 %v3189, %v3185
  %v3562 = vpack.c.b16 %v3190, %v3186
  %v3563 = vpack.c.b16 %v3191, %v3187
  %v3564 = vpack.c.b16 %v3196, %v3192
  %v3565 = vpack.c.b16 %v3197, %v3193
  %v3566 = vpack.c.b16 %v3198, %v3194
  %v3567 = vpack.c.b16 %v3199, %v3195
  %v3568 = vpack.c.b16 %v3204, %v3200
  %v3569 = vpack.c.b16 %v3205, %v3201
  %v3570 = vpack.c.b16 %v3206, %v3202
  %v3571 = vpack.c.b16 %v3207, %v3203
  %v3572 = vpack.c.b16 %v3212, %v3208
  %v3573 = vpack.c.b16 %v3213, %v3209
  %v3574 = vpack.c.b16 %v3214, %v3210
  %v3575 = vpack.c.b16 %v3215, %v3211
  %v3576 = vpack.c.b16 %v3220, %v3216
  %v3577 = vpack.c.b16 %v3221, %v3217
  %v3578 = vpack.c.b16 %v3222, %v3218
  %v3579 = vpack.c.b16 %v3223, %v3219
  %v3580 = vpack.c.b16 %v3228, %v3224
  %v3581 = vpack.c.b16 %v3229, %v3225
  %v3582 = vpack.c.b16 %v3230, %v3226
  %v3583 = vpack.c.b16 %v3231, %v3227
  %v3584 = vpack.c.b16 %v3236, %v3232
  %v3585 = vpack.c.b16 %v3237, %v3233
  %v3586 = vpack.c.b16 %v3238, %v3234
  %v3587 = vpack.c.b16 %v3239, %v3235
  %v3588 = vpack.c.b16 %v3244, %v3240
  %v3589 = vpack.c.b16 %v3245, %v3241
  %v3590 = vpack.c.b16 %v3246, %v3242
  %v3591 = vpack.c.b16 %v3247, %v3243
  %v3592 = vpack.c.b16 %v3252, %v3248
  %v3593 = vpack.c.b16 %v3253, %v3249
  %v3594 = vpack.c.b16 %v3254, %v3250
  %v3595 = vpack.c.b16 %v3255, %v3251
  %v3596 = vpack.c.b16 %v3260, %v3256
  %v3597 = vpack.c.b16 %v3261, %v3257
  %v3598 = vpack.c.b16 %v3262, %v3258
  %v3599 = vpack.c.b16 %v3263, %v3259
  %v3600 = vpack.c.b16 %v3268, %v3264
  %v3601 = vpack.c.b16 %v3269, %v3265
  %v3602 = vpack.c.b16 %v3270, %v3266
  %v3603 = vpack.c.b16 %v3271, %v3267
  %v3604 = vpack.c.b16 %v3276, %v3272
  %v3605 = vpack.c.b16 %v3277, %v3273
  %v3606 = vpack.c.b16 %v3278, %v3274
  %v3607 = vpack.c.b16 %v3279, %v3275
  %v3608 = vpack.c.b16 %v3284, %v3280
  %v3609 = vpack.c.b16 %v3285, %v3281
  %v3610 = vpack.c.b16 %v3286, %v3282
  %v3611 = vpack.c.b16 %v3287, %v3283
  %v3612 = vpack.c.b16 %v3292, %v3288
  %v3613 = vpack.c.b16 %v3293, %v3289
  %v3614 = vpack.c.b16 %v3294, %v3290
  %v3615 = vpack.c.b16 %v3295, %v3291
  %v3616 = vpack.c.b16 %v3300, %v3296
  %v3617 = vpack.c.b16 %v3301, %v3297
  %v3618 = vpack.c.b16 %v3302, %v3298
  %v3619 = vpack.c.b16 %v3303, %v3299
  %v3620 = vpack.c.b16 %v3308, %v3304
  %v3621 = vpack.c.b16 %v3309, %v3305
  %v3622 = vpack.c.b16 %v3310, %v3306
  %v3623 = vpack.c.b16 %v3311, %v3307
  %v3624 = vpack.c.b16 %v3316, %v3312
  %v3625 = vpack.c.b16 %v3317, %v3313
  %v3626 = vpack.c.b16 %v3318, %v3314
  %v3627 = vpack.c.b16 %v3319, %v3315
  %v3628 = vpack.c.b16 %v3324, %v3320
  %v3629 = vpack.c.b16 %v3325, %v3321
  %v3630 = vpack.c.b16 %v3326, %v3322
  %v3631 = vpack.c.b16 %v3327, %v3323
  %v3632 = vpack.c.b16 %v3332, %v3328
  %v3633 = vpack.c.b16 %v3333, %v3329
  %v3634 = vpack.c.b16 %v3334, %v3330
  %v3635 = vpack.c.b16 %v3335, %v3331
  %v3636 = vpack.c.b16 %v3340, %v3336
  %v3637 = vpack.c.b16 %v3341, %v3337
  %v3638 = vpack.c.b16 %v3342, %v3338
  %v3639 = vpack.c.b16 %v3343, %v3339
  %v3640 = vpack.c.b16 %v3348, %v3344
  %v3641 = vpack.c.b16 %v3349, %v3345
  %v3642 = vpack.c.b16 %v3350, %v3346
  %v3643 = vpack.c.b16 %v3351, %v3347
  %v3644 = vpack.c.b16 %v3356, %v3352
  %v3645 = vpack.c.b16 %v3357, %v3353
  %v3646 = vpack.c.b16 %v3358, %v3354
  %v3647 = vpack.c.b16 %v3359, %v3355
  %v3648 = vpack.c.b16 %v3364, %v3360
  %v3649 = vpack.c.b16 %v3365, %v3361
  %v3650 = vpack.c.b16 %v3366, %v3362
  %v3651 = vpack.c.b16 %v3367, %v3363
  %v3652 = vpack.c.b16 %v3372, %v3368
  %v3653 = vpack.c.b16 %v3373, %v3369
  %v3654 = vpack.c.b16 %v3374, %v3370
  %v3655 = vpack.c.b16 %v3375, %v3371
  %v3656 = vpack.c.b16 %v3380, %v3376
  %v3657 = vpack.c.b16 %v3381, %v3377
  %v3658 = vpack.c.b16 %v3382, %v3378
  %v3659 = vpack.c.b16 %v3383, %v3379
  %v3660 = vpack.c.b16 %v3388, %v3384
  %v3661 = vpack.c.b16 %v3389, %v3385
  %v3662 = vpack.c.b16 %v3390, %v3386
  %v3663 = vpack.c.b16 %v3391, %v3387
  %v3664 = vpack.c.b16 %v3396, %v3392
  %v3665 = vpack.c.b16 %v3397, %v3393
  %v3666 = vpack.c.b16 %v3398, %v3394
  %v3667 = vpack.c.b16 %v3399, %v3395
  %v3668 = vpack.c.b16 %v3404, %v3400
  %v3669 = vpack.c.b16 %v3405, %v3401
  %v3670 = vpack.c.b16 %v3406, %v3402
  %v3671 = vpack.c.b16 %v3407, %v3403
  %v3672 = vpack.c.b16 %v3412, %v3408
  %v3673 = vpack.c.b16 %v3413, %v3409
  %v3674 = vpack.c.b16 %v3414, %v3410
  %v3675 = vpack.c.b16 %v3415, %v3411
  %v3676 = vpack.c.b16 %v3420, %v3416
  %v3677 = vpack.c.b16 %v3421, %v3417
  %v3678 = vpack.c.b16 %v3422, %v3418
  %v3679 = vpack.c.b16 %v3423, %v3419
  %3936 = vmatpush.bf16.msra.mxu0 %v3452
  %3937 = vmatpush.bf16.msra.mxu0 %v3448
  %3938 = vmatpush.bf16.msra.mxu0 %v3444
  %3939 = vmatpush.bf16.msra.mxu0 %v3440
  %3940 = vmatpush.bf16.msra.mxu0 %v3436
  %3941 = vmatpush.bf16.msra.mxu0 %v3432
  %3942 = vmatpush.bf16.msra.mxu0 %v3428
  %3943 = vmatpush.bf16.msra.mxu0 %v3424
  %3944 = vmatmul.bf16.gmra.mxu0 %v2382
  %v3945 = vpop.f32.mrf.mxu0
  %v3946 = vadd.f32 %v2648, %v3945
  %v3947 = vpop.f32.mrf.mxu0
  %v3948 = vadd.f32 %v2648, %v3947
  %3949 = vdwg.mxu0
  %3950 = vmatpush.bf16.msra.mxu0 %v3484
  %3951 = vmatpush.bf16.msra.mxu0 %v3480
  %3952 = vmatpush.bf16.msra.mxu0 %v3476
  %3953 = vmatpush.bf16.msra.mxu0 %v3472
  %3954 = vmatpush.bf16.msra.mxu0 %v3468
  %3955 = vmatpush.bf16.msra.mxu0 %v3464
  %3956 = vmatpush.bf16.msra.mxu0 %v3460
  %3957 = vmatpush.bf16.msra.mxu0 %v3456
  %3958 = vmatmul.bf16.gmra.mxu0 %v2383
  %v3959 = vpop.f32.mrf.mxu0
  %v3960 = vadd.f32 %v3946, %v3959
  %v3961 = vpop.f32.mrf.mxu0
  %v3962 = vadd.f32 %v3948, %v3961
  %3963 = vdwg.mxu0
  %3964 = vmatpush.bf16.msra.mxu0 %v3516
  %3965 = vmatpush.bf16.msra.mxu0 %v3512
  %3966 = vmatpush.bf16.msra.mxu0 %v3508
  %3967 = vmatpush.bf16.msra.mxu0 %v3504
  %3968 = vmatpush.bf16.msra.mxu0 %v3500
  %3969 = vmatpush.bf16.msra.mxu0 %v3496
  %3970 = vmatpush.bf16.msra.mxu0 %v3492
  %3971 = vmatpush.bf16.msra.mxu0 %v3488
  %3972 = vmatmul.bf16.gmra.mxu0 %v2384
  %v3973 = vpop.f32.mrf.mxu0
  %v3974 = vadd.f32 %v3960, %v3973
  %v3975 = vpop.f32.mrf.mxu0
  %v3976 = vadd.f32 %v3962, %v3975
  %3977 = vdwg.mxu0
  %3978 = vmatpush.bf16.msra.mxu0 %v3548
  %3979 = vmatpush.bf16.msra.mxu0 %v3544
  %3980 = vmatpush.bf16.msra.mxu0 %v3540
  %3981 = vmatpush.bf16.msra.mxu0 %v3536
  %3982 = vmatpush.bf16.msra.mxu0 %v3532
  %3983 = vmatpush.bf16.msra.mxu0 %v3528
  %3984 = vmatpush.bf16.msra.mxu0 %v3524
  %3985 = vmatpush.bf16.msra.mxu0 %v3520
  %3986 = vmatmul.bf16.gmra.mxu0 %v2385
  %v3987 = vpop.f32.mrf.mxu0
  %v3988 = vadd.f32 %v3974, %v3987
  %v3989 = vpop.f32.mrf.mxu0
  %v3990 = vadd.f32 %v3976, %v3989
  %3991 = vdwg.mxu0
  %3992 = vmatpush.bf16.msra.mxu0 %v3580
  %3993 = vmatpush.bf16.msra.mxu0 %v3576
  %3994 = vmatpush.bf16.msra.mxu0 %v3572
  %3995 = vmatpush.bf16.msra.mxu0 %v3568
  %3996 = vmatpush.bf16.msra.mxu0 %v3564
  %3997 = vmatpush.bf16.msra.mxu0 %v3560
  %3998 = vmatpush.bf16.msra.mxu0 %v3556
  %3999 = vmatpush.bf16.msra.mxu0 %v3552
  %4000 = vmatmul.bf16.gmra.mxu0 %v2386
  %v4001 = vpop.f32.mrf.mxu0
  %v4002 = vadd.f32 %v3988, %v4001
  %v4003 = vpop.f32.mrf.mxu0
  %v4004 = vadd.f32 %v3990, %v4003
  %4005 = vdwg.mxu0
  %4006 = vmatpush.bf16.msra.mxu0 %v3612
  %4007 = vmatpush.bf16.msra.mxu0 %v3608
  %4008 = vmatpush.bf16.msra.mxu0 %v3604
  %4009 = vmatpush.bf16.msra.mxu0 %v3600
  %4010 = vmatpush.bf16.msra.mxu0 %v3596
  %4011 = vmatpush.bf16.msra.mxu0 %v3592
  %4012 = vmatpush.bf16.msra.mxu0 %v3588
  %4013 = vmatpush.bf16.msra.mxu0 %v3584
  %4014 = vmatmul.bf16.gmra.mxu0 %v2387
  %v4015 = vpop.f32.mrf.mxu0
  %v4016 = vadd.f32 %v4002, %v4015
  %v4017 = vpop.f32.mrf.mxu0
  %v4018 = vadd.f32 %v4004, %v4017
  %4019 = vdwg.mxu0
  %4020 = vmatpush.bf16.msra.mxu0 %v3644
  %4021 = vmatpush.bf16.msra.mxu0 %v3640
  %4022 = vmatpush.bf16.msra.mxu0 %v3636
  %4023 = vmatpush.bf16.msra.mxu0 %v3632
  %4024 = vmatpush.bf16.msra.mxu0 %v3628
  %4025 = vmatpush.bf16.msra.mxu0 %v3624
  %4026 = vmatpush.bf16.msra.mxu0 %v3620
  %4027 = vmatpush.bf16.msra.mxu0 %v3616
  %4028 = vmatmul.bf16.gmra.mxu0 %v2388
  %v4029 = vpop.f32.mrf.mxu0
  %v4030 = vadd.f32 %v4016, %v4029
  %v4031 = vpop.f32.mrf.mxu0
  %v4032 = vadd.f32 %v4018, %v4031
  %4033 = vdwg.mxu0
  %4034 = vmatpush.bf16.msra.mxu0 %v3676
  %4035 = vmatpush.bf16.msra.mxu0 %v3672
  %4036 = vmatpush.bf16.msra.mxu0 %v3668
  %4037 = vmatpush.bf16.msra.mxu0 %v3664
  %4038 = vmatpush.bf16.msra.mxu0 %v3660
  %4039 = vmatpush.bf16.msra.mxu0 %v3656
  %4040 = vmatpush.bf16.msra.mxu0 %v3652
  %4041 = vmatpush.bf16.msra.mxu0 %v3648
  %4042 = vmatmul.bf16.gmra.mxu0 %v2389
  %v4043 = vpop.f32.mrf.mxu0
  %v4044 = vadd.f32 %v4030, %v4043
  %v4045 = vpop.f32.mrf.mxu0
  %v4046 = vadd.f32 %v4032, %v4045
  %4047 = vdwg.mxu0
  %4048 = vmatpush.bf16.msra.mxu0 %v3453
  %4049 = vmatpush.bf16.msra.mxu0 %v3449
  %4050 = vmatpush.bf16.msra.mxu0 %v3445
  %4051 = vmatpush.bf16.msra.mxu0 %v3441
  %4052 = vmatpush.bf16.msra.mxu0 %v3437
  %4053 = vmatpush.bf16.msra.mxu0 %v3433
  %4054 = vmatpush.bf16.msra.mxu0 %v3429
  %4055 = vmatpush.bf16.msra.mxu0 %v3425
  %4056 = vmatmul.bf16.gmra.mxu0 %v2382
  %v4057 = vpop.f32.mrf.mxu0
  %v4058 = vadd.f32 %v2649, %v4057
  %v4059 = vpop.f32.mrf.mxu0
  %v4060 = vadd.f32 %v2649, %v4059
  %4061 = vdwg.mxu0
  %4062 = vmatpush.bf16.msra.mxu0 %v3485
  %4063 = vmatpush.bf16.msra.mxu0 %v3481
  %4064 = vmatpush.bf16.msra.mxu0 %v3477
  %4065 = vmatpush.bf16.msra.mxu0 %v3473
  %4066 = vmatpush.bf16.msra.mxu0 %v3469
  %4067 = vmatpush.bf16.msra.mxu0 %v3465
  %4068 = vmatpush.bf16.msra.mxu0 %v3461
  %4069 = vmatpush.bf16.msra.mxu0 %v3457
  %4070 = vmatmul.bf16.gmra.mxu0 %v2383
  %v4071 = vpop.f32.mrf.mxu0
  %v4072 = vadd.f32 %v4058, %v4071
  %v4073 = vpop.f32.mrf.mxu0
  %v4074 = vadd.f32 %v4060, %v4073
  %4075 = vdwg.mxu0
  %4076 = vmatpush.bf16.msra.mxu0 %v3517
  %4077 = vmatpush.bf16.msra.mxu0 %v3513
  %4078 = vmatpush.bf16.msra.mxu0 %v3509
  %4079 = vmatpush.bf16.msra.mxu0 %v3505
  %4080 = vmatpush.bf16.msra.mxu0 %v3501
  %4081 = vmatpush.bf16.msra.mxu0 %v3497
  %4082 = vmatpush.bf16.msra.mxu0 %v3493
  %4083 = vmatpush.bf16.msra.mxu0 %v3489
  %4084 = vmatmul.bf16.gmra.mxu0 %v2384
  %v4085 = vpop.f32.mrf.mxu0
  %v4086 = vadd.f32 %v4072, %v4085
  %v4087 = vpop.f32.mrf.mxu0
  %v4088 = vadd.f32 %v4074, %v4087
  %4089 = vdwg.mxu0
  %4090 = vmatpush.bf16.msra.mxu0 %v3549
  %4091 = vmatpush.bf16.msra.mxu0 %v3545
  %4092 = vmatpush.bf16.msra.mxu0 %v3541
  %4093 = vmatpush.bf16.msra.mxu0 %v3537
  %4094 = vmatpush.bf16.msra.mxu0 %v3533
  %4095 = vmatpush.bf16.msra.mxu0 %v3529
  %4096 = vmatpush.bf16.msra.mxu0 %v3525
  %4097 = vmatpush.bf16.msra.mxu0 %v3521
  %4098 = vmatmul.bf16.gmra.mxu0 %v2385
  %v4099 = vpop.f32.mrf.mxu0
  %v4100 = vadd.f32 %v4086, %v4099
  %v4101 = vpop.f32.mrf.mxu0
  %v4102 = vadd.f32 %v4088, %v4101
  %4103 = vdwg.mxu0
  %4104 = vmatpush.bf16.msra.mxu0 %v3581
  %4105 = vmatpush.bf16.msra.mxu0 %v3577
  %4106 = vmatpush.bf16.msra.mxu0 %v3573
  %4107 = vmatpush.bf16.msra.mxu0 %v3569
  %4108 = vmatpush.bf16.msra.mxu0 %v3565
  %4109 = vmatpush.bf16.msra.mxu0 %v3561
  %4110 = vmatpush.bf16.msra.mxu0 %v3557
  %4111 = vmatpush.bf16.msra.mxu0 %v3553
  %4112 = vmatmul.bf16.gmra.mxu0 %v2386
  %v4113 = vpop.f32.mrf.mxu0
  %v4114 = vadd.f32 %v4100, %v4113
  %v4115 = vpop.f32.mrf.mxu0
  %v4116 = vadd.f32 %v4102, %v4115
  %4117 = vdwg.mxu0
  %4118 = vmatpush.bf16.msra.mxu0 %v3613
  %4119 = vmatpush.bf16.msra.mxu0 %v3609
  %4120 = vmatpush.bf16.msra.mxu0 %v3605
  %4121 = vmatpush.bf16.msra.mxu0 %v3601
  %4122 = vmatpush.bf16.msra.mxu0 %v3597
  %4123 = vmatpush.bf16.msra.mxu0 %v3593
  %4124 = vmatpush.bf16.msra.mxu0 %v3589
  %4125 = vmatpush.bf16.msra.mxu0 %v3585
  %4126 = vmatmul.bf16.gmra.mxu0 %v2387
  %v4127 = vpop.f32.mrf.mxu0
  %v4128 = vadd.f32 %v4114, %v4127
  %v4129 = vpop.f32.mrf.mxu0
  %v4130 = vadd.f32 %v4116, %v4129
  %4131 = vdwg.mxu0
  %4132 = vmatpush.bf16.msra.mxu0 %v3645
  %4133 = vmatpush.bf16.msra.mxu0 %v3641
  %4134 = vmatpush.bf16.msra.mxu0 %v3637
  %4135 = vmatpush.bf16.msra.mxu0 %v3633
  %4136 = vmatpush.bf16.msra.mxu0 %v3629
  %4137 = vmatpush.bf16.msra.mxu0 %v3625
  %4138 = vmatpush.bf16.msra.mxu0 %v3621
  %4139 = vmatpush.bf16.msra.mxu0 %v3617
  %4140 = vmatmul.bf16.gmra.mxu0 %v2388
  %v4141 = vpop.f32.mrf.mxu0
  %v4142 = vadd.f32 %v4128, %v4141
  %v4143 = vpop.f32.mrf.mxu0
  %v4144 = vadd.f32 %v4130, %v4143
  %4145 = vdwg.mxu0
  %4146 = vmatpush.bf16.msra.mxu0 %v3677
  %4147 = vmatpush.bf16.msra.mxu0 %v3673
  %4148 = vmatpush.bf16.msra.mxu0 %v3669
  %4149 = vmatpush.bf16.msra.mxu0 %v3665
  %4150 = vmatpush.bf16.msra.mxu0 %v3661
  %4151 = vmatpush.bf16.msra.mxu0 %v3657
  %4152 = vmatpush.bf16.msra.mxu0 %v3653
  %4153 = vmatpush.bf16.msra.mxu0 %v3649
  %4154 = vmatmul.bf16.gmra.mxu0 %v2389
  %v4155 = vpop.f32.mrf.mxu0
  %v4156 = vadd.f32 %v4142, %v4155
  %v4157 = vpop.f32.mrf.mxu0
  %v4158 = vadd.f32 %v4144, %v4157
  %4159 = vdwg.mxu0
  %4160 = vmatpush.bf16.msra.mxu0 %v3454
  %4161 = vmatpush.bf16.msra.mxu0 %v3450
  %4162 = vmatpush.bf16.msra.mxu0 %v3446
  %4163 = vmatpush.bf16.msra.mxu0 %v3442
  %4164 = vmatpush.bf16.msra.mxu0 %v3438
  %4165 = vmatpush.bf16.msra.mxu0 %v3434
  %4166 = vmatpush.bf16.msra.mxu0 %v3430
  %4167 = vmatpush.bf16.msra.mxu0 %v3426
  %4168 = vmatmul.bf16.gmra.mxu0 %v2382
  %v4169 = vpop.f32.mrf.mxu0
  %v4170 = vadd.f32 %v2650, %v4169
  %v4171 = vpop.f32.mrf.mxu0
  %v4172 = vadd.f32 %v2650, %v4171
  %4173 = vdwg.mxu0
  %4174 = vmatpush.bf16.msra.mxu0 %v3486
  %4175 = vmatpush.bf16.msra.mxu0 %v3482
  %4176 = vmatpush.bf16.msra.mxu0 %v3478
  %4177 = vmatpush.bf16.msra.mxu0 %v3474
  %4178 = vmatpush.bf16.msra.mxu0 %v3470
  %4179 = vmatpush.bf16.msra.mxu0 %v3466
  %4180 = vmatpush.bf16.msra.mxu0 %v3462
  %4181 = vmatpush.bf16.msra.mxu0 %v3458
  %4182 = vmatmul.bf16.gmra.mxu0 %v2383
  %v4183 = vpop.f32.mrf.mxu0
  %v4184 = vadd.f32 %v4170, %v4183
  %v4185 = vpop.f32.mrf.mxu0
  %v4186 = vadd.f32 %v4172, %v4185
  %4187 = vdwg.mxu0
  %4188 = vmatpush.bf16.msra.mxu0 %v3518
  %4189 = vmatpush.bf16.msra.mxu0 %v3514
  %4190 = vmatpush.bf16.msra.mxu0 %v3510
  %4191 = vmatpush.bf16.msra.mxu0 %v3506
  %4192 = vmatpush.bf16.msra.mxu0 %v3502
  %4193 = vmatpush.bf16.msra.mxu0 %v3498
  %4194 = vmatpush.bf16.msra.mxu0 %v3494
  %4195 = vmatpush.bf16.msra.mxu0 %v3490
  %4196 = vmatmul.bf16.gmra.mxu0 %v2384
  %v4197 = vpop.f32.mrf.mxu0
  %v4198 = vadd.f32 %v4184, %v4197
  %v4199 = vpop.f32.mrf.mxu0
  %v4200 = vadd.f32 %v4186, %v4199
  %4201 = vdwg.mxu0
  %4202 = vmatpush.bf16.msra.mxu0 %v3550
  %4203 = vmatpush.bf16.msra.mxu0 %v3546
  %4204 = vmatpush.bf16.msra.mxu0 %v3542
  %4205 = vmatpush.bf16.msra.mxu0 %v3538
  %4206 = vmatpush.bf16.msra.mxu0 %v3534
  %4207 = vmatpush.bf16.msra.mxu0 %v3530
  %4208 = vmatpush.bf16.msra.mxu0 %v3526
  %4209 = vmatpush.bf16.msra.mxu0 %v3522
  %4210 = vmatmul.bf16.gmra.mxu0 %v2385
  %v4211 = vpop.f32.mrf.mxu0
  %v4212 = vadd.f32 %v4198, %v4211
  %v4213 = vpop.f32.mrf.mxu0
  %v4214 = vadd.f32 %v4200, %v4213
  %4215 = vdwg.mxu0
  %4216 = vmatpush.bf16.msra.mxu0 %v3582
  %4217 = vmatpush.bf16.msra.mxu0 %v3578
  %4218 = vmatpush.bf16.msra.mxu0 %v3574
  %4219 = vmatpush.bf16.msra.mxu0 %v3570
  %4220 = vmatpush.bf16.msra.mxu0 %v3566
  %4221 = vmatpush.bf16.msra.mxu0 %v3562
  %4222 = vmatpush.bf16.msra.mxu0 %v3558
  %4223 = vmatpush.bf16.msra.mxu0 %v3554
  %4224 = vmatmul.bf16.gmra.mxu0 %v2386
  %v4225 = vpop.f32.mrf.mxu0
  %v4226 = vadd.f32 %v4212, %v4225
  %v4227 = vpop.f32.mrf.mxu0
  %v4228 = vadd.f32 %v4214, %v4227
  %4229 = vdwg.mxu0
  %4230 = vmatpush.bf16.msra.mxu0 %v3614
  %4231 = vmatpush.bf16.msra.mxu0 %v3610
  %4232 = vmatpush.bf16.msra.mxu0 %v3606
  %4233 = vmatpush.bf16.msra.mxu0 %v3602
  %4234 = vmatpush.bf16.msra.mxu0 %v3598
  %4235 = vmatpush.bf16.msra.mxu0 %v3594
  %4236 = vmatpush.bf16.msra.mxu0 %v3590
  %4237 = vmatpush.bf16.msra.mxu0 %v3586
  %4238 = vmatmul.bf16.gmra.mxu0 %v2387
  %v4239 = vpop.f32.mrf.mxu0
  %v4240 = vadd.f32 %v4226, %v4239
  %v4241 = vpop.f32.mrf.mxu0
  %v4242 = vadd.f32 %v4228, %v4241
  %4243 = vdwg.mxu0
  %4244 = vmatpush.bf16.msra.mxu0 %v3646
  %4245 = vmatpush.bf16.msra.mxu0 %v3642
  %4246 = vmatpush.bf16.msra.mxu0 %v3638
  %4247 = vmatpush.bf16.msra.mxu0 %v3634
  %4248 = vmatpush.bf16.msra.mxu0 %v3630
  %4249 = vmatpush.bf16.msra.mxu0 %v3626
  %4250 = vmatpush.bf16.msra.mxu0 %v3622
  %4251 = vmatpush.bf16.msra.mxu0 %v3618
  %4252 = vmatmul.bf16.gmra.mxu0 %v2388
  %v4253 = vpop.f32.mrf.mxu0
  %v4254 = vadd.f32 %v4240, %v4253
  %v4255 = vpop.f32.mrf.mxu0
  %v4256 = vadd.f32 %v4242, %v4255
  %4257 = vdwg.mxu0
  %4258 = vmatpush.bf16.msra.mxu0 %v3678
  %4259 = vmatpush.bf16.msra.mxu0 %v3674
  %4260 = vmatpush.bf16.msra.mxu0 %v3670
  %4261 = vmatpush.bf16.msra.mxu0 %v3666
  %4262 = vmatpush.bf16.msra.mxu0 %v3662
  %4263 = vmatpush.bf16.msra.mxu0 %v3658
  %4264 = vmatpush.bf16.msra.mxu0 %v3654
  %4265 = vmatpush.bf16.msra.mxu0 %v3650
  %4266 = vmatmul.bf16.gmra.mxu0 %v2389
  %v4267 = vpop.f32.mrf.mxu0
  %v4268 = vadd.f32 %v4254, %v4267
  %v4269 = vpop.f32.mrf.mxu0
  %v4270 = vadd.f32 %v4256, %v4269
  %4271 = vdwg.mxu0
  %4272 = vmatpush.bf16.msra.mxu0 %v3455
  %4273 = vmatpush.bf16.msra.mxu0 %v3451
  %4274 = vmatpush.bf16.msra.mxu0 %v3447
  %4275 = vmatpush.bf16.msra.mxu0 %v3443
  %4276 = vmatpush.bf16.msra.mxu0 %v3439
  %4277 = vmatpush.bf16.msra.mxu0 %v3435
  %4278 = vmatpush.bf16.msra.mxu0 %v3431
  %4279 = vmatpush.bf16.msra.mxu0 %v3427
  %4280 = vmatmul.bf16.gmra.mxu0 %v2382
  %v4281 = vpop.f32.mrf.mxu0
  %v4282 = vadd.f32 %v2651, %v4281
  %v4283 = vpop.f32.mrf.mxu0
  %v4284 = vadd.f32 %v2651, %v4283
  %4285 = vdwg.mxu0
  %4286 = vmatpush.bf16.msra.mxu0 %v3487
  %4287 = vmatpush.bf16.msra.mxu0 %v3483
  %4288 = vmatpush.bf16.msra.mxu0 %v3479
  %4289 = vmatpush.bf16.msra.mxu0 %v3475
  %4290 = vmatpush.bf16.msra.mxu0 %v3471
  %4291 = vmatpush.bf16.msra.mxu0 %v3467
  %4292 = vmatpush.bf16.msra.mxu0 %v3463
  %4293 = vmatpush.bf16.msra.mxu0 %v3459
  %4294 = vmatmul.bf16.gmra.mxu0 %v2383
  %v4295 = vpop.f32.mrf.mxu0
  %v4296 = vadd.f32 %v4282, %v4295
  %v4297 = vpop.f32.mrf.mxu0
  %v4298 = vadd.f32 %v4284, %v4297
  %4299 = vdwg.mxu0
  %4300 = vmatpush.bf16.msra.mxu0 %v3519
  %4301 = vmatpush.bf16.msra.mxu0 %v3515
  %4302 = vmatpush.bf16.msra.mxu0 %v3511
  %4303 = vmatpush.bf16.msra.mxu0 %v3507
  %4304 = vmatpush.bf16.msra.mxu0 %v3503
  %4305 = vmatpush.bf16.msra.mxu0 %v3499
  %4306 = vmatpush.bf16.msra.mxu0 %v3495
  %4307 = vmatpush.bf16.msra.mxu0 %v3491
  %4308 = vmatmul.bf16.gmra.mxu0 %v2384
  %v4309 = vpop.f32.mrf.mxu0
  %v4310 = vadd.f32 %v4296, %v4309
  %v4311 = vpop.f32.mrf.mxu0
  %v4312 = vadd.f32 %v4298, %v4311
  %4313 = vdwg.mxu0
  %4314 = vmatpush.bf16.msra.mxu0 %v3551
  %4315 = vmatpush.bf16.msra.mxu0 %v3547
  %4316 = vmatpush.bf16.msra.mxu0 %v3543
  %4317 = vmatpush.bf16.msra.mxu0 %v3539
  %4318 = vmatpush.bf16.msra.mxu0 %v3535
  %4319 = vmatpush.bf16.msra.mxu0 %v3531
  %4320 = vmatpush.bf16.msra.mxu0 %v3527
  %4321 = vmatpush.bf16.msra.mxu0 %v3523
  %4322 = vmatmul.bf16.gmra.mxu0 %v2385
  %v4323 = vpop.f32.mrf.mxu0
  %v4324 = vadd.f32 %v4310, %v4323
  %v4325 = vpop.f32.mrf.mxu0
  %v4326 = vadd.f32 %v4312, %v4325
  %4327 = vdwg.mxu0
  %4328 = vmatpush.bf16.msra.mxu0 %v3583
  %4329 = vmatpush.bf16.msra.mxu0 %v3579
  %4330 = vmatpush.bf16.msra.mxu0 %v3575
  %4331 = vmatpush.bf16.msra.mxu0 %v3571
  %4332 = vmatpush.bf16.msra.mxu0 %v3567
  %4333 = vmatpush.bf16.msra.mxu0 %v3563
  %4334 = vmatpush.bf16.msra.mxu0 %v3559
  %4335 = vmatpush.bf16.msra.mxu0 %v3555
  %4336 = vmatmul.bf16.gmra.mxu0 %v2386
  %v4337 = vpop.f32.mrf.mxu0
  %v4338 = vadd.f32 %v4324, %v4337
  %v4339 = vpop.f32.mrf.mxu0
  %v4340 = vadd.f32 %v4326, %v4339
  %4341 = vdwg.mxu0
  %4342 = vmatpush.bf16.msra.mxu0 %v3615
  %4343 = vmatpush.bf16.msra.mxu0 %v3611
  %4344 = vmatpush.bf16.msra.mxu0 %v3607
  %4345 = vmatpush.bf16.msra.mxu0 %v3603
  %4346 = vmatpush.bf16.msra.mxu0 %v3599
  %4347 = vmatpush.bf16.msra.mxu0 %v3595
  %4348 = vmatpush.bf16.msra.mxu0 %v3591
  %4349 = vmatpush.bf16.msra.mxu0 %v3587
  %4350 = vmatmul.bf16.gmra.mxu0 %v2387
  %v4351 = vpop.f32.mrf.mxu0
  %v4352 = vadd.f32 %v4338, %v4351
  %v4353 = vpop.f32.mrf.mxu0
  %v4354 = vadd.f32 %v4340, %v4353
  %4355 = vdwg.mxu0
  %4356 = vmatpush.bf16.msra.mxu0 %v3647
  %4357 = vmatpush.bf16.msra.mxu0 %v3643
  %4358 = vmatpush.bf16.msra.mxu0 %v3639
  %4359 = vmatpush.bf16.msra.mxu0 %v3635
  %4360 = vmatpush.bf16.msra.mxu0 %v3631
  %4361 = vmatpush.bf16.msra.mxu0 %v3627
  %4362 = vmatpush.bf16.msra.mxu0 %v3623
  %4363 = vmatpush.bf16.msra.mxu0 %v3619
  %4364 = vmatmul.bf16.gmra.mxu0 %v2388
  %v4365 = vpop.f32.mrf.mxu0
  %v4366 = vadd.f32 %v4352, %v4365
  %v4367 = vpop.f32.mrf.mxu0
  %v4368 = vadd.f32 %v4354, %v4367
  %4369 = vdwg.mxu0
  %4370 = vmatpush.bf16.msra.mxu0 %v3679
  %4371 = vmatpush.bf16.msra.mxu0 %v3675
  %4372 = vmatpush.bf16.msra.mxu0 %v3671
  %4373 = vmatpush.bf16.msra.mxu0 %v3667
  %4374 = vmatpush.bf16.msra.mxu0 %v3663
  %4375 = vmatpush.bf16.msra.mxu0 %v3659
  %4376 = vmatpush.bf16.msra.mxu0 %v3655
  %4377 = vmatpush.bf16.msra.mxu0 %v3651
  %4378 = vmatmul.bf16.gmra.mxu0 %v2389
  %v4379 = vpop.f32.mrf.mxu0
  %v4380 = vadd.f32 %v4366, %v4379
  %v4381 = vpop.f32.mrf.mxu0
  %v4382 = vadd.f32 %v4368, %v4381
  %4383 = vdwg.mxu0
  %v4384 = vpack.c.bf16 %v4156, %v4044
  %v4385 = vpack.c.bf16 %v4380, %v4268
  %v4386 = vpack.c.bf16 %v4158, %v4046
  %v4387 = vpack.c.bf16 %v4382, %v4270
  %v4388 = vunpack.c.l.bf16 %v4384
  %v4389 = vunpack.c.h.bf16 %v4384
  %v4390 = vunpack.c.l.bf16 %v4385
  %v4391 = vunpack.c.h.bf16 %v4385
  %v4392 = vunpack.c.l.bf16 %v4386
  %v4393 = vunpack.c.h.bf16 %v4386
  %v4394 = vunpack.c.l.bf16 %v4387
  %v4395 = vunpack.c.h.bf16 %v4387
  %v4396 = vmax.f32 %v4388, 0.0
  %v4397 = vmax.f32 %v4389, 0.0
  %v4398 = vmax.f32 %v4390, 0.0
  %v4399 = vmax.f32 %v4391, 0.0
  %v4400 = vmax.f32 %v4392, 0.0
  %v4401 = vmax.f32 %v4393, 0.0
  %v4402 = vmax.f32 %v4394, 0.0
  %v4403 = vmax.f32 %v4395, 0.0
  %v4404 = vpack.c.bf16 %v4400, %v4396
  %v4405 = vpack.c.bf16 %v4401, %v4397
  %v4406 = vpack.c.bf16 %v4402, %v4398
  %v4407 = vpack.c.bf16 %v4403, %v4399
  %v4408 = vld [vmem:[%s7] sm:$0xff]
  %v4409 = vld [vmem:[%s7 + $0x8] sm:$0xff]
  %v4410 = vld [vmem:[%s7 + $0x10] sm:$0xff]
  %v4411 = vld [vmem:[%s7 + $0x18] sm:$0xff]
  %v4412 = vld [vmem:[%s7 + $0x20] sm:$0xff]
  %v4413 = vld [vmem:[%s7 + $0x28] sm:$0xff]
  %v4414 = vld [vmem:[%s7 + $0x30] sm:$0xff]
  %v4415 = vld [vmem:[%s7 + $0x38] sm:$0xff]
  %v4416 = vld [vmem:[%s7 + $0x40] sm:$0xff]
  %v4417 = vld [vmem:[%s7 + $0x48] sm:$0xff]
  %v4418 = vld [vmem:[%s7 + $0x50] sm:$0xff]
  %v4419 = vld [vmem:[%s7 + $0x58] sm:$0xff]
  %v4420 = vld [vmem:[%s7 + $0x60] sm:$0xff]
  %v4421 = vld [vmem:[%s7 + $0x68] sm:$0xff]
  %v4422 = vld [vmem:[%s7 + $0x70] sm:$0xff]
  %v4423 = vld [vmem:[%s7 + $0x78] sm:$0xff]
  %v4424 = vld [vmem:[%s7 + $0x80] sm:$0xff]
  %v4425 = vld [vmem:[%s7 + $0x88] sm:$0xff]
  %v4426 = vld [vmem:[%s7 + $0x90] sm:$0xff]
  %v4427 = vld [vmem:[%s7 + $0x98] sm:$0xff]
  %v4428 = vld [vmem:[%s7 + $0xa0] sm:$0xff]
  %v4429 = vld [vmem:[%s7 + $0xa8] sm:$0xff]
  %v4430 = vld [vmem:[%s7 + $0xb0] sm:$0xff]
  %v4431 = vld [vmem:[%s7 + $0xb8] sm:$0xff]
  %v4432 = vld [vmem:[%s7 + $0xc0] sm:$0xff]
  %v4433 = vld [vmem:[%s7 + $0xc8] sm:$0xff]
  %v4434 = vld [vmem:[%s7 + $0xd0] sm:$0xff]
  %v4435 = vld [vmem:[%s7 + $0xd8] sm:$0xff]
  %v4436 = vld [vmem:[%s7 + $0xe0] sm:$0xff]
  %v4437 = vld [vmem:[%s7 + $0xe8] sm:$0xff]
  %v4438 = vld [vmem:[%s7 + $0xf0] sm:$0xff]
  %v4439 = vld [vmem:[%s7 + $0xf8] sm:$0xff]
  %v4440 = vld [vmem:[%s7 + $0x100] sm:$0xff]
  %v4441 = vld [vmem:[%s7 + $0x108] sm:$0xff]
  %v4442 = vld [vmem:[%s7 + $0x110] sm:$0xff]
  %v4443 = vld [vmem:[%s7 + $0x118] sm:$0xff]
  %v4444 = vld [vmem:[%s7 + $0x120] sm:$0xff]
  %v4445 = vld [vmem:[%s7 + $0x128] sm:$0xff]
  %v4446 = vld [vmem:[%s7 + $0x130] sm:$0xff]
  %v4447 = vld [vmem:[%s7 + $0x138] sm:$0xff]
  %v4448 = vld [vmem:[%s7 + $0x140] sm:$0xff]
  %v4449 = vld [vmem:[%s7 + $0x148] sm:$0xff]
  %v4450 = vld [vmem:[%s7 + $0x150] sm:$0xff]
  %v4451 = vld [vmem:[%s7 + $0x158] sm:$0xff]
  %v4452 = vld [vmem:[%s7 + $0x160] sm:$0xff]
  %v4453 = vld [vmem:[%s7 + $0x168] sm:$0xff]
  %v4454 = vld [vmem:[%s7 + $0x170] sm:$0xff]
  %v4455 = vld [vmem:[%s7 + $0x178] sm:$0xff]
  %v4456 = vld [vmem:[%s7 + $0x180] sm:$0xff]
  %v4457 = vld [vmem:[%s7 + $0x188] sm:$0xff]
  %v4458 = vld [vmem:[%s7 + $0x190] sm:$0xff]
  %v4459 = vld [vmem:[%s7 + $0x198] sm:$0xff]
  %v4460 = vld [vmem:[%s7 + $0x1a0] sm:$0xff]
  %v4461 = vld [vmem:[%s7 + $0x1a8] sm:$0xff]
  %v4462 = vld [vmem:[%s7 + $0x1b0] sm:$0xff]
  %v4463 = vld [vmem:[%s7 + $0x1b8] sm:$0xff]
  %v4464 = vld [vmem:[%s7 + $0x1c0] sm:$0xff]
  %v4465 = vld [vmem:[%s7 + $0x1c8] sm:$0xff]
  %v4466 = vld [vmem:[%s7 + $0x1d0] sm:$0xff]
  %v4467 = vld [vmem:[%s7 + $0x1d8] sm:$0xff]
  %v4468 = vld [vmem:[%s7 + $0x1e0] sm:$0xff]
  %v4469 = vld [vmem:[%s7 + $0x1e8] sm:$0xff]
  %v4470 = vld [vmem:[%s7 + $0x1f0] sm:$0xff]
  %v4471 = vld [vmem:[%s7 + $0x1f8] sm:$0xff]
  %v4472 = vld [vmem:[%s8] sm:$0x3]
  %v4474 = vperm.slane %v4472, 0
  %v4475 = vperm.slane %v4472, 1
  %v4542 = vunpack.c.l.b16 %v4408
  %v4543 = vunpack.c.h.b16 %v4408
  %v4544 = vunpack.c.l.b16 %v4409
  %v4545 = vunpack.c.h.b16 %v4409
  %v4546 = vunpack.c.l.b16 %v4410
  %v4547 = vunpack.c.h.b16 %v4410
  %v4548 = vunpack.c.l.b16 %v4411
  %v4549 = vunpack.c.h.b16 %v4411
  %v4550 = vunpack.c.l.b16 %v4412
  %v4551 = vunpack.c.h.b16 %v4412
  %v4552 = vunpack.c.l.b16 %v4413
  %v4553 = vunpack.c.h.b16 %v4413
  %v4554 = vunpack.c.l.b16 %v4414
  %v4555 = vunpack.c.h.b16 %v4414
  %v4556 = vunpack.c.l.b16 %v4415
  %v4557 = vunpack.c.h.b16 %v4415
  %v4558 = vunpack.c.l.b16 %v4416
  %v4559 = vunpack.c.h.b16 %v4416
  %v4560 = vunpack.c.l.b16 %v4417
  %v4561 = vunpack.c.h.b16 %v4417
  %v4562 = vunpack.c.l.b16 %v4418
  %v4563 = vunpack.c.h.b16 %v4418
  %v4564 = vunpack.c.l.b16 %v4419
  %v4565 = vunpack.c.h.b16 %v4419
  %v4566 = vunpack.c.l.b16 %v4420
  %v4567 = vunpack.c.h.b16 %v4420
  %v4568 = vunpack.c.l.b16 %v4421
  %v4569 = vunpack.c.h.b16 %v4421
  %v4570 = vunpack.c.l.b16 %v4422
  %v4571 = vunpack.c.h.b16 %v4422
  %v4572 = vunpack.c.l.b16 %v4423
  %v4573 = vunpack.c.h.b16 %v4423
  %v4574 = vunpack.c.l.b16 %v4424
  %v4575 = vunpack.c.h.b16 %v4424
  %v4576 = vunpack.c.l.b16 %v4425
  %v4577 = vunpack.c.h.b16 %v4425
  %v4578 = vunpack.c.l.b16 %v4426
  %v4579 = vunpack.c.h.b16 %v4426
  %v4580 = vunpack.c.l.b16 %v4427
  %v4581 = vunpack.c.h.b16 %v4427
  %v4582 = vunpack.c.l.b16 %v4428
  %v4583 = vunpack.c.h.b16 %v4428
  %v4584 = vunpack.c.l.b16 %v4429
  %v4585 = vunpack.c.h.b16 %v4429
  %v4586 = vunpack.c.l.b16 %v4430
  %v4587 = vunpack.c.h.b16 %v4430
  %v4588 = vunpack.c.l.b16 %v4431
  %v4589 = vunpack.c.h.b16 %v4431
  %v4590 = vunpack.c.l.b16 %v4432
  %v4591 = vunpack.c.h.b16 %v4432
  %v4592 = vunpack.c.l.b16 %v4433
  %v4593 = vunpack.c.h.b16 %v4433
  %v4594 = vunpack.c.l.b16 %v4434
  %v4595 = vunpack.c.h.b16 %v4434
  %v4596 = vunpack.c.l.b16 %v4435
  %v4597 = vunpack.c.h.b16 %v4435
  %v4598 = vunpack.c.l.b16 %v4436
  %v4599 = vunpack.c.h.b16 %v4436
  %v4600 = vunpack.c.l.b16 %v4437
  %v4601 = vunpack.c.h.b16 %v4437
  %v4602 = vunpack.c.l.b16 %v4438
  %v4603 = vunpack.c.h.b16 %v4438
  %v4604 = vunpack.c.l.b16 %v4439
  %v4605 = vunpack.c.h.b16 %v4439
  %v4606 = vunpack.c.l.b16 %v4440
  %v4607 = vunpack.c.h.b16 %v4440
  %v4608 = vunpack.c.l.b16 %v4441
  %v4609 = vunpack.c.h.b16 %v4441
  %v4610 = vunpack.c.l.b16 %v4442
  %v4611 = vunpack.c.h.b16 %v4442
  %v4612 = vunpack.c.l.b16 %v4443
  %v4613 = vunpack.c.h.b16 %v4443
  %v4614 = vunpack.c.l.b16 %v4444
  %v4615 = vunpack.c.h.b16 %v4444
  %v4616 = vunpack.c.l.b16 %v4445
  %v4617 = vunpack.c.h.b16 %v4445
  %v4618 = vunpack.c.l.b16 %v4446
  %v4619 = vunpack.c.h.b16 %v4446
  %v4620 = vunpack.c.l.b16 %v4447
  %v4621 = vunpack.c.h.b16 %v4447
  %v4622 = vunpack.c.l.b16 %v4448
  %v4623 = vunpack.c.h.b16 %v4448
  %v4624 = vunpack.c.l.b16 %v4449
  %v4625 = vunpack.c.h.b16 %v4449
  %v4626 = vunpack.c.l.b16 %v4450
  %v4627 = vunpack.c.h.b16 %v4450
  %v4628 = vunpack.c.l.b16 %v4451
  %v4629 = vunpack.c.h.b16 %v4451
  %v4630 = vunpack.c.l.b16 %v4452
  %v4631 = vunpack.c.h.b16 %v4452
  %v4632 = vunpack.c.l.b16 %v4453
  %v4633 = vunpack.c.h.b16 %v4453
  %v4634 = vunpack.c.l.b16 %v4454
  %v4635 = vunpack.c.h.b16 %v4454
  %v4636 = vunpack.c.l.b16 %v4455
  %v4637 = vunpack.c.h.b16 %v4455
  %v4638 = vunpack.c.l.b16 %v4456
  %v4639 = vunpack.c.h.b16 %v4456
  %v4640 = vunpack.c.l.b16 %v4457
  %v4641 = vunpack.c.h.b16 %v4457
  %v4642 = vunpack.c.l.b16 %v4458
  %v4643 = vunpack.c.h.b16 %v4458
  %v4644 = vunpack.c.l.b16 %v4459
  %v4645 = vunpack.c.h.b16 %v4459
  %v4646 = vunpack.c.l.b16 %v4460
  %v4647 = vunpack.c.h.b16 %v4460
  %v4648 = vunpack.c.l.b16 %v4461
  %v4649 = vunpack.c.h.b16 %v4461
  %v4650 = vunpack.c.l.b16 %v4462
  %v4651 = vunpack.c.h.b16 %v4462
  %v4652 = vunpack.c.l.b16 %v4463
  %v4653 = vunpack.c.h.b16 %v4463
  %v4654 = vunpack.c.l.b16 %v4464
  %v4655 = vunpack.c.h.b16 %v4464
  %v4656 = vunpack.c.l.b16 %v4465
  %v4657 = vunpack.c.h.b16 %v4465
  %v4658 = vunpack.c.l.b16 %v4466
  %v4659 = vunpack.c.h.b16 %v4466
  %v4660 = vunpack.c.l.b16 %v4467
  %v4661 = vunpack.c.h.b16 %v4467
  %v4662 = vunpack.c.l.b16 %v4468
  %v4663 = vunpack.c.h.b16 %v4468
  %v4664 = vunpack.c.l.b16 %v4469
  %v4665 = vunpack.c.h.b16 %v4469
  %v4666 = vunpack.c.l.b16 %v4470
  %v4667 = vunpack.c.h.b16 %v4470
  %v4668 = vunpack.c.l.b16 %v4471
  %v4669 = vunpack.c.h.b16 %v4471
  %v4670 = vpack.c.b16 %v4544, %v4542
  %v4671 = vpack.c.b16 %v4545, %v4543
  %v4672 = vpack.c.b16 %v4548, %v4546
  %v4673 = vpack.c.b16 %v4549, %v4547
  %v4674 = vpack.c.b16 %v4552, %v4550
  %v4675 = vpack.c.b16 %v4553, %v4551
  %v4676 = vpack.c.b16 %v4556, %v4554
  %v4677 = vpack.c.b16 %v4557, %v4555
  %v4678 = vpack.c.b16 %v4560, %v4558
  %v4679 = vpack.c.b16 %v4561, %v4559
  %v4680 = vpack.c.b16 %v4564, %v4562
  %v4681 = vpack.c.b16 %v4565, %v4563
  %v4682 = vpack.c.b16 %v4568, %v4566
  %v4683 = vpack.c.b16 %v4569, %v4567
  %v4684 = vpack.c.b16 %v4572, %v4570
  %v4685 = vpack.c.b16 %v4573, %v4571
  %v4686 = vpack.c.b16 %v4576, %v4574
  %v4687 = vpack.c.b16 %v4577, %v4575
  %v4688 = vpack.c.b16 %v4580, %v4578
  %v4689 = vpack.c.b16 %v4581, %v4579
  %v4690 = vpack.c.b16 %v4584, %v4582
  %v4691 = vpack.c.b16 %v4585, %v4583
  %v4692 = vpack.c.b16 %v4588, %v4586
  %v4693 = vpack.c.b16 %v4589, %v4587
  %v4694 = vpack.c.b16 %v4592, %v4590
  %v4695 = vpack.c.b16 %v4593, %v4591
  %v4696 = vpack.c.b16 %v4596, %v4594
  %v4697 = vpack.c.b16 %v4597, %v4595
  %v4698 = vpack.c.b16 %v4600, %v4598
  %v4699 = vpack.c.b16 %v4601, %v4599
  %v4700 = vpack.c.b16 %v4604, %v4602
  %v4701 = vpack.c.b16 %v4605, %v4603
  %v4702 = vpack.c.b16 %v4608, %v4606
  %v4703 = vpack.c.b16 %v4609, %v4607
  %v4704 = vpack.c.b16 %v4612, %v4610
  %v4705 = vpack.c.b16 %v4613, %v4611
  %v4706 = vpack.c.b16 %v4616, %v4614
  %v4707 = vpack.c.b16 %v4617, %v4615
  %v4708 = vpack.c.b16 %v4620, %v4618
  %v4709 = vpack.c.b16 %v4621, %v4619
  %v4710 = vpack.c.b16 %v4624, %v4622
  %v4711 = vpack.c.b16 %v4625, %v4623
  %v4712 = vpack.c.b16 %v4628, %v4626
  %v4713 = vpack.c.b16 %v4629, %v4627
  %v4714 = vpack.c.b16 %v4632, %v4630
  %v4715 = vpack.c.b16 %v4633, %v4631
  %v4716 = vpack.c.b16 %v4636, %v4634
  %v4717 = vpack.c.b16 %v4637, %v4635
  %v4718 = vpack.c.b16 %v4640, %v4638
  %v4719 = vpack.c.b16 %v4641, %v4639
  %v4720 = vpack.c.b16 %v4644, %v4642
  %v4721 = vpack.c.b16 %v4645, %v4643
  %v4722 = vpack.c.b16 %v4648, %v4646
  %v4723 = vpack.c.b16 %v4649, %v4647
  %v4724 = vpack.c.b16 %v4652, %v4650
  %v4725 = vpack.c.b16 %v4653, %v4651
  %v4726 = vpack.c.b16 %v4656, %v4654
  %v4727 = vpack.c.b16 %v4657, %v4655
  %v4728 = vpack.c.b16 %v4660, %v4658
  %v4729 = vpack.c.b16 %v4661, %v4659
  %v4730 = vpack.c.b16 %v4664, %v4662
  %v4731 = vpack.c.b16 %v4665, %v4663
  %v4732 = vpack.c.b16 %v4668, %v4666
  %v4733 = vpack.c.b16 %v4669, %v4667
  %4798 = vmatpush.bf16.msra.mxu0 %v4684
  %4799 = vmatpush.bf16.msra.mxu0 %v4682
  %4800 = vmatpush.bf16.msra.mxu0 %v4680
  %4801 = vmatpush.bf16.msra.mxu0 %v4678
  %4802 = vmatpush.bf16.msra.mxu0 %v4676
  %4803 = vmatpush.bf16.msra.mxu0 %v4674
  %4804 = vmatpush.bf16.msra.mxu0 %v4672
  %4805 = vmatpush.bf16.msra.mxu0 %v4670
  %4806 = vmatmul.bf16.gmra.mxu0 %v4404
  %v4807 = vpop.f32.mrf.mxu0
  %v4808 = vadd.f32 %v4474, %v4807
  %v4809 = vpop.f32.mrf.mxu0
  %v4810 = vadd.f32 %v4474, %v4809
  %4811 = vdwg.mxu0
  %4812 = vmatpush.bf16.msra.mxu0 %v4700
  %4813 = vmatpush.bf16.msra.mxu0 %v4698
  %4814 = vmatpush.bf16.msra.mxu0 %v4696
  %4815 = vmatpush.bf16.msra.mxu0 %v4694
  %4816 = vmatpush.bf16.msra.mxu0 %v4692
  %4817 = vmatpush.bf16.msra.mxu0 %v4690
  %4818 = vmatpush.bf16.msra.mxu0 %v4688
  %4819 = vmatpush.bf16.msra.mxu0 %v4686
  %4820 = vmatmul.bf16.gmra.mxu0 %v4405
  %v4821 = vpop.f32.mrf.mxu0
  %v4822 = vadd.f32 %v4808, %v4821
  %v4823 = vpop.f32.mrf.mxu0
  %v4824 = vadd.f32 %v4810, %v4823
  %4825 = vdwg.mxu0
  %4826 = vmatpush.bf16.msra.mxu0 %v4716
  %4827 = vmatpush.bf16.msra.mxu0 %v4714
  %4828 = vmatpush.bf16.msra.mxu0 %v4712
  %4829 = vmatpush.bf16.msra.mxu0 %v4710
  %4830 = vmatpush.bf16.msra.mxu0 %v4708
  %4831 = vmatpush.bf16.msra.mxu0 %v4706
  %4832 = vmatpush.bf16.msra.mxu0 %v4704
  %4833 = vmatpush.bf16.msra.mxu0 %v4702
  %4834 = vmatmul.bf16.gmra.mxu0 %v4406
  %v4835 = vpop.f32.mrf.mxu0
  %v4836 = vadd.f32 %v4822, %v4835
  %v4837 = vpop.f32.mrf.mxu0
  %v4838 = vadd.f32 %v4824, %v4837
  %4839 = vdwg.mxu0
  %4840 = vmatpush.bf16.msra.mxu0 %v4732
  %4841 = vmatpush.bf16.msra.mxu0 %v4730
  %4842 = vmatpush.bf16.msra.mxu0 %v4728
  %4843 = vmatpush.bf16.msra.mxu0 %v4726
  %4844 = vmatpush.bf16.msra.mxu0 %v4724
  %4845 = vmatpush.bf16.msra.mxu0 %v4722
  %4846 = vmatpush.bf16.msra.mxu0 %v4720
  %4847 = vmatpush.bf16.msra.mxu0 %v4718
  %4848 = vmatmul.bf16.gmra.mxu0 %v4407
  %v4849 = vpop.f32.mrf.mxu0
  %v4850 = vadd.f32 %v4836, %v4849
  %v4851 = vpop.f32.mrf.mxu0
  %v4852 = vadd.f32 %v4838, %v4851
  %4853 = vdwg.mxu0
  %4854 = vmatpush.bf16.msra.mxu0 %v4685
  %4855 = vmatpush.bf16.msra.mxu0 %v4683
  %4856 = vmatpush.bf16.msra.mxu0 %v4681
  %4857 = vmatpush.bf16.msra.mxu0 %v4679
  %4858 = vmatpush.bf16.msra.mxu0 %v4677
  %4859 = vmatpush.bf16.msra.mxu0 %v4675
  %4860 = vmatpush.bf16.msra.mxu0 %v4673
  %4861 = vmatpush.bf16.msra.mxu0 %v4671
  %4862 = vmatmul.bf16.gmra.mxu0 %v4404
  %v4863 = vpop.f32.mrf.mxu0
  %v4864 = vadd.f32 %v4475, %v4863
  %v4865 = vpop.f32.mrf.mxu0
  %v4866 = vadd.f32 %v4475, %v4865
  %4867 = vdwg.mxu0
  %4868 = vmatpush.bf16.msra.mxu0 %v4701
  %4869 = vmatpush.bf16.msra.mxu0 %v4699
  %4870 = vmatpush.bf16.msra.mxu0 %v4697
  %4871 = vmatpush.bf16.msra.mxu0 %v4695
  %4872 = vmatpush.bf16.msra.mxu0 %v4693
  %4873 = vmatpush.bf16.msra.mxu0 %v4691
  %4874 = vmatpush.bf16.msra.mxu0 %v4689
  %4875 = vmatpush.bf16.msra.mxu0 %v4687
  %4876 = vmatmul.bf16.gmra.mxu0 %v4405
  %v4877 = vpop.f32.mrf.mxu0
  %v4878 = vadd.f32 %v4864, %v4877
  %v4879 = vpop.f32.mrf.mxu0
  %v4880 = vadd.f32 %v4866, %v4879
  %4881 = vdwg.mxu0
  %4882 = vmatpush.bf16.msra.mxu0 %v4717
  %4883 = vmatpush.bf16.msra.mxu0 %v4715
  %4884 = vmatpush.bf16.msra.mxu0 %v4713
  %4885 = vmatpush.bf16.msra.mxu0 %v4711
  %4886 = vmatpush.bf16.msra.mxu0 %v4709
  %4887 = vmatpush.bf16.msra.mxu0 %v4707
  %4888 = vmatpush.bf16.msra.mxu0 %v4705
  %4889 = vmatpush.bf16.msra.mxu0 %v4703
  %4890 = vmatmul.bf16.gmra.mxu0 %v4406
  %v4891 = vpop.f32.mrf.mxu0
  %v4892 = vadd.f32 %v4878, %v4891
  %v4893 = vpop.f32.mrf.mxu0
  %v4894 = vadd.f32 %v4880, %v4893
  %4895 = vdwg.mxu0
  %4896 = vmatpush.bf16.msra.mxu0 %v4733
  %4897 = vmatpush.bf16.msra.mxu0 %v4731
  %4898 = vmatpush.bf16.msra.mxu0 %v4729
  %4899 = vmatpush.bf16.msra.mxu0 %v4727
  %4900 = vmatpush.bf16.msra.mxu0 %v4725
  %4901 = vmatpush.bf16.msra.mxu0 %v4723
  %4902 = vmatpush.bf16.msra.mxu0 %v4721
  %4903 = vmatpush.bf16.msra.mxu0 %v4719
  %4904 = vmatmul.bf16.gmra.mxu0 %v4407
  %v4905 = vpop.f32.mrf.mxu0
  %v4906 = vadd.f32 %v4892, %v4905
  %v4907 = vpop.f32.mrf.mxu0
  %v4908 = vadd.f32 %v4894, %v4907
  %4909 = vdwg.mxu0
  %v4910 = vpack.c.bf16 %v4906, %v4850
  %v4911 = vpack.c.bf16 %v4908, %v4852
  %v4912 = vunpack.c.l.bf16 %v4910
  %v4913 = vunpack.c.h.bf16 %v4910
  %v4914 = vunpack.c.l.bf16 %v4911
  %v4915 = vunpack.c.h.bf16 %v4911
  %v4916 = vmax.f32 %v4912, 0.0
  %v4917 = vmax.f32 %v4913, 0.0
  %v4918 = vmax.f32 %v4914, 0.0
  %v4919 = vmax.f32 %v4915, 0.0
  %v4920 = vpack.c.bf16 %v4918, %v4916
  %v4921 = vpack.c.bf16 %v4919, %v4917
  %v4922 = vld [vmem:[%s9] sm:$0xf]
  %v4923 = vld [vmem:[%s9 + $0x4] sm:$0xf]
  %v4924 = vld [vmem:[%s9 + $0x8] sm:$0xf]
  %v4925 = vld [vmem:[%s9 + $0xc] sm:$0xf]
  %v4926 = vld [vmem:[%s9 + $0x10] sm:$0xf]
  %v4927 = vld [vmem:[%s9 + $0x14] sm:$0xf]
  %v4928 = vld [vmem:[%s9 + $0x18] sm:$0xf]
  %v4929 = vld [vmem:[%s9 + $0x1c] sm:$0xf]
  %v4930 = vld [vmem:[%s9 + $0x20] sm:$0xf]
  %v4931 = vld [vmem:[%s9 + $0x24] sm:$0xf]
  %v4932 = vld [vmem:[%s9 + $0x28] sm:$0xf]
  %v4933 = vld [vmem:[%s9 + $0x2c] sm:$0xf]
  %v4934 = vld [vmem:[%s9 + $0x30] sm:$0xf]
  %v4935 = vld [vmem:[%s9 + $0x34] sm:$0xf]
  %v4936 = vld [vmem:[%s9 + $0x38] sm:$0xf]
  %v4937 = vld [vmem:[%s9 + $0x3c] sm:$0xf]
  %v4938 = vld [vmem:[%s9 + $0x40] sm:$0xf]
  %v4939 = vld [vmem:[%s9 + $0x44] sm:$0xf]
  %v4940 = vld [vmem:[%s9 + $0x48] sm:$0xf]
  %v4941 = vld [vmem:[%s9 + $0x4c] sm:$0xf]
  %v4942 = vld [vmem:[%s9 + $0x50] sm:$0xf]
  %v4943 = vld [vmem:[%s9 + $0x54] sm:$0xf]
  %v4944 = vld [vmem:[%s9 + $0x58] sm:$0xf]
  %v4945 = vld [vmem:[%s9 + $0x5c] sm:$0xf]
  %v4946 = vld [vmem:[%s9 + $0x60] sm:$0xf]
  %v4947 = vld [vmem:[%s9 + $0x64] sm:$0xf]
  %v4948 = vld [vmem:[%s9 + $0x68] sm:$0xf]
  %v4949 = vld [vmem:[%s9 + $0x6c] sm:$0xf]
  %v4950 = vld [vmem:[%s9 + $0x70] sm:$0xf]
  %v4951 = vld [vmem:[%s9 + $0x74] sm:$0xf]
  %v4952 = vld [vmem:[%s9 + $0x78] sm:$0xf]
  %v4953 = vld [vmem:[%s9 + $0x7c] sm:$0xf]
  %v4954 = vld [vmem:[%s10] sm:$0x1]
  %v4956 = vperm.slane %v4954, 0
  %v4990 = vunpack.c.l.b16 %v4922
  %v4991 = vunpack.c.l.b16 %v4923
  %v4992 = vunpack.c.l.b16 %v4924
  %v4993 = vunpack.c.l.b16 %v4925
  %v4994 = vunpack.c.l.b16 %v4926
  %v4995 = vunpack.c.l.b16 %v4927
  %v4996 = vunpack.c.l.b16 %v4928
  %v4997 = vunpack.c.l.b16 %v4929
  %v4998 = vunpack.c.l.b16 %v4930
  %v4999 = vunpack.c.l.b16 %v4931
  %v5000 = vunpack.c.l.b16 %v4932
  %v5001 = vunpack.c.l.b16 %v4933
  %v5002 = vunpack.c.l.b16 %v4934
  %v5003 = vunpack.c.l.b16 %v4935
  %v5004 = vunpack.c.l.b16 %v4936
  %v5005 = vunpack.c.l.b16 %v4937
  %v5006 = vunpack.c.l.b16 %v4938
  %v5007 = vunpack.c.l.b16 %v4939
  %v5008 = vunpack.c.l.b16 %v4940
  %v5009 = vunpack.c.l.b16 %v4941
  %v5010 = vunpack.c.l.b16 %v4942
  %v5011 = vunpack.c.l.b16 %v4943
  %v5012 = vunpack.c.l.b16 %v4944
  %v5013 = vunpack.c.l.b16 %v4945
  %v5014 = vunpack.c.l.b16 %v4946
  %v5015 = vunpack.c.l.b16 %v4947
  %v5016 = vunpack.c.l.b16 %v4948
  %v5017 = vunpack.c.l.b16 %v4949
  %v5018 = vunpack.c.l.b16 %v4950
  %v5019 = vunpack.c.l.b16 %v4951
  %v5020 = vunpack.c.l.b16 %v4952
  %v5021 = vunpack.c.l.b16 %v4953
  %v5022 = vpack.c.b16 %v4991, %v4990
  %v5023 = vpack.c.b16 %v4993, %v4992
  %v5024 = vpack.c.b16 %v4995, %v4994
  %v5025 = vpack.c.b16 %v4997, %v4996
  %v5026 = vpack.c.b16 %v4999, %v4998
  %v5027 = vpack.c.b16 %v5001, %v5000
  %v5028 = vpack.c.b16 %v5003, %v5002
  %v5029 = vpack.c.b16 %v5005, %v5004
  %v5030 = vpack.c.b16 %v5007, %v5006
  %v5031 = vpack.c.b16 %v5009, %v5008
  %v5032 = vpack.c.b16 %v5011, %v5010
  %v5033 = vpack.c.b16 %v5013, %v5012
  %v5034 = vpack.c.b16 %v5015, %v5014
  %v5035 = vpack.c.b16 %v5017, %v5016
  %v5036 = vpack.c.b16 %v5019, %v5018
  %v5037 = vpack.c.b16 %v5021, %v5020
  %5054 = vmatpush.bf16.msra.mxu0 %v5029
  %5055 = vmatpush.bf16.msra.mxu0 %v5028
  %5056 = vmatpush.bf16.msra.mxu0 %v5027
  %5057 = vmatpush.bf16.msra.mxu0 %v5026
  %5058 = vmatpush.bf16.msra.mxu0 %v5025
  %5059 = vmatpush.bf16.msra.mxu0 %v5024
  %5060 = vmatpush.bf16.msra.mxu0 %v5023
  %5061 = vmatpush.bf16.msra.mxu0 %v5022
  %5062 = vmatmul.bf16.gmra.mxu0 %v4920
  %v5063 = vpop.f32.mrf.mxu0
  %v5064 = vadd.f32 %v4956, %v5063
  %v5065 = vpop.f32.mrf.mxu0
  %v5066 = vadd.f32 %v4956, %v5065
  %5067 = vdwg.mxu0
  %5068 = vmatpush.bf16.msra.mxu0 %v5037
  %5069 = vmatpush.bf16.msra.mxu0 %v5036
  %5070 = vmatpush.bf16.msra.mxu0 %v5035
  %5071 = vmatpush.bf16.msra.mxu0 %v5034
  %5072 = vmatpush.bf16.msra.mxu0 %v5033
  %5073 = vmatpush.bf16.msra.mxu0 %v5032
  %5074 = vmatpush.bf16.msra.mxu0 %v5031
  %5075 = vmatpush.bf16.msra.mxu0 %v5030
  %5076 = vmatmul.bf16.gmra.mxu0 %v4921
  %v5077 = vpop.f32.mrf.mxu0
  %v5078 = vadd.f32 %v5064, %v5077
  %v5079 = vpop.f32.mrf.mxu0
  %v5080 = vadd.f32 %v5066, %v5079
  %5081 = vdwg.mxu0
  %v5082 = vpack.c.bf16 %v5078, %v5078
  %v5083 = vpack.c.bf16 %v5080, %v5080
  %v5084 = vunpack.c.l.bf16 %v5082
  %v5085 = vunpack.c.l.bf16 %v5083
  %v5086 = vmax.f32 %v5084, 0.0
  %v5087 = vmax.f32 %v5085, 0.0
  %v5088 = vpack.c.bf16 %v5087, %v5086
  %v5089 = vld [vmem:[%s11] sm:$0xf]
  %v5090 = vld [vmem:[%s11 + $0x4] sm:$0xf]
  %v5091 = vld [vmem:[%s11 + $0x8] sm:$0xf]
  %v5092 = vld [vmem:[%s11 + $0xc] sm:$0xf]
  %v5093 = vld [vmem:[%s11 + $0x10] sm:$0xf]
  %v5094 = vld [vmem:[%s11 + $0x14] sm:$0xf]
  %v5095 = vld [vmem:[%s11 + $0x18] sm:$0xf]
  %v5096 = vld [vmem:[%s11 + $0x1c] sm:$0xf]
  %v5097 = vld [vmem:[%s11 + $0x20] sm:$0xf]
  %v5098 = vld [vmem:[%s11 + $0x24] sm:$0xf]
  %v5099 = vld [vmem:[%s11 + $0x28] sm:$0xf]
  %v5100 = vld [vmem:[%s11 + $0x2c] sm:$0xf]
  %v5101 = vld [vmem:[%s11 + $0x30] sm:$0xf]
  %v5102 = vld [vmem:[%s11 + $0x34] sm:$0xf]
  %v5103 = vld [vmem:[%s11 + $0x38] sm:$0xf]
  %v5104 = vld [vmem:[%s11 + $0x3c] sm:$0xf]
  %v5105 = vld [vmem:[%s12] sm:$0x1]
  %v5107 = vperm.slane %v5105, 0
  %v5125 = vunpack.c.l.b16 %v5089
  %v5126 = vunpack.c.l.b16 %v5090
  %v5127 = vunpack.c.l.b16 %v5091
  %v5128 = vunpack.c.l.b16 %v5092
  %v5129 = vunpack.c.l.b16 %v5093
  %v5130 = vunpack.c.l.b16 %v5094
  %v5131 = vunpack.c.l.b16 %v5095
  %v5132 = vunpack.c.l.b16 %v5096
  %v5133 = vunpack.c.l.b16 %v5097
  %v5134 = vunpack.c.l.b16 %v5098
  %v5135 = vunpack.c.l.b16 %v5099
  %v5136 = vunpack.c.l.b16 %v5100
  %v5137 = vunpack.c.l.b16 %v5101
  %v5138 = vunpack.c.l.b16 %v5102
  %v5139 = vunpack.c.l.b16 %v5103
  %v5140 = vunpack.c.l.b16 %v5104
  %v5141 = vpack.c.b16 %v5126, %v5125
  %v5142 = vpack.c.b16 %v5128, %v5127
  %v5143 = vpack.c.b16 %v5130, %v5129
  %v5144 = vpack.c.b16 %v5132, %v5131
  %v5145 = vpack.c.b16 %v5134, %v5133
  %v5146 = vpack.c.b16 %v5136, %v5135
  %v5147 = vpack.c.b16 %v5138, %v5137
  %v5148 = vpack.c.b16 %v5140, %v5139
  %5157 = vmatpush.bf16.msra.mxu0 %v5148
  %5158 = vmatpush.bf16.msra.mxu0 %v5147
  %5159 = vmatpush.bf16.msra.mxu0 %v5146
  %5160 = vmatpush.bf16.msra.mxu0 %v5145
  %5161 = vmatpush.bf16.msra.mxu0 %v5144
  %5162 = vmatpush.bf16.msra.mxu0 %v5143
  %5163 = vmatpush.bf16.msra.mxu0 %v5142
  %5164 = vmatpush.bf16.msra.mxu0 %v5141
  %5165 = vmatmul.bf16.gmra.mxu0 %v5088
  %v5166 = vpop.f32.mrf.mxu0
  %v5167 = vadd.f32 %v5107, %v5166
  %v5168 = vpop.f32.mrf.mxu0
  %v5169 = vadd.f32 %v5107, %v5168
  %5170 = vdwg.mxu0
  %v5171 = vpack.c.bf16 %v5167, %v5167
  %v5172 = vpack.c.bf16 %v5169, %v5169
  %v5173 = vunpack.c.l.bf16 %v5171
  %v5174 = vunpack.c.l.bf16 %v5172
  %v5175 = vmax.f32 %v5173, 0.0
  %v5176 = vmax.f32 %v5174, 0.0
  %v5177 = vpack.c.bf16 %v5176, %v5175
  %v5178 = vld [vmem:[%s13] sm:$0xf]
  %v5179 = vld [vmem:[%s13 + $0x4] sm:$0xf]
  %v5180 = vld [vmem:[%s13 + $0x8] sm:$0xf]
  %v5181 = vld [vmem:[%s13 + $0xc] sm:$0xf]
  %v5182 = vld [vmem:[%s13 + $0x10] sm:$0xf]
  %v5183 = vld [vmem:[%s13 + $0x14] sm:$0xf]
  %v5184 = vld [vmem:[%s13 + $0x18] sm:$0xf]
  %v5185 = vld [vmem:[%s13 + $0x1c] sm:$0xf]
  %v5186 = vld [vmem:[%s13 + $0x20] sm:$0xf]
  %v5187 = vld [vmem:[%s13 + $0x24] sm:$0xf]
  %v5188 = vld [vmem:[%s13 + $0x28] sm:$0xf]
  %v5189 = vld [vmem:[%s13 + $0x2c] sm:$0xf]
  %v5190 = vld [vmem:[%s13 + $0x30] sm:$0xf]
  %v5191 = vld [vmem:[%s13 + $0x34] sm:$0xf]
  %v5192 = vld [vmem:[%s13 + $0x38] sm:$0xf]
  %v5193 = vld [vmem:[%s13 + $0x3c] sm:$0xf]
  %v5194 = vld [vmem:[%s14] sm:$0x1]
  %v5196 = vperm.slane %v5194, 0
  %v5214 = vunpack.c.l.b16 %v5178
  %v5215 = vunpack.c.l.b16 %v5179
  %v5216 = vunpack.c.l.b16 %v5180
  %v5217 = vunpack.c.l.b16 %v5181
  %v5218 = vunpack.c.l.b16 %v5182
  %v5219 = vunpack.c.l.b16 %v5183
  %v5220 = vunpack.c.l.b16 %v5184
  %v5221 = vunpack.c.l.b16 %v5185
  %v5222 = vunpack.c.l.b16 %v5186
  %v5223 = vunpack.c.l.b16 %v5187
  %v5224 = vunpack.c.l.b16 %v5188
  %v5225 = vunpack.c.l.b16 %v5189
  %v5226 = vunpack.c.l.b16 %v5190
  %v5227 = vunpack.c.l.b16 %v5191
  %v5228 = vunpack.c.l.b16 %v5192
  %v5229 = vunpack.c.l.b16 %v5193
  %v5230 = vpack.c.b16 %v5215, %v5214
  %v5231 = vpack.c.b16 %v5217, %v5216
  %v5232 = vpack.c.b16 %v5219, %v5218
  %v5233 = vpack.c.b16 %v5221, %v5220
  %v5234 = vpack.c.b16 %v5223, %v5222
  %v5235 = vpack.c.b16 %v5225, %v5224
  %v5236 = vpack.c.b16 %v5227, %v5226
  %v5237 = vpack.c.b16 %v5229, %v5228
  %5246 = vmatpush.bf16.msra.mxu0 %v5237
  %5247 = vmatpush.bf16.msra.mxu0 %v5236
  %5248 = vmatpush.bf16.msra.mxu0 %v5235
  %5249 = vmatpush.bf16.msra.mxu0 %v5234
  %5250 = vmatpush.bf16.msra.mxu0 %v5233
  %5251 = vmatpush.bf16.msra.mxu0 %v5232
  %5252 = vmatpush.bf16.msra.mxu0 %v5231
  %5253 = vmatpush.bf16.msra.mxu0 %v5230
  %5254 = vmatmul.bf16.gmra.mxu0 %v5177
  %v5255 = vpop.f32.mrf.mxu0
  %v5256 = vadd.f32 %v5196, %v5255
  %v5257 = vpop.f32.mrf.mxu0
  %v5258 = vadd.f32 %v5196, %v5257
  %5259 = vdwg.mxu0
  %5260 = vst [vmem:[%s15] sm:$0xff] %v5256
  %5261 = vst [vmem:[%s15 + $0x8] sm:$0xff] %v5258
  // Predicated region
  $region62: #{bcnet_forward.1} parent=0 // pred_check
    _
  $region63: #{bcnet_forward.1} parent=0 // pred_check_branch
    %5263 = sbr.rel (0) target = $region65
  $region64: #{bcnet_forward.1} parent=0 // pred_region
    _
  $region65: #{bcnet_forward.1} parent=0 // pred_fallthru
    _
  // Predicated region
  $region66: #{bcnet_forward.1} parent=0 // pred_check
    _
  $region67: #{bcnet_forward.1} parent=0 // pred_check_branch
    %5265 = sbr.rel (0) target = $region69
  $region68: #{bcnet_forward.1} parent=0 // pred_region
    _
  $region69: #{bcnet_forward.1} parent=0 // pred_fallthru
    _

</llo_original>
